<compile_context>
chip_gen: v7x
topology: tpu7x:2x2x1
jax: 0.10.0
libtpu: 0.0.40
codegen_flags: <defaults>
</compile_context>

<pallas_src>
import jax
import jax.numpy as jnp
from jax import lax
from jax.experimental import pallas as pl
from jax.experimental.pallas import tpu as pltpu

EPS = 1e-5                      # torch.nn.InstanceNorm2d default
MATMUL_DTYPE = jnp.bfloat16     # MXU input dtype (accumulation stays f32)


def _instance_norm(y, hw):
    """InstanceNorm over the flattened spatial axis of a (H*W, C) f32 array.

    Single-pass statistics: var = E[x^2] - mean^2 (computed in f32, clamped >= 0).
    """
    inv = 1.0 / hw
    s1 = jnp.sum(y, axis=0, keepdims=True)
    s2 = jnp.sum(y * y, axis=0, keepdims=True)
    mean = s1 * inv
    var = jnp.maximum(s2 * inv - mean * mean, 0.0)
    return (y - mean) * lax.rsqrt(var + EPS)


def _im2col_conv(xp_f32, w_flat, bias_row, patch_ref, H, W, C):
    """3x3 'valid' conv on a reflect-padded (H+2, W+2, C) f32 input.

    Builds the (H*W, 9*C) im2col patch matrix in `patch_ref` (bf16 VMEM scratch)
    and performs a single MXU matmul against `w_flat` (9*C, C) bf16 weights.
    Returns (H*W, C) f32 (bias already added).
    """
    for k in range(9):
        dy, dx = k // 3, k % 3
        tap = xp_f32[dy:dy + H, dx:dx + W, :].reshape(H * W, C)
        patch_ref[:, k * C:(k + 1) * C] = tap.astype(patch_ref.dtype)
    acc = jnp.dot(patch_ref[...], w_flat, preferred_element_type=jnp.float32)
    return acc + bias_row


def resnet_block_kernel(xp_ref, w1_ref, b1_ref, w2_ref, b2_ref, o_ref,
                        patch_ref, pad_ref):
    # xp_ref block: (1, H+2, W+2, C) reflect-padded input, one image per step.
    _, Hp, Wp, C = xp_ref.shape
    H, W = Hp - 2, Wp - 2
    HW = H * W

    xp = xp_ref[0]                                   # (H+2, W+2, C) f32

    # ---- conv1 (one K=9C MXU matmul, bf16 in / f32 acc) + InstanceNorm + ReLU
    y = _im2col_conv(xp, w1_ref[...], b1_ref[...], patch_ref, H, W, C)
    y = jnp.maximum(_instance_norm(y, HW), 0.0)

    # ---- assemble reflect-padded conv2 input in VMEM scratch
    #      (interior write + 4 small border slice copies; no full-tensor concats)
    yb = y.reshape(H, W, C)
    pad_ref[1:H + 1, 1:W + 1, :] = yb
    pad_ref[0:1, 1:W + 1, :] = yb[1:2, :, :]                  # top row    = row 1
    pad_ref[H + 1:H + 2, 1:W + 1, :] = yb[H - 2:H - 1, :, :]  # bottom row = row H-2
    pad_ref[:, 0:1, :] = pad_ref[:, 2:3, :]                   # left col  (+corners)
    pad_ref[:, W + 1:W + 2, :] = pad_ref[:, W - 1:W, :]       # right col (+corners)

    # ---- conv2 (im2col matmul) + InstanceNorm
    y2 = _im2col_conv(pad_ref[...], w2_ref[...], b2_ref[...], patch_ref, H, W, C)
    y2 = _instance_norm(y2, HW)

    # ---- residual connection with the (unpadded) input
    o_ref[0] = xp[1:H + 1, 1:W + 1, :] + y2.reshape(H, W, C)


def resnet_block_2d(x_nchw, w1_hwio, b1, w2_hwio, b2):
    """x_nchw: (N, C, H, W) f32; weights HWIO (3, 3, Cin, Cout); biases (C,)."""
    N, C, H, W = x_nchw.shape
    x = jnp.transpose(x_nchw, (0, 2, 3, 1))                       # -> NHWC
    # conv1 reflect pad done once on the host-side graph (XLA), not in-kernel.
    xp = jnp.pad(x, ((0, 0), (1, 1), (1, 1), (0, 0)), mode="reflect")

    # im2col weight layout: (ky*3+kx)*Cin + ci rows, Cout cols; pre-cast to bf16.
    w1f = w1_hwio.reshape(9 * C, C).astype(MATMUL_DTYPE)
    w2f = w2_hwio.reshape(9 * C, C).astype(MATMUL_DTYPE)
    b1r = b1.reshape(1, C).astype(jnp.float32)
    b2r = b2.reshape(1, C).astype(jnp.float32)

    flops = N * 2 * (2 * H * W * (9 * C) * C)                     # two convs
    bytes_accessed = (4 * ((N * (H + 2) * (W + 2) * C) + N * H * W * C)
                      + 2 * (w1f.size + w2f.size) + 4 * (b1r.size + b2r.size))

    out = pl.pallas_call(
        resnet_block_kernel,
        out_shape=jax.ShapeDtypeStruct((N, H, W, C), jnp.float32),
        grid_spec=pltpu.PrefetchScalarGridSpec(
            num_scalar_prefetch=0,
            grid=(N,),
            in_specs=[
                pl.BlockSpec((1, H + 2, W + 2, C), lambda n: (n, 0, 0, 0)),
                pl.BlockSpec((9 * C, C), lambda n: (0, 0)),
                pl.BlockSpec((1, C), lambda n: (0, 0)),
                pl.BlockSpec((9 * C, C), lambda n: (0, 0)),
                pl.BlockSpec((1, C), lambda n: (0, 0)),
            ],
            out_specs=pl.BlockSpec((1, H, W, C), lambda n: (n, 0, 0, 0)),
            scratch_shapes=[
                pltpu.VMEM((H * W, 9 * C), MATMUL_DTYPE),          # im2col patches
                pltpu.VMEM((H + 2, W + 2, C), jnp.float32),        # conv2 padded in
            ],
        ),
        compiler_params=pltpu.CompilerParams(
            dimension_semantics=("parallel",),   # batch axis -> both TCs on v7x
        ),
        cost_estimate=pl.CostEstimate(
            flops=flops, transcendentals=2 * N * C,
            bytes_accessed=bytes_accessed),
    )(xp, w1f, b1r, w2f, b2r)

    return jnp.transpose(out, (0, 3, 1, 2))                       # -> NCHW


def reference_forward(x_nchw, w1_hwio, b1, w2_hwio, b2):
    """Pure-JAX f32 reference matching the PyTorch ResnetBlock2D forward."""
    x = jnp.transpose(x_nchw, (0, 2, 3, 1))

    def conv(t, w, b):
        tp = jnp.pad(t, ((0, 0), (1, 1), (1, 1), (0, 0)), mode="reflect")
        y = lax.conv_general_dilated(
            tp, w, window_strides=(1, 1), padding="VALID",
            dimension_numbers=("NHWC", "HWIO", "NHWC"))
        return y + b

    def inorm(y):
        m = jnp.mean(y, axis=(1, 2), keepdims=True)
        v = jnp.mean((y - m) ** 2, axis=(1, 2), keepdims=True)
        return (y - m) * lax.rsqrt(v + EPS)

    y = jnp.maximum(inorm(conv(x, w1_hwio, b1)), 0.0)
    y = inorm(conv(y, w2_hwio, b2))
    out = x + y
    return jnp.transpose(out, (0, 3, 1, 2))


if __name__ == "__main__":
    key = jax.random.PRNGKey(0)
    k_x, k_w1, k_b1, k_w2, k_b2 = jax.random.split(key, 5)

    N, C, H, W = 2, 32, 16, 16  # dim = 32
    x = jax.random.normal(k_x, (N, C, H, W), dtype=jnp.float32)
    # Conv2d(dim, dim, 3) weights kept in HWIO layout (3, 3, Cin, Cout).
    w1 = 0.1 * jax.random.normal(k_w1, (3, 3, C, C), dtype=jnp.float32)
    b1 = 0.1 * jax.random.normal(k_b1, (C,), dtype=jnp.float32)
    w2 = 0.1 * jax.random.normal(k_w2, (3, 3, C, C), dtype=jnp.float32)
    b2 = 0.1 * jax.random.normal(k_b2, (C,), dtype=jnp.float32)

    out = jax.block_until_ready(resnet_block_2d(x, w1, b1, w2, b2))
    ref = jax.block_until_ready(reference_forward(x, w1, b1, w2, b2))

    assert out.shape == x.shape and out.dtype == x.dtype
    # bf16 matmul inputs (f32 accumulation): tolerance loosened accordingly.
    max_err = float(jnp.max(jnp.abs(out - ref)))
    assert max_err < 5e-2, f"max abs err = {max_err}"

    print("KERNEL_OK")
</pallas_src>

<mosaic_0001>
module attributes {stable_mosaic.version = 11 : i64} {
  func.func @resnet_block_kernel(%arg0: i32, %arg1: memref<1x18x18x32xf32, #tpu.memory_space<vmem>>, %arg2: memref<288x32xbf16, #tpu.memory_space<vmem>>, %arg3: memref<1x32xf32, #tpu.memory_space<vmem>>, %arg4: memref<288x32xbf16, #tpu.memory_space<vmem>>, %arg5: memref<1x32xf32, #tpu.memory_space<vmem>>, %arg6: memref<1x16x16x32xf32, #tpu.memory_space<vmem>>, %arg7: memref<256x288xbf16, #tpu.memory_space<vmem>>, %arg8: memref<18x18x32xf32, #tpu.memory_space<vmem>>) attributes {dimension_semantics = [#tpu.dimension_semantics<parallel>], iteration_bounds = array<i64: 2>, scalar_prefetch = 0 : i64, scratch_operands = 2 : i64, tpu.core_type = #tpu.core_type<tc>, window_params = [{transform_indices = @transform_0, window_bounds = array<i64: 1, 18, 18, 32>}, {pipeline_mode = #tpu.pipeline_mode<synchronous>, transform_indices = @transform_1, window_bounds = array<i64: 288, 32>}, {pipeline_mode = #tpu.pipeline_mode<synchronous>, transform_indices = @transform_2, window_bounds = array<i64: 1, 32>}, {pipeline_mode = #tpu.pipeline_mode<synchronous>, transform_indices = @transform_3, window_bounds = array<i64: 288, 32>}, {pipeline_mode = #tpu.pipeline_mode<synchronous>, transform_indices = @transform_4, window_bounds = array<i64: 1, 32>}, {transform_indices = @transform_5, window_bounds = array<i64: 1, 16, 16, 32>}]} {
    %c0 = arith.constant 0 : index
    %c0_0 = arith.constant 0 : index
    %c0_1 = arith.constant 0 : index
    %c0_2 = arith.constant 0 : index
    %0 = vector.load %arg1[%c0, %c0_0, %c0_1, %c0_2] : memref<1x18x18x32xf32, #tpu.memory_space<vmem>>, vector<1x18x18x32xf32>
    %1 = vector.shape_cast %0 : vector<1x18x18x32xf32> to vector<18x18x32xf32>
    %c0_3 = arith.constant 0 : index
    %c0_4 = arith.constant 0 : index
    %2 = vector.load %arg2[%c0_3, %c0_4] : memref<288x32xbf16, #tpu.memory_space<vmem>>, vector<288x32xbf16>
    %c0_5 = arith.constant 0 : index
    %c0_6 = arith.constant 0 : index
    %3 = vector.load %arg3[%c0_5, %c0_6] : memref<1x32xf32, #tpu.memory_space<vmem>>, vector<1x32xf32>
    %4 = vector.extract_strided_slice %1 {offsets = [0, 0, 0], sizes = [16, 16, 32], strides = [1, 1, 1]} : vector<18x18x32xf32> to vector<16x16x32xf32>
    %5 = vector.shape_cast %4 : vector<16x16x32xf32> to vector<256x32xf32>
    %6 = arith.truncf %5 : vector<256x32xf32> to vector<256x32xbf16>
    %c0_7 = arith.constant 0 : index
    %c0_8 = arith.constant 0 : index
    %7 = vector.load %arg7[%c0_7, %c0_8] : memref<256x288xbf16, #tpu.memory_space<vmem>>, vector<256x32xbf16>
    tpu.vector_store %arg7[%c0_7, %c0_8], %6 {strides = array<i32>} : memref<256x288xbf16, #tpu.memory_space<vmem>>, vector<256x32xbf16>,
    %8 = vector.extract_strided_slice %1 {offsets = [0, 1, 0], sizes = [16, 16, 32], strides = [1, 1, 1]} : vector<18x18x32xf32> to vector<16x16x32xf32>
    %9 = vector.shape_cast %8 : vector<16x16x32xf32> to vector<256x32xf32>
    %10 = arith.truncf %9 : vector<256x32xf32> to vector<256x32xbf16>
    %c0_9 = arith.constant 0 : index
    %c32 = arith.constant 32 : index
    %11 = vector.load %arg7[%c0_9, %c32] : memref<256x288xbf16, #tpu.memory_space<vmem>>, vector<256x32xbf16>
    tpu.vector_store %arg7[%c0_9, %c32], %10 {strides = array<i32>} : memref<256x288xbf16, #tpu.memory_space<vmem>>, vector<256x32xbf16>,
    %12 = vector.extract_strided_slice %1 {offsets = [0, 2, 0], sizes = [16, 16, 32], strides = [1, 1, 1]} : vector<18x18x32xf32> to vector<16x16x32xf32>
    %13 = vector.shape_cast %12 : vector<16x16x32xf32> to vector<256x32xf32>
    %14 = arith.truncf %13 : vector<256x32xf32> to vector<256x32xbf16>
    %c0_10 = arith.constant 0 : index
    %c64 = arith.constant 64 : index
    %15 = vector.load %arg7[%c0_10, %c64] : memref<256x288xbf16, #tpu.memory_space<vmem>>, vector<256x32xbf16>
    tpu.vector_store %arg7[%c0_10, %c64], %14 {strides = array<i32>} : memref<256x288xbf16, #tpu.memory_space<vmem>>, vector<256x32xbf16>,
    %16 = vector.extract_strided_slice %1 {offsets = [1, 0, 0], sizes = [16, 16, 32], strides = [1, 1, 1]} : vector<18x18x32xf32> to vector<16x16x32xf32>
    %17 = vector.shape_cast %16 : vector<16x16x32xf32> to vector<256x32xf32>
    %18 = arith.truncf %17 : vector<256x32xf32> to vector<256x32xbf16>
    %c0_11 = arith.constant 0 : index
    %c96 = arith.constant 96 : index
    %19 = vector.load %arg7[%c0_11, %c96] : memref<256x288xbf16, #tpu.memory_space<vmem>>, vector<256x32xbf16>
    tpu.vector_store %arg7[%c0_11, %c96], %18 {strides = array<i32>} : memref<256x288xbf16, #tpu.memory_space<vmem>>, vector<256x32xbf16>,
    %20 = vector.extract_strided_slice %1 {offsets = [1, 1, 0], sizes = [16, 16, 32], strides = [1, 1, 1]} : vector<18x18x32xf32> to vector<16x16x32xf32>
    %21 = vector.shape_cast %20 : vector<16x16x32xf32> to vector<256x32xf32>
    %22 = arith.truncf %21 : vector<256x32xf32> to vector<256x32xbf16>
    %c0_12 = arith.constant 0 : index
    %c128 = arith.constant 128 : index
    %23 = vector.load %arg7[%c0_12, %c128] : memref<256x288xbf16, #tpu.memory_space<vmem>>, vector<256x32xbf16>
    tpu.vector_store %arg7[%c0_12, %c128], %22 {strides = array<i32>} : memref<256x288xbf16, #tpu.memory_space<vmem>>, vector<256x32xbf16>,
    %24 = vector.extract_strided_slice %1 {offsets = [1, 2, 0], sizes = [16, 16, 32], strides = [1, 1, 1]} : vector<18x18x32xf32> to vector<16x16x32xf32>
    %25 = vector.shape_cast %24 : vector<16x16x32xf32> to vector<256x32xf32>
    %26 = arith.truncf %25 : vector<256x32xf32> to vector<256x32xbf16>
    %c0_13 = arith.constant 0 : index
    %c160 = arith.constant 160 : index
    %27 = vector.load %arg7[%c0_13, %c160] : memref<256x288xbf16, #tpu.memory_space<vmem>>, vector<256x32xbf16>
    tpu.vector_store %arg7[%c0_13, %c160], %26 {strides = array<i32>} : memref<256x288xbf16, #tpu.memory_space<vmem>>, vector<256x32xbf16>,
    %28 = vector.extract_strided_slice %1 {offsets = [2, 0, 0], sizes = [16, 16, 32], strides = [1, 1, 1]} : vector<18x18x32xf32> to vector<16x16x32xf32>
    %29 = vector.shape_cast %28 : vector<16x16x32xf32> to vector<256x32xf32>
    %30 = arith.truncf %29 : vector<256x32xf32> to vector<256x32xbf16>
    %c0_14 = arith.constant 0 : index
    %c192 = arith.constant 192 : index
    %31 = vector.load %arg7[%c0_14, %c192] : memref<256x288xbf16, #tpu.memory_space<vmem>>, vector<256x32xbf16>
    tpu.vector_store %arg7[%c0_14, %c192], %30 {strides = array<i32>} : memref<256x288xbf16, #tpu.memory_space<vmem>>, vector<256x32xbf16>,
    %32 = vector.extract_strided_slice %1 {offsets = [2, 1, 0], sizes = [16, 16, 32], strides = [1, 1, 1]} : vector<18x18x32xf32> to vector<16x16x32xf32>
    %33 = vector.shape_cast %32 : vector<16x16x32xf32> to vector<256x32xf32>
    %34 = arith.truncf %33 : vector<256x32xf32> to vector<256x32xbf16>
    %c0_15 = arith.constant 0 : index
    %c224 = arith.constant 224 : index
    %35 = vector.load %arg7[%c0_15, %c224] : memref<256x288xbf16, #tpu.memory_space<vmem>>, vector<256x32xbf16>
    tpu.vector_store %arg7[%c0_15, %c224], %34 {strides = array<i32>} : memref<256x288xbf16, #tpu.memory_space<vmem>>, vector<256x32xbf16>,
    %36 = vector.extract_strided_slice %1 {offsets = [2, 2, 0], sizes = [16, 16, 32], strides = [1, 1, 1]} : vector<18x18x32xf32> to vector<16x16x32xf32>
    %37 = vector.shape_cast %36 : vector<16x16x32xf32> to vector<256x32xf32>
    %38 = arith.truncf %37 : vector<256x32xf32> to vector<256x32xbf16>
    %c0_16 = arith.constant 0 : index
    %c256 = arith.constant 256 : index
    %39 = vector.load %arg7[%c0_16, %c256] : memref<256x288xbf16, #tpu.memory_space<vmem>>, vector<256x32xbf16>
    tpu.vector_store %arg7[%c0_16, %c256], %38 {strides = array<i32>} : memref<256x288xbf16, #tpu.memory_space<vmem>>, vector<256x32xbf16>,
    %c0_17 = arith.constant 0 : index
    %c0_18 = arith.constant 0 : index
    %40 = vector.load %arg7[%c0_17, %c0_18] : memref<256x288xbf16, #tpu.memory_space<vmem>>, vector<256x288xbf16>
    %cst = arith.constant dense<0.000000e+00> : vector<256x32xf32>
    %41 = tpu.matmul %40, %2, %cst {dimension_numbers = #tpu.dot_dimension_numbers<[1], [0], [0], [1], [0, 0, 1, 1], [], []>} : vector<256x288xbf16>, vector<288x32xbf16>, vector<256x32xf32> -> vector<256x32xf32>
    %42 = vector.broadcast %3 : vector<1x32xf32> to vector<256x32xf32>
    %43 = arith.addf %41, %42 : vector<256x32xf32>
    %cst_19 = arith.constant dense<0.000000e+00> : vector<32xf32>
    %44 = vector.multi_reduction <add>, %43, %cst_19 [0] : vector<256x32xf32> to vector<32xf32>
    %45 = vector.shape_cast %44 : vector<32xf32> to vector<1x32xf32>
    %46 = arith.mulf %43, %43 : vector<256x32xf32>
    %cst_20 = arith.constant dense<0.000000e+00> : vector<32xf32>
    %47 = vector.multi_reduction <add>, %46, %cst_20 [0] : vector<256x32xf32> to vector<32xf32>
    %48 = vector.shape_cast %47 : vector<32xf32> to vector<1x32xf32>
    %cst_21 = arith.constant 3.906250e-03 : f32
    %49 = vector.broadcast %cst_21 : f32 to vector<1x32xf32>
    %50 = arith.mulf %45, %49 : vector<1x32xf32>
    %cst_22 = arith.constant 3.906250e-03 : f32
    %51 = vector.broadcast %cst_22 : f32 to vector<1x32xf32>
    %52 = arith.mulf %48, %51 : vector<1x32xf32>
    %53 = arith.mulf %50, %50 : vector<1x32xf32>
    %54 = arith.subf %52, %53 : vector<1x32xf32>
    %cst_23 = arith.constant 0.000000e+00 : f32
    %55 = vector.broadcast %cst_23 : f32 to vector<1x32xf32>
    %56 = arith.maximumf %54, %55 : vector<1x32xf32>
    %57 = vector.broadcast %50 : vector<1x32xf32> to vector<256x32xf32>
    %58 = arith.subf %43, %57 : vector<256x32xf32>
    %cst_24 = arith.constant 9.99999974E-6 : f32
    %59 = vector.broadcast %cst_24 : f32 to vector<1x32xf32>
    %60 = arith.addf %56, %59 : vector<1x32xf32>
    %61 = math.rsqrt %60 : vector<1x32xf32>
    %62 = vector.broadcast %61 : vector<1x32xf32> to vector<256x32xf32>
    %63 = arith.mulf %58, %62 : vector<256x32xf32>
    %cst_25 = arith.constant 0.000000e+00 : f32
    %64 = vector.broadcast %cst_25 : f32 to vector<256x32xf32>
    %65 = arith.maximumf %63, %64 : vector<256x32xf32>
    %66 = vector.shape_cast %65 : vector<256x32xf32> to vector<16x16x32xf32>
    %c1 = arith.constant 1 : index
    %c1_26 = arith.constant 1 : index
    %c0_27 = arith.constant 0 : index
    %67 = vector.load %arg8[%c1, %c1_26, %c0_27] : memref<18x18x32xf32, #tpu.memory_space<vmem>>, vector<16x16x32xf32>
    tpu.vector_store %arg8[%c1, %c1_26, %c0_27], %66 {strides = array<i32>} : memref<18x18x32xf32, #tpu.memory_space<vmem>>, vector<16x16x32xf32>,
    %68 = vector.extract_strided_slice %66 {offsets = [1, 0, 0], sizes = [1, 16, 32], strides = [1, 1, 1]} : vector<16x16x32xf32> to vector<1x16x32xf32>
    %c0_28 = arith.constant 0 : index
    %c1_29 = arith.constant 1 : index
    %c0_30 = arith.constant 0 : index
    %69 = vector.load %arg8[%c0_28, %c1_29, %c0_30] : memref<18x18x32xf32, #tpu.memory_space<vmem>>, vector<1x16x32xf32>
    tpu.vector_store %arg8[%c0_28, %c1_29, %c0_30], %68 {strides = array<i32>} : memref<18x18x32xf32, #tpu.memory_space<vmem>>, vector<1x16x32xf32>,
    %70 = vector.extract_strided_slice %66 {offsets = [14, 0, 0], sizes = [1, 16, 32], strides = [1, 1, 1]} : vector<16x16x32xf32> to vector<1x16x32xf32>
    %c17 = arith.constant 17 : index
    %c1_31 = arith.constant 1 : index
    %c0_32 = arith.constant 0 : index
    %71 = vector.load %arg8[%c17, %c1_31, %c0_32] : memref<18x18x32xf32, #tpu.memory_space<vmem>>, vector<1x16x32xf32>
    tpu.vector_store %arg8[%c17, %c1_31, %c0_32], %70 {strides = array<i32>} : memref<18x18x32xf32, #tpu.memory_space<vmem>>, vector<1x16x32xf32>,
    %c0_33 = arith.constant 0 : index
    %c2 = arith.constant 2 : index
    %c0_34 = arith.constant 0 : index
    %72 = vector.load %arg8[%c0_33, %c2, %c0_34] : memref<18x18x32xf32, #tpu.memory_space<vmem>>, vector<18x1x32xf32>
    %c0_35 = arith.constant 0 : index
    %c0_36 = arith.constant 0 : index
    %c0_37 = arith.constant 0 : index
    %73 = vector.load %arg8[%c0_35, %c0_36, %c0_37] : memref<18x18x32xf32, #tpu.memory_space<vmem>>, vector<18x1x32xf32>
    tpu.vector_store %arg8[%c0_35, %c0_36, %c0_37], %72 {strides = array<i32>} : memref<18x18x32xf32, #tpu.memory_space<vmem>>, vector<18x1x32xf32>,
    %c0_38 = arith.constant 0 : index
    %c15 = arith.constant 15 : index
    %c0_39 = arith.constant 0 : index
    %74 = vector.load %arg8[%c0_38, %c15, %c0_39] : memref<18x18x32xf32, #tpu.memory_space<vmem>>, vector<18x1x32xf32>
    %c0_40 = arith.constant 0 : index
    %c17_41 = arith.constant 17 : index
    %c0_42 = arith.constant 0 : index
    %75 = vector.load %arg8[%c0_40, %c17_41, %c0_42] : memref<18x18x32xf32, #tpu.memory_space<vmem>>, vector<18x1x32xf32>
    tpu.vector_store %arg8[%c0_40, %c17_41, %c0_42], %74 {strides = array<i32>} : memref<18x18x32xf32, #tpu.memory_space<vmem>>, vector<18x1x32xf32>,
    %c0_43 = arith.constant 0 : index
    %c0_44 = arith.constant 0 : index
    %c0_45 = arith.constant 0 : index
    %76 = vector.load %arg8[%c0_43, %c0_44, %c0_45] : memref<18x18x32xf32, #tpu.memory_space<vmem>>, vector<18x18x32xf32>
    %c0_46 = arith.constant 0 : index
    %c0_47 = arith.constant 0 : index
    %77 = vector.load %arg4[%c0_46, %c0_47] : memref<288x32xbf16, #tpu.memory_space<vmem>>, vector<288x32xbf16>
    %c0_48 = arith.constant 0 : index
    %c0_49 = arith.constant 0 : index
    %78 = vector.load %arg5[%c0_48, %c0_49] : memref<1x32xf32, #tpu.memory_space<vmem>>, vector<1x32xf32>
    %79 = vector.extract_strided_slice %76 {offsets = [0, 0, 0], sizes = [16, 16, 32], strides = [1, 1, 1]} : vector<18x18x32xf32> to vector<16x16x32xf32>
    %80 = vector.shape_cast %79 : vector<16x16x32xf32> to vector<256x32xf32>
    %81 = arith.truncf %80 : vector<256x32xf32> to vector<256x32xbf16>
    %c0_50 = arith.constant 0 : index
    %c0_51 = arith.constant 0 : index
    %82 = vector.load %arg7[%c0_50, %c0_51] : memref<256x288xbf16, #tpu.memory_space<vmem>>, vector<256x32xbf16>
    tpu.vector_store %arg7[%c0_50, %c0_51], %81 {strides = array<i32>} : memref<256x288xbf16, #tpu.memory_space<vmem>>, vector<256x32xbf16>,
    %83 = vector.extract_strided_slice %76 {offsets = [0, 1, 0], sizes = [16, 16, 32], strides = [1, 1, 1]} : vector<18x18x32xf32> to vector<16x16x32xf32>
    %84 = vector.shape_cast %83 : vector<16x16x32xf32> to vector<256x32xf32>
    %85 = arith.truncf %84 : vector<256x32xf32> to vector<256x32xbf16>
    %c0_52 = arith.constant 0 : index
    %c32_53 = arith.constant 32 : index
    %86 = vector.load %arg7[%c0_52, %c32_53] : memref<256x288xbf16, #tpu.memory_space<vmem>>, vector<256x32xbf16>
    tpu.vector_store %arg7[%c0_52, %c32_53], %85 {strides = array<i32>} : memref<256x288xbf16, #tpu.memory_space<vmem>>, vector<256x32xbf16>,
    %87 = vector.extract_strided_slice %76 {offsets = [0, 2, 0], sizes = [16, 16, 32], strides = [1, 1, 1]} : vector<18x18x32xf32> to vector<16x16x32xf32>
    %88 = vector.shape_cast %87 : vector<16x16x32xf32> to vector<256x32xf32>
    %89 = arith.truncf %88 : vector<256x32xf32> to vector<256x32xbf16>
    %c0_54 = arith.constant 0 : index
    %c64_55 = arith.constant 64 : index
    %90 = vector.load %arg7[%c0_54, %c64_55] : memref<256x288xbf16, #tpu.memory_space<vmem>>, vector<256x32xbf16>
    tpu.vector_store %arg7[%c0_54, %c64_55], %89 {strides = array<i32>} : memref<256x288xbf16, #tpu.memory_space<vmem>>, vector<256x32xbf16>,
    %91 = vector.extract_strided_slice %76 {offsets = [1, 0, 0], sizes = [16, 16, 32], strides = [1, 1, 1]} : vector<18x18x32xf32> to vector<16x16x32xf32>
    %92 = vector.shape_cast %91 : vector<16x16x32xf32> to vector<256x32xf32>
    %93 = arith.truncf %92 : vector<256x32xf32> to vector<256x32xbf16>
    %c0_56 = arith.constant 0 : index
    %c96_57 = arith.constant 96 : index
    %94 = vector.load %arg7[%c0_56, %c96_57] : memref<256x288xbf16, #tpu.memory_space<vmem>>, vector<256x32xbf16>
    tpu.vector_store %arg7[%c0_56, %c96_57], %93 {strides = array<i32>} : memref<256x288xbf16, #tpu.memory_space<vmem>>, vector<256x32xbf16>,
    %95 = vector.extract_strided_slice %76 {offsets = [1, 1, 0], sizes = [16, 16, 32], strides = [1, 1, 1]} : vector<18x18x32xf32> to vector<16x16x32xf32>
    %96 = vector.shape_cast %95 : vector<16x16x32xf32> to vector<256x32xf32>
    %97 = arith.truncf %96 : vector<256x32xf32> to vector<256x32xbf16>
    %c0_58 = arith.constant 0 : index
    %c128_59 = arith.constant 128 : index
    %98 = vector.load %arg7[%c0_58, %c128_59] : memref<256x288xbf16, #tpu.memory_space<vmem>>, vector<256x32xbf16>
    tpu.vector_store %arg7[%c0_58, %c128_59], %97 {strides = array<i32>} : memref<256x288xbf16, #tpu.memory_space<vmem>>, vector<256x32xbf16>,
    %99 = vector.extract_strided_slice %76 {offsets = [1, 2, 0], sizes = [16, 16, 32], strides = [1, 1, 1]} : vector<18x18x32xf32> to vector<16x16x32xf32>
    %100 = vector.shape_cast %99 : vector<16x16x32xf32> to vector<256x32xf32>
    %101 = arith.truncf %100 : vector<256x32xf32> to vector<256x32xbf16>
    %c0_60 = arith.constant 0 : index
    %c160_61 = arith.constant 160 : index
    %102 = vector.load %arg7[%c0_60, %c160_61] : memref<256x288xbf16, #tpu.memory_space<vmem>>, vector<256x32xbf16>
    tpu.vector_store %arg7[%c0_60, %c160_61], %101 {strides = array<i32>} : memref<256x288xbf16, #tpu.memory_space<vmem>>, vector<256x32xbf16>,
    %103 = vector.extract_strided_slice %76 {offsets = [2, 0, 0], sizes = [16, 16, 32], strides = [1, 1, 1]} : vector<18x18x32xf32> to vector<16x16x32xf32>
    %104 = vector.shape_cast %103 : vector<16x16x32xf32> to vector<256x32xf32>
    %105 = arith.truncf %104 : vector<256x32xf32> to vector<256x32xbf16>
    %c0_62 = arith.constant 0 : index
    %c192_63 = arith.constant 192 : index
    %106 = vector.load %arg7[%c0_62, %c192_63] : memref<256x288xbf16, #tpu.memory_space<vmem>>, vector<256x32xbf16>
    tpu.vector_store %arg7[%c0_62, %c192_63], %105 {strides = array<i32>} : memref<256x288xbf16, #tpu.memory_space<vmem>>, vector<256x32xbf16>,
    %107 = vector.extract_strided_slice %76 {offsets = [2, 1, 0], sizes = [16, 16, 32], strides = [1, 1, 1]} : vector<18x18x32xf32> to vector<16x16x32xf32>
    %108 = vector.shape_cast %107 : vector<16x16x32xf32> to vector<256x32xf32>
    %109 = arith.truncf %108 : vector<256x32xf32> to vector<256x32xbf16>
    %c0_64 = arith.constant 0 : index
    %c224_65 = arith.constant 224 : index
    %110 = vector.load %arg7[%c0_64, %c224_65] : memref<256x288xbf16, #tpu.memory_space<vmem>>, vector<256x32xbf16>
    tpu.vector_store %arg7[%c0_64, %c224_65], %109 {strides = array<i32>} : memref<256x288xbf16, #tpu.memory_space<vmem>>, vector<256x32xbf16>,
    %111 = vector.extract_strided_slice %76 {offsets = [2, 2, 0], sizes = [16, 16, 32], strides = [1, 1, 1]} : vector<18x18x32xf32> to vector<16x16x32xf32>
    %112 = vector.shape_cast %111 : vector<16x16x32xf32> to vector<256x32xf32>
    %113 = arith.truncf %112 : vector<256x32xf32> to vector<256x32xbf16>
    %c0_66 = arith.constant 0 : index
    %c256_67 = arith.constant 256 : index
    %114 = vector.load %arg7[%c0_66, %c256_67] : memref<256x288xbf16, #tpu.memory_space<vmem>>, vector<256x32xbf16>
    tpu.vector_store %arg7[%c0_66, %c256_67], %113 {strides = array<i32>} : memref<256x288xbf16, #tpu.memory_space<vmem>>, vector<256x32xbf16>,
    %c0_68 = arith.constant 0 : index
    %c0_69 = arith.constant 0 : index
    %115 = vector.load %arg7[%c0_68, %c0_69] : memref<256x288xbf16, #tpu.memory_space<vmem>>, vector<256x288xbf16>
    %cst_70 = arith.constant dense<0.000000e+00> : vector<256x32xf32>
    %116 = tpu.matmul %115, %77, %cst_70 {dimension_numbers = #tpu.dot_dimension_numbers<[1], [0], [0], [1], [0, 0, 1, 1], [], []>} : vector<256x288xbf16>, vector<288x32xbf16>, vector<256x32xf32> -> vector<256x32xf32>
    %117 = vector.broadcast %78 : vector<1x32xf32> to vector<256x32xf32>
    %118 = arith.addf %116, %117 : vector<256x32xf32>
    %cst_71 = arith.constant dense<0.000000e+00> : vector<32xf32>
    %119 = vector.multi_reduction <add>, %118, %cst_71 [0] : vector<256x32xf32> to vector<32xf32>
    %120 = vector.shape_cast %119 : vector<32xf32> to vector<1x32xf32>
    %121 = arith.mulf %118, %118 : vector<256x32xf32>
    %cst_72 = arith.constant dense<0.000000e+00> : vector<32xf32>
    %122 = vector.multi_reduction <add>, %121, %cst_72 [0] : vector<256x32xf32> to vector<32xf32>
    %123 = vector.shape_cast %122 : vector<32xf32> to vector<1x32xf32>
    %cst_73 = arith.constant 3.906250e-03 : f32
    %124 = vector.broadcast %cst_73 : f32 to vector<1x32xf32>
    %125 = arith.mulf %120, %124 : vector<1x32xf32>
    %cst_74 = arith.constant 3.906250e-03 : f32
    %126 = vector.broadcast %cst_74 : f32 to vector<1x32xf32>
    %127 = arith.mulf %123, %126 : vector<1x32xf32>
    %128 = arith.mulf %125, %125 : vector<1x32xf32>
    %129 = arith.subf %127, %128 : vector<1x32xf32>
    %cst_75 = arith.constant 0.000000e+00 : f32
    %130 = vector.broadcast %cst_75 : f32 to vector<1x32xf32>
    %131 = arith.maximumf %129, %130 : vector<1x32xf32>
    %132 = vector.broadcast %125 : vector<1x32xf32> to vector<256x32xf32>
    %133 = arith.subf %118, %132 : vector<256x32xf32>
    %cst_76 = arith.constant 9.99999974E-6 : f32
    %134 = vector.broadcast %cst_76 : f32 to vector<1x32xf32>
    %135 = arith.addf %131, %134 : vector<1x32xf32>
    %136 = math.rsqrt %135 : vector<1x32xf32>
    %137 = vector.broadcast %136 : vector<1x32xf32> to vector<256x32xf32>
    %138 = arith.mulf %133, %137 : vector<256x32xf32>
    %139 = vector.extract_strided_slice %1 {offsets = [1, 1, 0], sizes = [16, 16, 32], strides = [1, 1, 1]} : vector<18x18x32xf32> to vector<16x16x32xf32>
    %140 = vector.shape_cast %138 : vector<256x32xf32> to vector<16x16x32xf32>
    %141 = arith.addf %139, %140 : vector<16x16x32xf32>
    %c0_77 = arith.constant 0 : index
    %c0_78 = arith.constant 0 : index
    %c0_79 = arith.constant 0 : index
    %c0_80 = arith.constant 0 : index
    %142 = vector.load %arg6[%c0_77, %c0_78, %c0_79, %c0_80] : memref<1x16x16x32xf32, #tpu.memory_space<vmem>>, vector<1x16x16x32xf32>
    %143 = vector.shape_cast %142 : vector<1x16x16x32xf32> to vector<16x16x32xf32>
    %144 = vector.shape_cast %141 : vector<16x16x32xf32> to vector<1x16x16x32xf32>
    tpu.vector_store %arg6[%c0_77, %c0_78, %c0_79, %c0_80], %144 {strides = array<i32>} : memref<1x16x16x32xf32, #tpu.memory_space<vmem>>, vector<1x16x16x32xf32>,
    return
  }
  func.func @transform_0(%arg0: i32) -> (i32, i32, i32, i32) {
    %c0_i32 = arith.constant 0 : i32
    %c0_i32_0 = arith.constant 0 : i32
    %c0_i32_1 = arith.constant 0 : i32
    %c0_i32_2 = arith.constant 0 : i32
    return %arg0, %c0_i32, %c0_i32_0, %c0_i32_1 : i32, i32, i32, i32
  }
  func.func @transform_1(%arg0: i32) -> (i32, i32) {
    %c0_i32 = arith.constant 0 : i32
    %c0_i32_0 = arith.constant 0 : i32
    %c0_i32_1 = arith.constant 0 : i32
    return %c0_i32, %c0_i32_0 : i32, i32
  }
  func.func @transform_2(%arg0: i32) -> (i32, i32) {
    %c0_i32 = arith.constant 0 : i32
    %c0_i32_0 = arith.constant 0 : i32
    %c0_i32_1 = arith.constant 0 : i32
    return %c0_i32, %c0_i32_0 : i32, i32
  }
  func.func @transform_3(%arg0: i32) -> (i32, i32) {
    %c0_i32 = arith.constant 0 : i32
    %c0_i32_0 = arith.constant 0 : i32
    %c0_i32_1 = arith.constant 0 : i32
    return %c0_i32, %c0_i32_0 : i32, i32
  }
  func.func @transform_4(%arg0: i32) -> (i32, i32) {
    %c0_i32 = arith.constant 0 : i32
    %c0_i32_0 = arith.constant 0 : i32
    %c0_i32_1 = arith.constant 0 : i32
    return %c0_i32, %c0_i32_0 : i32, i32
  }
  func.func @transform_5(%arg0: i32) -> (i32, i32, i32, i32) {
    %c0_i32 = arith.constant 0 : i32
    %c0_i32_0 = arith.constant 0 : i32
    %c0_i32_1 = arith.constant 0 : i32
    %c0_i32_2 = arith.constant 0 : i32
    return %arg0, %c0_i32, %c0_i32_0, %c0_i32_1 : i32, i32, i32, i32
  }
}

</mosaic_0001>

<llo_original>
// kernel: tpu_custom_call.1
$region0: #{tpu_custom_call.1}
  #allocation0 [shape = 'u32[]', space=smem, size = 0x4, offset = 0x4, fixed_abs, tag = 'smem constant byte address 0x4 - core index']
  #allocation1 [shape = 'u32[144,128]{1,0:T(1,128)}', space=vmem, size = 0x12000, scoped, tag = 'internal scratch']
  #allocation2 [shape = 'bf16[256,288]{1,0:T(16,128)(2,1)}', space=vmem, size = 0x30000, scoped, tag = 'scratch operand']
  #allocation3 [shape = 'f32[18,18,32]{2,1,0:T(8,128)}', space=vmem, size = 0x36000, scoped, tag = 'scratch operand']
  %s0 = inlined_call_operand.vmem [shape: f32[2,18,18,32], index: 0, kind: input, shape index: {}]
  %s1 = inlined_call_operand.vmem [shape: bf16[288,32], index: 1, kind: input, shape index: {}]
  %s2 = inlined_call_operand.vmem [shape: f32[1,32], index: 2, kind: input, shape index: {}]
  %s3 = inlined_call_operand.vmem [shape: bf16[288,32], index: 3, kind: input, shape index: {}]
  %s4 = inlined_call_operand.vmem [shape: f32[1,32], index: 4, kind: input, shape index: {}]
  %s5 = inlined_call_operand.hbm [shape: f32[2,16,16,32], index: 5, kind: output, shape index: {}]
  %s6 = sld [smem:[#allocation0]]
  $region53: #{tpu_custom_call.1} parent=0
    _
  %s8 = ssub.s32 1, %s6
  %s9 = scalar_select 0, %s8, %s6
  $region1: #{tpu_custom_call.1} parent=0
    #allocation4 [shape = 'u8[262144]{0}', space=vmem, size = 0x40000, scoped, tag = 'output window, operand 0']
    #allocation5 [shape = 's32[2]{0}', space=sflag, size = 0x8, scoped, tag = 'scoped memory for tpu_custom_call.1']
    %10 = vsyncpa [#allocation5], 0
    %s11 = scalar_lea.sflag [#allocation5], 1
    %12 = vsyncpa %s11, 0
    loop: start=0, step=1, limit=4
    $region2: #{tpu_custom_call.1} parent=1 // loop_pre_header
      _
    $region3: #{tpu_custom_call.1} parent=1 // loop_header
      %s14 = sphi 0, %s18
      %p15 = scmp.ge.s32.totalorder %s14, 4
      %s24 = sphi 0, %s26
      %s27 = sphi 0, %s24
      %s28 = sphi 0, %s27
      %s44 = sphi 0, %s28
      %s48 = sphi 0, %s48
      %s50 = sphi 0, %s48
      %s51 = sphi 0, %s50
      %s65 = sphi 0, %s51
      %s69 = sphi 0, %s69
      %s71 = sphi 0, %s69
      %s72 = sphi 0, %s71
      %s86 = sphi 0, %s72
      %s90 = sphi 0, %s90
      %s92 = sphi 0, %s90
      %s93 = sphi 0, %s92
      %s107 = sphi 0, %s93
      %s111 = sphi 0, %s111
      %s113 = sphi 0, %s111
      %s114 = sphi 0, %s113
      %s128 = sphi 0, %s114
      %s134 = sphi 0, %s136
      %s137 = sphi 0, %s134
      %s138 = sphi 0, %s137
      %s154 = sphi 0, %s138
    $region4: #{tpu_custom_call.1} parent=1 // loop_header_branch
      %17 = sbr.rel (%p15) target = $region8
    $region5: #{tpu_custom_call.1} parent=1 // loop_body
      %s19 = ssub.s32 %s14, 1
      %s20 = ssub.s32 %s14, 2
      %s21 = sadd.s32 %s14, 1
      %s22 = ssub.s32 %s14, %s21
      %p23 = scmp.eq.s32.totalorder %s22, 0
      %s25 = sadd.s32 %s24, 1
      %s26 = scalar_select %p23, %s24, %s25
      %p29 = pneg %p23
      %p30 = scmp.eq.s32.totalorder %s14, 1
      %p31 = por %p29, %p30
      %p32 = scmp.ne.s32.totalorder %s24, %s27
      %p33 = scmp.eq.s32.totalorder %s14, 0
      %p34 = por %p32, %p33
      %p35 = scmp.ne.s32.totalorder %s24, %s27
      %p36 = scmp.eq.s32.totalorder %s19, 1
      %p37 = por %p35, %p36
      %p38 = scmp.ne.s32.totalorder %s27, %s28
      %p39 = scmp.eq.s32.totalorder %s19, 0
      %p40 = por %p38, %p39
      %p41 = scmp.ne.s32.totalorder %s27, %s28
      %p42 = scmp.eq.s32.totalorder %s20, 1
      %p43 = por %p41, %p42
      %p45 = scmp.ne.s32.totalorder %s28, %s44
      %p46 = scmp.eq.s32.totalorder %s20, 0
      %p47 = por %p45, %p46
      %s49 = sadd.s32 %s48, 1
      %p52 = scmp.eq.s32.totalorder %s14, 1
      %p53 = scmp.ne.s32.totalorder %s48, %s50
      %p54 = scmp.eq.s32.totalorder %s14, 0
      %p55 = por %p53, %p54
      %p56 = scmp.ne.s32.totalorder %s48, %s50
      %p57 = scmp.eq.s32.totalorder %s19, 1
      %p58 = por %p56, %p57
      %p59 = scmp.ne.s32.totalorder %s50, %s51
      %p60 = scmp.eq.s32.totalorder %s19, 0
      %p61 = por %p59, %p60
      %p62 = scmp.ne.s32.totalorder %s50, %s51
      %p63 = scmp.eq.s32.totalorder %s20, 1
      %p64 = por %p62, %p63
      %p66 = scmp.ne.s32.totalorder %s51, %s65
      %p67 = scmp.eq.s32.totalorder %s20, 0
      %p68 = por %p66, %p67
      %s70 = sadd.s32 %s69, 1
      %p73 = scmp.eq.s32.totalorder %s14, 1
      %p74 = scmp.ne.s32.totalorder %s69, %s71
      %p75 = scmp.eq.s32.totalorder %s14, 0
      %p76 = por %p74, %p75
      %p77 = scmp.ne.s32.totalorder %s69, %s71
      %p78 = scmp.eq.s32.totalorder %s19, 1
      %p79 = por %p77, %p78
      %p80 = scmp.ne.s32.totalorder %s71, %s72
      %p81 = scmp.eq.s32.totalorder %s19, 0
      %p82 = por %p80, %p81
      %p83 = scmp.ne.s32.totalorder %s71, %s72
      %p84 = scmp.eq.s32.totalorder %s20, 1
      %p85 = por %p83, %p84
      %p87 = scmp.ne.s32.totalorder %s72, %s86
      %p88 = scmp.eq.s32.totalorder %s20, 0
      %p89 = por %p87, %p88
      %s91 = sadd.s32 %s90, 1
      %p94 = scmp.eq.s32.totalorder %s14, 1
      %p95 = scmp.ne.s32.totalorder %s90, %s92
      %p96 = scmp.eq.s32.totalorder %s14, 0
      %p97 = por %p95, %p96
      %p98 = scmp.ne.s32.totalorder %s90, %s92
      %p99 = scmp.eq.s32.totalorder %s19, 1
      %p100 = por %p98, %p99
      %p101 = scmp.ne.s32.totalorder %s92, %s93
      %p102 = scmp.eq.s32.totalorder %s19, 0
      %p103 = por %p101, %p102
      %p104 = scmp.ne.s32.totalorder %s92, %s93
      %p105 = scmp.eq.s32.totalorder %s20, 1
      %p106 = por %p104, %p105
      %p108 = scmp.ne.s32.totalorder %s93, %s107
      %p109 = scmp.eq.s32.totalorder %s20, 0
      %p110 = por %p108, %p109
      %s112 = sadd.s32 %s111, 1
      %p115 = scmp.eq.s32.totalorder %s14, 1
      %p116 = scmp.ne.s32.totalorder %s111, %s113
      %p117 = scmp.eq.s32.totalorder %s14, 0
      %p118 = por %p116, %p117
      %p119 = scmp.ne.s32.totalorder %s111, %s113
      %p120 = scmp.eq.s32.totalorder %s19, 1
      %p121 = por %p119, %p120
      %p122 = scmp.ne.s32.totalorder %s113, %s114
      %p123 = scmp.eq.s32.totalorder %s19, 0
      %p124 = por %p122, %p123
      %p125 = scmp.ne.s32.totalorder %s113, %s114
      %p126 = scmp.eq.s32.totalorder %s20, 1
      %p127 = por %p125, %p126
      %p129 = scmp.ne.s32.totalorder %s114, %s128
      %p130 = scmp.eq.s32.totalorder %s20, 0
      %p131 = por %p129, %p130
      %s132 = ssub.s32 %s14, %s21
      %p133 = scmp.eq.s32.totalorder %s132, 0
      %s135 = sadd.s32 %s134, 1
      %s136 = scalar_select %p133, %s134, %s135
      %p139 = pneg %p133
      %p140 = scmp.eq.s32.totalorder %s14, 1
      %p141 = por %p139, %p140
      %p142 = scmp.ne.s32.totalorder %s134, %s137
      %p143 = scmp.eq.s32.totalorder %s14, 0
      %p144 = por %p142, %p143
      %p145 = scmp.ne.s32.totalorder %s134, %s137
      %p146 = scmp.eq.s32.totalorder %s19, 1
      %p147 = por %p145, %p146
      %p148 = scmp.ne.s32.totalorder %s137, %s138
      %p149 = scmp.eq.s32.totalorder %s19, 0
      %p150 = por %p148, %p149
      %p151 = scmp.ne.s32.totalorder %s137, %s138
      %p152 = scmp.eq.s32.totalorder %s20, 1
      %p153 = por %p151, %p152
      %p155 = scmp.ne.s32.totalorder %s138, %s154
      %p156 = scmp.eq.s32.totalorder %s20, 0
      %p157 = por %p155, %p156
      %p158 = scmp.le.s32.totalorder 1, %s14
      %p159 = scmp.lt.s32.totalorder %s14, 3
      %p160 = pnand %p158, %p159
      %p161 = pneg %p160
      // Predicated region
      $region9: #{tpu_custom_call.1} parent=5 // pred_check
        _
      $region10: #{tpu_custom_call.1} parent=5 // pred_check_branch
        %163 = sbr.rel (%p160) target = $region12
      $region11: #{tpu_custom_call.1} parent=5 // pred_region
        %s164 = ssub.s32 %s14, 1
        // Predicated region
        $region13: #{tpu_custom_call.1} parent=11 // pred_check
          %p165 = pneg %p61
        $region14: #{tpu_custom_call.1} parent=11 // pred_check_branch
          %167 = sbr.rel (%p165) target = $region16
        $region15: #{tpu_custom_call.1} parent=11 // pred_region
          _
        $region16: #{tpu_custom_call.1} parent=11 // pred_fallthru
          _
        // Predicated region
        $region17: #{tpu_custom_call.1} parent=11 // pred_check
          %p168 = pneg %p82
        $region18: #{tpu_custom_call.1} parent=11 // pred_check_branch
          %170 = sbr.rel (%p168) target = $region20
        $region19: #{tpu_custom_call.1} parent=11 // pred_region
          _
        $region20: #{tpu_custom_call.1} parent=11 // pred_fallthru
          _
        // Predicated region
        $region21: #{tpu_custom_call.1} parent=11 // pred_check
          %p171 = pneg %p103
        $region22: #{tpu_custom_call.1} parent=11 // pred_check_branch
          %173 = sbr.rel (%p171) target = $region24
        $region23: #{tpu_custom_call.1} parent=11 // pred_region
          _
        $region24: #{tpu_custom_call.1} parent=11 // pred_fallthru
          _
        // Predicated region
        $region25: #{tpu_custom_call.1} parent=11 // pred_check
          %p174 = pneg %p124
        $region26: #{tpu_custom_call.1} parent=11 // pred_check_branch
          %176 = sbr.rel (%p174) target = $region28
        $region27: #{tpu_custom_call.1} parent=11 // pred_region
          _
        $region28: #{tpu_custom_call.1} parent=11 // pred_fallthru
          _
      $region12: #{tpu_custom_call.1} parent=5 // pred_fallthru
        _
      %p177 = scmp.lt.s32.totalorder %s14, 2
      // Predicated region
      $region29: #{tpu_custom_call.1} parent=5 // pred_check
        %p178 = pneg %p177
      $region30: #{tpu_custom_call.1} parent=5 // pred_check_branch
        %180 = sbr.rel (%p178) target = $region32
      $region31: #{tpu_custom_call.1} parent=5 // pred_region
        // Predicated region
        $region33: #{tpu_custom_call.1} parent=31 // pred_check
          %p181 = pneg %p34
        $region34: #{tpu_custom_call.1} parent=31 // pred_check_branch
          %183 = sbr.rel (%p181) target = $region36
        $region35: #{tpu_custom_call.1} parent=31 // pred_region
          %p184 = scmp.lt.s32.totalorder %s14, 1
          %s185 = scalar_select %p184, %s14, 1
          %s186 = smul.addr %s185, 54
          %s187 = smul.addr %s186, 8
          %s188 = scalar_lea.vmem %s0, %s187
        $region36: #{tpu_custom_call.1} parent=31 // pred_fallthru
          _
      $region32: #{tpu_custom_call.1} parent=5 // pred_fallthru
        _
      %p189 = scmp.le.s32.totalorder 1, %s14
      %p190 = scmp.lt.s32.totalorder %s14, 3
      %p191 = pnand %p189, %p190
      %p192 = pneg %p191
      // Predicated region
      $region37: #{tpu_custom_call.1} parent=5 // pred_check
        _
      $region38: #{tpu_custom_call.1} parent=5 // pred_check_branch
        %194 = sbr.rel (%p191) target = $region40
      $region39: #{tpu_custom_call.1} parent=5 // pred_region
        %s195 = ssub.s32 %s14, 1
        %p196 = scmp.lt.s32.totalorder %s19, 1
        %s197 = scalar_select %p196, %s19, 1
        %s198 = smul.addr %s197, 54
        %s199 = smul.addr %s198, 8
        %s200 = scalar_lea.vmem %s0, %s199
        %p201 = pneg %p40
        %p202 = pneg %p37
        %p203 = pneg %p61
        %p204 = pneg %p58
        %p205 = pneg %p82
        %p206 = pneg %p79
        %p207 = pneg %p103
        %p208 = pneg %p100
        %p209 = pneg %p124
        %p210 = pneg %p121
        %p211 = pneg %p150
        %p212 = pneg %p147
        %s213 = sand.u32 %s137, 1
        %s214 = scalar_lea.sflag [#allocation5], %s213
        %s215 = sand.u32 %s137, 1
        %s216 = smul.addr %s215, 256
        %s217 = scalar_lea.vmem [#allocation4], %s216
        %p218 = scmp.lt.s32.totalorder %s19, 1
        %s219 = scalar_select %p218, %s19, 1
        %s220 = smul.addr %s219, 54
        %s221 = smul.addr %s220, 8
        %s222 = scalar_lea.vmem %s0, %s221
        %v224 = vld [vmem:[%s222] sm:$0xff]
        %v225 = vld [vmem:[%s222 + $0x8] sm:$0xff]
        %v226 = vld [vmem:[%s222 + $0x10] sm:$0x3]
        %v227 = vld [vmem:[%s222 + $0x18] sm:$0xff]
        %v228 = vld [vmem:[%s222 + $0x20] sm:$0xff]
        %v229 = vld [vmem:[%s222 + $0x28] sm:$0x3]
        %v230 = vld [vmem:[%s222 + $0x30] sm:$0xff]
        %v231 = vld [vmem:[%s222 + $0x38] sm:$0xff]
        %v232 = vld [vmem:[%s222 + $0x40] sm:$0x3]
        %v233 = vld [vmem:[%s222 + $0x48] sm:$0xff]
        %v234 = vld [vmem:[%s222 + $0x50] sm:$0xff]
        %v235 = vld [vmem:[%s222 + $0x58] sm:$0x3]
        %v236 = vld [vmem:[%s222 + $0x60] sm:$0xff]
        %v237 = vld [vmem:[%s222 + $0x68] sm:$0xff]
        %v238 = vld [vmem:[%s222 + $0x70] sm:$0x3]
        %v239 = vld [vmem:[%s222 + $0x78] sm:$0xff]
        %v240 = vld [vmem:[%s222 + $0x80] sm:$0xff]
        %v241 = vld [vmem:[%s222 + $0x88] sm:$0x3]
        %v242 = vld [vmem:[%s222 + $0x90] sm:$0xff]
        %v243 = vld [vmem:[%s222 + $0x98] sm:$0xff]
        %v244 = vld [vmem:[%s222 + $0xa0] sm:$0x3]
        %v245 = vld [vmem:[%s222 + $0xa8] sm:$0xff]
        %v246 = vld [vmem:[%s222 + $0xb0] sm:$0xff]
        %v247 = vld [vmem:[%s222 + $0xb8] sm:$0x3]
        %v248 = vld [vmem:[%s222 + $0xc0] sm:$0xff]
        %v249 = vld [vmem:[%s222 + $0xc8] sm:$0xff]
        %v250 = vld [vmem:[%s222 + $0xd0] sm:$0x3]
        %v251 = vld [vmem:[%s222 + $0xd8] sm:$0xff]
        %v252 = vld [vmem:[%s222 + $0xe0] sm:$0xff]
        %v253 = vld [vmem:[%s222 + $0xe8] sm:$0x3]
        %v254 = vld [vmem:[%s222 + $0xf0] sm:$0xff]
        %v255 = vld [vmem:[%s222 + $0xf8] sm:$0xff]
        %v256 = vld [vmem:[%s222 + $0x100] sm:$0x3]
        %v257 = vld [vmem:[%s222 + $0x108] sm:$0xff]
        %v258 = vld [vmem:[%s222 + $0x110] sm:$0xff]
        %v259 = vld [vmem:[%s222 + $0x118] sm:$0x3]
        %v260 = vld [vmem:[%s222 + $0x120] sm:$0xff]
        %v261 = vld [vmem:[%s222 + $0x128] sm:$0xff]
        %v262 = vld [vmem:[%s222 + $0x130] sm:$0x3]
        %v263 = vld [vmem:[%s222 + $0x138] sm:$0xff]
        %v264 = vld [vmem:[%s222 + $0x140] sm:$0xff]
        %v265 = vld [vmem:[%s222 + $0x148] sm:$0x3]
        %v266 = vld [vmem:[%s222 + $0x150] sm:$0xff]
        %v267 = vld [vmem:[%s222 + $0x158] sm:$0xff]
        %v268 = vld [vmem:[%s222 + $0x160] sm:$0x3]
        %v269 = vld [vmem:[%s222 + $0x168] sm:$0xff]
        %v270 = vld [vmem:[%s222 + $0x170] sm:$0xff]
        %v271 = vld [vmem:[%s222 + $0x178] sm:$0x3]
        %v272 = vld [vmem:[%s222 + $0x180] sm:$0xff]
        %v273 = vld [vmem:[%s222 + $0x188] sm:$0xff]
        %v274 = vld [vmem:[%s222 + $0x190] sm:$0x3]
        %v275 = vld [vmem:[%s222 + $0x198] sm:$0xff]
        %v276 = vld [vmem:[%s222 + $0x1a0] sm:$0xff]
        %v277 = vld [vmem:[%s222 + $0x1a8] sm:$0x3]
        %v278 = vld [vmem:[%s1] sm:$0xf]
        %v279 = vld [vmem:[%s1 + $0x4] sm:$0xf]
        %v280 = vld [vmem:[%s1 + $0x8] sm:$0xf]
        %v281 = vld [vmem:[%s1 + $0xc] sm:$0xf]
        %v282 = vld [vmem:[%s1 + $0x10] sm:$0xf]
        %v283 = vld [vmem:[%s1 + $0x14] sm:$0xf]
        %v284 = vld [vmem:[%s1 + $0x18] sm:$0xf]
        %v285 = vld [vmem:[%s1 + $0x1c] sm:$0xf]
        %v286 = vld [vmem:[%s1 + $0x20] sm:$0xf]
        %v287 = vld [vmem:[%s1 + $0x24] sm:$0xf]
        %v288 = vld [vmem:[%s1 + $0x28] sm:$0xf]
        %v289 = vld [vmem:[%s1 + $0x2c] sm:$0xf]
        %v290 = vld [vmem:[%s1 + $0x30] sm:$0xf]
        %v291 = vld [vmem:[%s1 + $0x34] sm:$0xf]
        %v292 = vld [vmem:[%s1 + $0x38] sm:$0xf]
        %v293 = vld [vmem:[%s1 + $0x3c] sm:$0xf]
        %v294 = vld [vmem:[%s1 + $0x40] sm:$0xf]
        %v295 = vld [vmem:[%s1 + $0x44] sm:$0xf]
        %v296 = vld [vmem:[%s1 + $0x48] sm:$0xf]
        %v297 = vld [vmem:[%s1 + $0x4c] sm:$0xf]
        %v298 = vld [vmem:[%s1 + $0x50] sm:$0xf]
        %v299 = vld [vmem:[%s1 + $0x54] sm:$0xf]
        %v300 = vld [vmem:[%s1 + $0x58] sm:$0xf]
        %v301 = vld [vmem:[%s1 + $0x5c] sm:$0xf]
        %v302 = vld [vmem:[%s1 + $0x60] sm:$0xf]
        %v303 = vld [vmem:[%s1 + $0x64] sm:$0xf]
        %v304 = vld [vmem:[%s1 + $0x68] sm:$0xf]
        %v305 = vld [vmem:[%s1 + $0x6c] sm:$0xf]
        %v306 = vld [vmem:[%s1 + $0x70] sm:$0xf]
        %v307 = vld [vmem:[%s1 + $0x74] sm:$0xf]
        %v308 = vld [vmem:[%s1 + $0x78] sm:$0xf]
        %v309 = vld [vmem:[%s1 + $0x7c] sm:$0xf]
        %v310 = vld [vmem:[%s1 + $0x80] sm:$0xf]
        %v311 = vld [vmem:[%s1 + $0x84] sm:$0xf]
        %v312 = vld [vmem:[%s1 + $0x88] sm:$0xf]
        %v313 = vld [vmem:[%s1 + $0x8c] sm:$0xf]
        %v314 = vld [vmem:[%s2] sm:$0x1]
        %v315 = vpack.c.bf16 %v225, %v224
        %v316 = vpack.c.bf16 %v228, %v227
        %v317 = vpack.c.bf16 %v231, %v230
        %v318 = vpack.c.bf16 %v234, %v233
        %v319 = vpack.c.bf16 %v237, %v236
        %v320 = vpack.c.bf16 %v240, %v239
        %v321 = vpack.c.bf16 %v243, %v242
        %v322 = vpack.c.bf16 %v246, %v245
        %v323 = vpack.c.bf16 %v249, %v248
        %v324 = vpack.c.bf16 %v252, %v251
        %v325 = vpack.c.bf16 %v255, %v254
        %v326 = vpack.c.bf16 %v258, %v257
        %v327 = vpack.c.bf16 %v261, %v260
        %v328 = vpack.c.bf16 %v264, %v263
        %v329 = vpack.c.bf16 %v267, %v266
        %v330 = vpack.c.bf16 %v270, %v269
        %vm331 = vcmask 261120
        %332 = vst.msk [vmem:[#allocation2] sm:$0xff] %vm331, %v315
        %333 = vst.msk [vmem:[#allocation2 + $0x18] sm:$0xff] %vm331, %v316
        %334 = vst.msk [vmem:[#allocation2 + $0x30] sm:$0xff] %vm331, %v317
        %335 = vst.msk [vmem:[#allocation2 + $0x48] sm:$0xff] %vm331, %v318
        %336 = vst.msk [vmem:[#allocation2 + $0x60] sm:$0xff] %vm331, %v319
        %337 = vst.msk [vmem:[#allocation2 + $0x78] sm:$0xff] %vm331, %v320
        %338 = vst.msk [vmem:[#allocation2 + $0x90] sm:$0xff] %vm331, %v321
        %339 = vst.msk [vmem:[#allocation2 + $0xa8] sm:$0xff] %vm331, %v322
        %340 = vst.msk [vmem:[#allocation2 + $0xc0] sm:$0xff] %vm331, %v323
        %341 = vst.msk [vmem:[#allocation2 + $0xd8] sm:$0xff] %vm331, %v324
        %342 = vst.msk [vmem:[#allocation2 + $0xf0] sm:$0xff] %vm331, %v325
        %343 = vst.msk [vmem:[#allocation2 + $0x108] sm:$0xff] %vm331, %v326
        %344 = vst.msk [vmem:[#allocation2 + $0x120] sm:$0xff] %vm331, %v327
        %345 = vst.msk [vmem:[#allocation2 + $0x138] sm:$0xff] %vm331, %v328
        %346 = vst.msk [vmem:[#allocation2 + $0x150] sm:$0xff] %vm331, %v329
        %347 = vst.msk [vmem:[#allocation2 + $0x168] sm:$0xff] %vm331, %v330
        %vm396 = vcmask 1046528
        %v397 = vrot.slane %v224, 1
        %v398 = vrot.slane %v225, 1
        %v399 = vsel %vm396, %v397, %v398
        %v400 = vrot.slane %v226, 1
        %v401 = vsel %vm396, %v398, %v400
        %v402 = vrot.slane %v227, 1
        %v403 = vrot.slane %v228, 1
        %v404 = vsel %vm396, %v402, %v403
        %v405 = vrot.slane %v229, 1
        %v406 = vsel %vm396, %v403, %v405
        %v407 = vrot.slane %v230, 1
        %v408 = vrot.slane %v231, 1
        %v409 = vsel %vm396, %v407, %v408
        %v410 = vrot.slane %v232, 1
        %v411 = vsel %vm396, %v408, %v410
        %v412 = vrot.slane %v233, 1
        %v413 = vrot.slane %v234, 1
        %v414 = vsel %vm396, %v412, %v413
        %v415 = vrot.slane %v235, 1
        %v416 = vsel %vm396, %v413, %v415
        %v417 = vrot.slane %v236, 1
        %v418 = vrot.slane %v237, 1
        %v419 = vsel %vm396, %v417, %v418
        %v420 = vrot.slane %v238, 1
        %v421 = vsel %vm396, %v418, %v420
        %v422 = vrot.slane %v239, 1
        %v423 = vrot.slane %v240, 1
        %v424 = vsel %vm396, %v422, %v423
        %v425 = vrot.slane %v241, 1
        %v426 = vsel %vm396, %v423, %v425
        %v427 = vrot.slane %v242, 1
        %v428 = vrot.slane %v243, 1
        %v429 = vsel %vm396, %v427, %v428
        %v430 = vrot.slane %v244, 1
        %v431 = vsel %vm396, %v428, %v430
        %v432 = vrot.slane %v245, 1
        %v433 = vrot.slane %v246, 1
        %v434 = vsel %vm396, %v432, %v433
        %v435 = vrot.slane %v247, 1
        %v436 = vsel %vm396, %v433, %v435
        %v437 = vrot.slane %v248, 1
        %v438 = vrot.slane %v249, 1
        %v439 = vsel %vm396, %v437, %v438
        %v440 = vrot.slane %v250, 1
        %v441 = vsel %vm396, %v438, %v440
        %v442 = vrot.slane %v251, 1
        %v443 = vrot.slane %v252, 1
        %v444 = vsel %vm396, %v442, %v443
        %v445 = vrot.slane %v253, 1
        %v446 = vsel %vm396, %v443, %v445
        %v447 = vrot.slane %v254, 1
        %v448 = vrot.slane %v255, 1
        %v449 = vsel %vm396, %v447, %v448
        %v450 = vrot.slane %v256, 1
        %v451 = vsel %vm396, %v448, %v450
        %v452 = vrot.slane %v257, 1
        %v453 = vrot.slane %v258, 1
        %v454 = vsel %vm396, %v452, %v453
        %v455 = vrot.slane %v259, 1
        %v456 = vsel %vm396, %v453, %v455
        %v457 = vrot.slane %v260, 1
        %v458 = vrot.slane %v261, 1
        %v459 = vsel %vm396, %v457, %v458
        %v460 = vrot.slane %v262, 1
        %v461 = vsel %vm396, %v458, %v460
        %v462 = vrot.slane %v263, 1
        %v463 = vrot.slane %v264, 1
        %v464 = vsel %vm396, %v462, %v463
        %v465 = vrot.slane %v265, 1
        %v466 = vsel %vm396, %v463, %v465
        %v467 = vrot.slane %v266, 1
        %v468 = vrot.slane %v267, 1
        %v469 = vsel %vm396, %v467, %v468
        %v470 = vrot.slane %v268, 1
        %v471 = vsel %vm396, %v468, %v470
        %v472 = vrot.slane %v269, 1
        %v473 = vrot.slane %v270, 1
        %v474 = vsel %vm396, %v472, %v473
        %v475 = vrot.slane %v271, 1
        %v476 = vsel %vm396, %v473, %v475
        %v509 = vpack.c.bf16 %v401, %v399
        %v510 = vpack.c.bf16 %v406, %v404
        %v511 = vpack.c.bf16 %v411, %v409
        %v512 = vpack.c.bf16 %v416, %v414
        %v513 = vpack.c.bf16 %v421, %v419
        %v514 = vpack.c.bf16 %v426, %v424
        %v515 = vpack.c.bf16 %v431, %v429
        %v516 = vpack.c.bf16 %v436, %v434
        %v517 = vpack.c.bf16 %v441, %v439
        %v518 = vpack.c.bf16 %v446, %v444
        %v519 = vpack.c.bf16 %v451, %v449
        %v520 = vpack.c.bf16 %v456, %v454
        %v521 = vpack.c.bf16 %v461, %v459
        %v522 = vpack.c.bf16 %v466, %v464
        %v523 = vpack.c.bf16 %v471, %v469
        %v524 = vpack.c.bf16 %v476, %v474
        %541 = vrot.lane.b32.xlu0 %v509, 32
        %v542 = vpop.permute.xlu0 %541
        %543 = vrot.lane.b32.xlu0 %v510, 32
        %v544 = vpop.permute.xlu0 %543
        %545 = vrot.lane.b32.xlu0 %v511, 32
        %v546 = vpop.permute.xlu0 %545
        %547 = vrot.lane.b32.xlu0 %v512, 32
        %v548 = vpop.permute.xlu0 %547
        %549 = vrot.lane.b32.xlu0 %v513, 32
        %v550 = vpop.permute.xlu0 %549
        %551 = vrot.lane.b32.xlu0 %v514, 32
        %v552 = vpop.permute.xlu0 %551
        %553 = vrot.lane.b32.xlu0 %v515, 32
        %v554 = vpop.permute.xlu0 %553
        %555 = vrot.lane.b32.xlu0 %v516, 32
        %v556 = vpop.permute.xlu0 %555
        %557 = vrot.lane.b32.xlu0 %v517, 32
        %v558 = vpop.permute.xlu0 %557
        %559 = vrot.lane.b32.xlu0 %v518, 32
        %v560 = vpop.permute.xlu0 %559
        %561 = vrot.lane.b32.xlu0 %v519, 32
        %v562 = vpop.permute.xlu0 %561
        %563 = vrot.lane.b32.xlu0 %v520, 32
        %v564 = vpop.permute.xlu0 %563
        %565 = vrot.lane.b32.xlu0 %v521, 32
        %v566 = vpop.permute.xlu0 %565
        %567 = vrot.lane.b32.xlu0 %v522, 32
        %v568 = vpop.permute.xlu0 %567
        %569 = vrot.lane.b32.xlu0 %v523, 32
        %v570 = vpop.permute.xlu0 %569
        %571 = vrot.lane.b32.xlu0 %v524, 32
        %v572 = vpop.permute.xlu0 %571
        %vm589 = vcmask 523520
        %590 = vst.msk [vmem:[#allocation2] sm:$0xff] %vm589, %v542
        %591 = vst.msk [vmem:[#allocation2 + $0x18] sm:$0xff] %vm589, %v544
        %592 = vst.msk [vmem:[#allocation2 + $0x30] sm:$0xff] %vm589, %v546
        %593 = vst.msk [vmem:[#allocation2 + $0x48] sm:$0xff] %vm589, %v548
        %594 = vst.msk [vmem:[#allocation2 + $0x60] sm:$0xff] %vm589, %v550
        %595 = vst.msk [vmem:[#allocation2 + $0x78] sm:$0xff] %vm589, %v552
        %596 = vst.msk [vmem:[#allocation2 + $0x90] sm:$0xff] %vm589, %v554
        %597 = vst.msk [vmem:[#allocation2 + $0xa8] sm:$0xff] %vm589, %v556
        %598 = vst.msk [vmem:[#allocation2 + $0xc0] sm:$0xff] %vm589, %v558
        %599 = vst.msk [vmem:[#allocation2 + $0xd8] sm:$0xff] %vm589, %v560
        %600 = vst.msk [vmem:[#allocation2 + $0xf0] sm:$0xff] %vm589, %v562
        %601 = vst.msk [vmem:[#allocation2 + $0x108] sm:$0xff] %vm589, %v564
        %602 = vst.msk [vmem:[#allocation2 + $0x120] sm:$0xff] %vm589, %v566
        %603 = vst.msk [vmem:[#allocation2 + $0x138] sm:$0xff] %vm589, %v568
        %604 = vst.msk [vmem:[#allocation2 + $0x150] sm:$0xff] %vm589, %v570
        %605 = vst.msk [vmem:[#allocation2 + $0x168] sm:$0xff] %vm589, %v572
        %vm606 = vcmask 1045504
        %v607 = vrot.slane %v224, 2
        %v608 = vrot.slane %v225, 2
        %v609 = vsel %vm606, %v607, %v608
        %v610 = vrot.slane %v226, 2
        %v611 = vsel %vm606, %v608, %v610
        %v612 = vrot.slane %v227, 2
        %v613 = vrot.slane %v228, 2
        %v614 = vsel %vm606, %v612, %v613
        %v615 = vrot.slane %v229, 2
        %v616 = vsel %vm606, %v613, %v615
        %v617 = vrot.slane %v230, 2
        %v618 = vrot.slane %v231, 2
        %v619 = vsel %vm606, %v617, %v618
        %v620 = vrot.slane %v232, 2
        %v621 = vsel %vm606, %v618, %v620
        %v622 = vrot.slane %v233, 2
        %v623 = vrot.slane %v234, 2
        %v624 = vsel %vm606, %v622, %v623
        %v625 = vrot.slane %v235, 2
        %v626 = vsel %vm606, %v623, %v625
        %v627 = vrot.slane %v236, 2
        %v628 = vrot.slane %v237, 2
        %v629 = vsel %vm606, %v627, %v628
        %v630 = vrot.slane %v238, 2
        %v631 = vsel %vm606, %v628, %v630
        %v632 = vrot.slane %v239, 2
        %v633 = vrot.slane %v240, 2
        %v634 = vsel %vm606, %v632, %v633
        %v635 = vrot.slane %v241, 2
        %v636 = vsel %vm606, %v633, %v635
        %v637 = vrot.slane %v242, 2
        %v638 = vrot.slane %v243, 2
        %v639 = vsel %vm606, %v637, %v638
        %v640 = vrot.slane %v244, 2
        %v641 = vsel %vm606, %v638, %v640
        %v642 = vrot.slane %v245, 2
        %v643 = vrot.slane %v246, 2
        %v644 = vsel %vm606, %v642, %v643
        %v645 = vrot.slane %v247, 2
        %v646 = vsel %vm606, %v643, %v645
        %v647 = vrot.slane %v248, 2
        %v648 = vrot.slane %v249, 2
        %v649 = vsel %vm606, %v647, %v648
        %v650 = vrot.slane %v250, 2
        %v651 = vsel %vm606, %v648, %v650
        %v652 = vrot.slane %v251, 2
        %v653 = vrot.slane %v252, 2
        %v654 = vsel %vm606, %v652, %v653
        %v655 = vrot.slane %v253, 2
        %v656 = vsel %vm606, %v653, %v655
        %v657 = vrot.slane %v254, 2
        %v658 = vrot.slane %v255, 2
        %v659 = vsel %vm606, %v657, %v658
        %v660 = vrot.slane %v256, 2
        %v661 = vsel %vm606, %v658, %v660
        %v662 = vrot.slane %v257, 2
        %v663 = vrot.slane %v258, 2
        %v664 = vsel %vm606, %v662, %v663
        %v665 = vrot.slane %v259, 2
        %v666 = vsel %vm606, %v663, %v665
        %v667 = vrot.slane %v260, 2
        %v668 = vrot.slane %v261, 2
        %v669 = vsel %vm606, %v667, %v668
        %v670 = vrot.slane %v262, 2
        %v671 = vsel %vm606, %v668, %v670
        %v672 = vrot.slane %v263, 2
        %v673 = vrot.slane %v264, 2
        %v674 = vsel %vm606, %v672, %v673
        %v675 = vrot.slane %v265, 2
        %v676 = vsel %vm606, %v673, %v675
        %v677 = vrot.slane %v266, 2
        %v678 = vrot.slane %v267, 2
        %v679 = vsel %vm606, %v677, %v678
        %v680 = vrot.slane %v268, 2
        %v681 = vsel %vm606, %v678, %v680
        %v682 = vrot.slane %v269, 2
        %v683 = vrot.slane %v270, 2
        %v684 = vsel %vm606, %v682, %v683
        %v685 = vrot.slane %v271, 2
        %v686 = vsel %vm606, %v683, %v685
        %v719 = vpack.c.bf16 %v611, %v609
        %v720 = vpack.c.bf16 %v616, %v614
        %v721 = vpack.c.bf16 %v621, %v619
        %v722 = vpack.c.bf16 %v626, %v624
        %v723 = vpack.c.bf16 %v631, %v629
        %v724 = vpack.c.bf16 %v636, %v634
        %v725 = vpack.c.bf16 %v641, %v639
        %v726 = vpack.c.bf16 %v646, %v644
        %v727 = vpack.c.bf16 %v651, %v649
        %v728 = vpack.c.bf16 %v656, %v654
        %v729 = vpack.c.bf16 %v661, %v659
        %v730 = vpack.c.bf16 %v666, %v664
        %v731 = vpack.c.bf16 %v671, %v669
        %v732 = vpack.c.bf16 %v676, %v674
        %v733 = vpack.c.bf16 %v681, %v679
        %v734 = vpack.c.bf16 %v686, %v684
        %751 = vrot.lane.b32.xlu0 %v719, 64
        %v752 = vpop.permute.xlu0 %751
        %753 = vrot.lane.b32.xlu0 %v720, 64
        %v754 = vpop.permute.xlu0 %753
        %755 = vrot.lane.b32.xlu0 %v721, 64
        %v756 = vpop.permute.xlu0 %755
        %757 = vrot.lane.b32.xlu0 %v722, 64
        %v758 = vpop.permute.xlu0 %757
        %759 = vrot.lane.b32.xlu0 %v723, 64
        %v760 = vpop.permute.xlu0 %759
        %761 = vrot.lane.b32.xlu0 %v724, 64
        %v762 = vpop.permute.xlu0 %761
        %763 = vrot.lane.b32.xlu0 %v725, 64
        %v764 = vpop.permute.xlu0 %763
        %765 = vrot.lane.b32.xlu0 %v726, 64
        %v766 = vpop.permute.xlu0 %765
        %767 = vrot.lane.b32.xlu0 %v727, 64
        %v768 = vpop.permute.xlu0 %767
        %769 = vrot.lane.b32.xlu0 %v728, 64
        %v770 = vpop.permute.xlu0 %769
        %771 = vrot.lane.b32.xlu0 %v729, 64
        %v772 = vpop.permute.xlu0 %771
        %773 = vrot.lane.b32.xlu0 %v730, 64
        %v774 = vpop.permute.xlu0 %773
        %775 = vrot.lane.b32.xlu0 %v731, 64
        %v776 = vpop.permute.xlu0 %775
        %777 = vrot.lane.b32.xlu0 %v732, 64
        %v778 = vpop.permute.xlu0 %777
        %779 = vrot.lane.b32.xlu0 %v733, 64
        %v780 = vpop.permute.xlu0 %779
        %781 = vrot.lane.b32.xlu0 %v734, 64
        %v782 = vpop.permute.xlu0 %781
        %vm799 = vcmask 785920
        %800 = vst.msk [vmem:[#allocation2] sm:$0xff] %vm799, %v752
        %801 = vst.msk [vmem:[#allocation2 + $0x18] sm:$0xff] %vm799, %v754
        %802 = vst.msk [vmem:[#allocation2 + $0x30] sm:$0xff] %vm799, %v756
        %803 = vst.msk [vmem:[#allocation2 + $0x48] sm:$0xff] %vm799, %v758
        %804 = vst.msk [vmem:[#allocation2 + $0x60] sm:$0xff] %vm799, %v760
        %805 = vst.msk [vmem:[#allocation2 + $0x78] sm:$0xff] %vm799, %v762
        %806 = vst.msk [vmem:[#allocation2 + $0x90] sm:$0xff] %vm799, %v764
        %807 = vst.msk [vmem:[#allocation2 + $0xa8] sm:$0xff] %vm799, %v766
        %808 = vst.msk [vmem:[#allocation2 + $0xc0] sm:$0xff] %vm799, %v768
        %809 = vst.msk [vmem:[#allocation2 + $0xd8] sm:$0xff] %vm799, %v770
        %810 = vst.msk [vmem:[#allocation2 + $0xf0] sm:$0xff] %vm799, %v772
        %811 = vst.msk [vmem:[#allocation2 + $0x108] sm:$0xff] %vm799, %v774
        %812 = vst.msk [vmem:[#allocation2 + $0x120] sm:$0xff] %vm799, %v776
        %813 = vst.msk [vmem:[#allocation2 + $0x138] sm:$0xff] %vm799, %v778
        %814 = vst.msk [vmem:[#allocation2 + $0x150] sm:$0xff] %vm799, %v780
        %815 = vst.msk [vmem:[#allocation2 + $0x168] sm:$0xff] %vm799, %v782
        %v816 = vpack.c.bf16 %v273, %v272
        %833 = vrot.lane.b32.xlu0 %v316, 96
        %v834 = vpop.permute.xlu0 %833
        %835 = vrot.lane.b32.xlu0 %v317, 96
        %v836 = vpop.permute.xlu0 %835
        %837 = vrot.lane.b32.xlu0 %v318, 96
        %v838 = vpop.permute.xlu0 %837
        %839 = vrot.lane.b32.xlu0 %v319, 96
        %v840 = vpop.permute.xlu0 %839
        %841 = vrot.lane.b32.xlu0 %v320, 96
        %v842 = vpop.permute.xlu0 %841
        %843 = vrot.lane.b32.xlu0 %v321, 96
        %v844 = vpop.permute.xlu0 %843
        %845 = vrot.lane.b32.xlu0 %v322, 96
        %v846 = vpop.permute.xlu0 %845
        %847 = vrot.lane.b32.xlu0 %v323, 96
        %v848 = vpop.permute.xlu0 %847
        %849 = vrot.lane.b32.xlu0 %v324, 96
        %v850 = vpop.permute.xlu0 %849
        %851 = vrot.lane.b32.xlu0 %v325, 96
        %v852 = vpop.permute.xlu0 %851
        %853 = vrot.lane.b32.xlu0 %v326, 96
        %v854 = vpop.permute.xlu0 %853
        %855 = vrot.lane.b32.xlu0 %v327, 96
        %v856 = vpop.permute.xlu0 %855
        %857 = vrot.lane.b32.xlu0 %v328, 96
        %v858 = vpop.permute.xlu0 %857
        %859 = vrot.lane.b32.xlu0 %v329, 96
        %v860 = vpop.permute.xlu0 %859
        %861 = vrot.lane.b32.xlu0 %v330, 96
        %v862 = vpop.permute.xlu0 %861
        %863 = vrot.lane.b32.xlu0 %v816, 96
        %v864 = vpop.permute.xlu0 %863
        %vm881 = vcmask 1048320
        %882 = vst.msk [vmem:[#allocation2] sm:$0xff] %vm881, %v834
        %883 = vst.msk [vmem:[#allocation2 + $0x18] sm:$0xff] %vm881, %v836
        %884 = vst.msk [vmem:[#allocation2 + $0x30] sm:$0xff] %vm881, %v838
        %885 = vst.msk [vmem:[#allocation2 + $0x48] sm:$0xff] %vm881, %v840
        %886 = vst.msk [vmem:[#allocation2 + $0x60] sm:$0xff] %vm881, %v842
        %887 = vst.msk [vmem:[#allocation2 + $0x78] sm:$0xff] %vm881, %v844
        %888 = vst.msk [vmem:[#allocation2 + $0x90] sm:$0xff] %vm881, %v846
        %889 = vst.msk [vmem:[#allocation2 + $0xa8] sm:$0xff] %vm881, %v848
        %890 = vst.msk [vmem:[#allocation2 + $0xc0] sm:$0xff] %vm881, %v850
        %891 = vst.msk [vmem:[#allocation2 + $0xd8] sm:$0xff] %vm881, %v852
        %892 = vst.msk [vmem:[#allocation2 + $0xf0] sm:$0xff] %vm881, %v854
        %893 = vst.msk [vmem:[#allocation2 + $0x108] sm:$0xff] %vm881, %v856
        %894 = vst.msk [vmem:[#allocation2 + $0x120] sm:$0xff] %vm881, %v858
        %895 = vst.msk [vmem:[#allocation2 + $0x138] sm:$0xff] %vm881, %v860
        %896 = vst.msk [vmem:[#allocation2 + $0x150] sm:$0xff] %vm881, %v862
        %897 = vst.msk [vmem:[#allocation2 + $0x168] sm:$0xff] %vm881, %v864
        %v901 = vrot.slane %v272, 1
        %v902 = vrot.slane %v273, 1
        %v903 = vsel %vm396, %v901, %v902
        %v904 = vrot.slane %v274, 1
        %v905 = vsel %vm396, %v902, %v904
        %v908 = vpack.c.bf16 %v905, %v903
        %909 = vst.msk [vmem:[#allocation2 + $0x8] sm:$0xff] %vm331, %v510
        %910 = vst.msk [vmem:[#allocation2 + $0x20] sm:$0xff] %vm331, %v511
        %911 = vst.msk [vmem:[#allocation2 + $0x38] sm:$0xff] %vm331, %v512
        %912 = vst.msk [vmem:[#allocation2 + $0x50] sm:$0xff] %vm331, %v513
        %913 = vst.msk [vmem:[#allocation2 + $0x68] sm:$0xff] %vm331, %v514
        %914 = vst.msk [vmem:[#allocation2 + $0x80] sm:$0xff] %vm331, %v515
        %915 = vst.msk [vmem:[#allocation2 + $0x98] sm:$0xff] %vm331, %v516
        %916 = vst.msk [vmem:[#allocation2 + $0xb0] sm:$0xff] %vm331, %v517
        %917 = vst.msk [vmem:[#allocation2 + $0xc8] sm:$0xff] %vm331, %v518
        %918 = vst.msk [vmem:[#allocation2 + $0xe0] sm:$0xff] %vm331, %v519
        %919 = vst.msk [vmem:[#allocation2 + $0xf8] sm:$0xff] %vm331, %v520
        %920 = vst.msk [vmem:[#allocation2 + $0x110] sm:$0xff] %vm331, %v521
        %921 = vst.msk [vmem:[#allocation2 + $0x128] sm:$0xff] %vm331, %v522
        %922 = vst.msk [vmem:[#allocation2 + $0x140] sm:$0xff] %vm331, %v523
        %923 = vst.msk [vmem:[#allocation2 + $0x158] sm:$0xff] %vm331, %v524
        %924 = vst.msk [vmem:[#allocation2 + $0x170] sm:$0xff] %vm331, %v908
        %v925 = vrot.slane %v272, 2
        %v926 = vrot.slane %v273, 2
        %v927 = vsel %vm606, %v925, %v926
        %v928 = vrot.slane %v274, 2
        %v929 = vsel %vm606, %v926, %v928
        %v932 = vpack.c.bf16 %v929, %v927
        %934 = vrot.lane.b32.xlu0 %v720, 32
        %v935 = vpop.permute.xlu0 %934
        %936 = vrot.lane.b32.xlu0 %v721, 32
        %v937 = vpop.permute.xlu0 %936
        %938 = vrot.lane.b32.xlu0 %v722, 32
        %v939 = vpop.permute.xlu0 %938
        %940 = vrot.lane.b32.xlu0 %v723, 32
        %v941 = vpop.permute.xlu0 %940
        %942 = vrot.lane.b32.xlu0 %v724, 32
        %v943 = vpop.permute.xlu0 %942
        %944 = vrot.lane.b32.xlu0 %v725, 32
        %v945 = vpop.permute.xlu0 %944
        %946 = vrot.lane.b32.xlu0 %v726, 32
        %v947 = vpop.permute.xlu0 %946
        %948 = vrot.lane.b32.xlu0 %v727, 32
        %v949 = vpop.permute.xlu0 %948
        %950 = vrot.lane.b32.xlu0 %v728, 32
        %v951 = vpop.permute.xlu0 %950
        %952 = vrot.lane.b32.xlu0 %v729, 32
        %v953 = vpop.permute.xlu0 %952
        %954 = vrot.lane.b32.xlu0 %v730, 32
        %v955 = vpop.permute.xlu0 %954
        %956 = vrot.lane.b32.xlu0 %v731, 32
        %v957 = vpop.permute.xlu0 %956
        %958 = vrot.lane.b32.xlu0 %v732, 32
        %v959 = vpop.permute.xlu0 %958
        %960 = vrot.lane.b32.xlu0 %v733, 32
        %v961 = vpop.permute.xlu0 %960
        %962 = vrot.lane.b32.xlu0 %v734, 32
        %v963 = vpop.permute.xlu0 %962
        %964 = vrot.lane.b32.xlu0 %v932, 32
        %v965 = vpop.permute.xlu0 %964
        %982 = vst.msk [vmem:[#allocation2 + $0x8] sm:$0xff] %vm589, %v935
        %983 = vst.msk [vmem:[#allocation2 + $0x20] sm:$0xff] %vm589, %v937
        %984 = vst.msk [vmem:[#allocation2 + $0x38] sm:$0xff] %vm589, %v939
        %985 = vst.msk [vmem:[#allocation2 + $0x50] sm:$0xff] %vm589, %v941
        %986 = vst.msk [vmem:[#allocation2 + $0x68] sm:$0xff] %vm589, %v943
        %987 = vst.msk [vmem:[#allocation2 + $0x80] sm:$0xff] %vm589, %v945
        %988 = vst.msk [vmem:[#allocation2 + $0x98] sm:$0xff] %vm589, %v947
        %989 = vst.msk [vmem:[#allocation2 + $0xb0] sm:$0xff] %vm589, %v949
        %990 = vst.msk [vmem:[#allocation2 + $0xc8] sm:$0xff] %vm589, %v951
        %991 = vst.msk [vmem:[#allocation2 + $0xe0] sm:$0xff] %vm589, %v953
        %992 = vst.msk [vmem:[#allocation2 + $0xf8] sm:$0xff] %vm589, %v955
        %993 = vst.msk [vmem:[#allocation2 + $0x110] sm:$0xff] %vm589, %v957
        %994 = vst.msk [vmem:[#allocation2 + $0x128] sm:$0xff] %vm589, %v959
        %995 = vst.msk [vmem:[#allocation2 + $0x140] sm:$0xff] %vm589, %v961
        %996 = vst.msk [vmem:[#allocation2 + $0x158] sm:$0xff] %vm589, %v963
        %997 = vst.msk [vmem:[#allocation2 + $0x170] sm:$0xff] %vm589, %v965
        %v998 = vpack.c.bf16 %v276, %v275
        %1000 = vrot.lane.b32.xlu0 %v317, 64
        %v1001 = vpop.permute.xlu0 %1000
        %1002 = vrot.lane.b32.xlu0 %v318, 64
        %v1003 = vpop.permute.xlu0 %1002
        %1004 = vrot.lane.b32.xlu0 %v319, 64
        %v1005 = vpop.permute.xlu0 %1004
        %1006 = vrot.lane.b32.xlu0 %v320, 64
        %v1007 = vpop.permute.xlu0 %1006
        %1008 = vrot.lane.b32.xlu0 %v321, 64
        %v1009 = vpop.permute.xlu0 %1008
        %1010 = vrot.lane.b32.xlu0 %v322, 64
        %v1011 = vpop.permute.xlu0 %1010
        %1012 = vrot.lane.b32.xlu0 %v323, 64
        %v1013 = vpop.permute.xlu0 %1012
        %1014 = vrot.lane.b32.xlu0 %v324, 64
        %v1015 = vpop.permute.xlu0 %1014
        %1016 = vrot.lane.b32.xlu0 %v325, 64
        %v1017 = vpop.permute.xlu0 %1016
        %1018 = vrot.lane.b32.xlu0 %v326, 64
        %v1019 = vpop.permute.xlu0 %1018
        %1020 = vrot.lane.b32.xlu0 %v327, 64
        %v1021 = vpop.permute.xlu0 %1020
        %1022 = vrot.lane.b32.xlu0 %v328, 64
        %v1023 = vpop.permute.xlu0 %1022
        %1024 = vrot.lane.b32.xlu0 %v329, 64
        %v1025 = vpop.permute.xlu0 %1024
        %1026 = vrot.lane.b32.xlu0 %v330, 64
        %v1027 = vpop.permute.xlu0 %1026
        %1028 = vrot.lane.b32.xlu0 %v816, 64
        %v1029 = vpop.permute.xlu0 %1028
        %1030 = vrot.lane.b32.xlu0 %v998, 64
        %v1031 = vpop.permute.xlu0 %1030
        %1048 = vst.msk [vmem:[#allocation2 + $0x8] sm:$0xff] %vm799, %v1001
        %1049 = vst.msk [vmem:[#allocation2 + $0x20] sm:$0xff] %vm799, %v1003
        %1050 = vst.msk [vmem:[#allocation2 + $0x38] sm:$0xff] %vm799, %v1005
        %1051 = vst.msk [vmem:[#allocation2 + $0x50] sm:$0xff] %vm799, %v1007
        %1052 = vst.msk [vmem:[#allocation2 + $0x68] sm:$0xff] %vm799, %v1009
        %1053 = vst.msk [vmem:[#allocation2 + $0x80] sm:$0xff] %vm799, %v1011
        %1054 = vst.msk [vmem:[#allocation2 + $0x98] sm:$0xff] %vm799, %v1013
        %1055 = vst.msk [vmem:[#allocation2 + $0xb0] sm:$0xff] %vm799, %v1015
        %1056 = vst.msk [vmem:[#allocation2 + $0xc8] sm:$0xff] %vm799, %v1017
        %1057 = vst.msk [vmem:[#allocation2 + $0xe0] sm:$0xff] %vm799, %v1019
        %1058 = vst.msk [vmem:[#allocation2 + $0xf8] sm:$0xff] %vm799, %v1021
        %1059 = vst.msk [vmem:[#allocation2 + $0x110] sm:$0xff] %vm799, %v1023
        %1060 = vst.msk [vmem:[#allocation2 + $0x128] sm:$0xff] %vm799, %v1025
        %1061 = vst.msk [vmem:[#allocation2 + $0x140] sm:$0xff] %vm799, %v1027
        %1062 = vst.msk [vmem:[#allocation2 + $0x158] sm:$0xff] %vm799, %v1029
        %1063 = vst.msk [vmem:[#allocation2 + $0x170] sm:$0xff] %vm799, %v1031
        %v1067 = vrot.slane %v275, 1
        %v1068 = vrot.slane %v276, 1
        %v1069 = vsel %vm396, %v1067, %v1068
        %v1070 = vrot.slane %v277, 1
        %v1071 = vsel %vm396, %v1068, %v1070
        %v1074 = vpack.c.bf16 %v1071, %v1069
        %1077 = vrot.lane.b32.xlu0 %v511, 96
        %v1078 = vpop.permute.xlu0 %1077
        %1079 = vrot.lane.b32.xlu0 %v512, 96
        %v1080 = vpop.permute.xlu0 %1079
        %1081 = vrot.lane.b32.xlu0 %v513, 96
        %v1082 = vpop.permute.xlu0 %1081
        %1083 = vrot.lane.b32.xlu0 %v514, 96
        %v1084 = vpop.permute.xlu0 %1083
        %1085 = vrot.lane.b32.xlu0 %v515, 96
        %v1086 = vpop.permute.xlu0 %1085
        %1087 = vrot.lane.b32.xlu0 %v516, 96
        %v1088 = vpop.permute.xlu0 %1087
        %1089 = vrot.lane.b32.xlu0 %v517, 96
        %v1090 = vpop.permute.xlu0 %1089
        %1091 = vrot.lane.b32.xlu0 %v518, 96
        %v1092 = vpop.permute.xlu0 %1091
        %1093 = vrot.lane.b32.xlu0 %v519, 96
        %v1094 = vpop.permute.xlu0 %1093
        %1095 = vrot.lane.b32.xlu0 %v520, 96
        %v1096 = vpop.permute.xlu0 %1095
        %1097 = vrot.lane.b32.xlu0 %v521, 96
        %v1098 = vpop.permute.xlu0 %1097
        %1099 = vrot.lane.b32.xlu0 %v522, 96
        %v1100 = vpop.permute.xlu0 %1099
        %1101 = vrot.lane.b32.xlu0 %v523, 96
        %v1102 = vpop.permute.xlu0 %1101
        %1103 = vrot.lane.b32.xlu0 %v524, 96
        %v1104 = vpop.permute.xlu0 %1103
        %1105 = vrot.lane.b32.xlu0 %v908, 96
        %v1106 = vpop.permute.xlu0 %1105
        %1107 = vrot.lane.b32.xlu0 %v1074, 96
        %v1108 = vpop.permute.xlu0 %1107
        %1125 = vst.msk [vmem:[#allocation2 + $0x8] sm:$0xff] %vm881, %v1078
        %1126 = vst.msk [vmem:[#allocation2 + $0x20] sm:$0xff] %vm881, %v1080
        %1127 = vst.msk [vmem:[#allocation2 + $0x38] sm:$0xff] %vm881, %v1082
        %1128 = vst.msk [vmem:[#allocation2 + $0x50] sm:$0xff] %vm881, %v1084
        %1129 = vst.msk [vmem:[#allocation2 + $0x68] sm:$0xff] %vm881, %v1086
        %1130 = vst.msk [vmem:[#allocation2 + $0x80] sm:$0xff] %vm881, %v1088
        %1131 = vst.msk [vmem:[#allocation2 + $0x98] sm:$0xff] %vm881, %v1090
        %1132 = vst.msk [vmem:[#allocation2 + $0xb0] sm:$0xff] %vm881, %v1092
        %1133 = vst.msk [vmem:[#allocation2 + $0xc8] sm:$0xff] %vm881, %v1094
        %1134 = vst.msk [vmem:[#allocation2 + $0xe0] sm:$0xff] %vm881, %v1096
        %1135 = vst.msk [vmem:[#allocation2 + $0xf8] sm:$0xff] %vm881, %v1098
        %1136 = vst.msk [vmem:[#allocation2 + $0x110] sm:$0xff] %vm881, %v1100
        %1137 = vst.msk [vmem:[#allocation2 + $0x128] sm:$0xff] %vm881, %v1102
        %1138 = vst.msk [vmem:[#allocation2 + $0x140] sm:$0xff] %vm881, %v1104
        %1139 = vst.msk [vmem:[#allocation2 + $0x158] sm:$0xff] %vm881, %v1106
        %1140 = vst.msk [vmem:[#allocation2 + $0x170] sm:$0xff] %vm881, %v1108
        %v1141 = vrot.slane %v275, 2
        %v1142 = vrot.slane %v276, 2
        %v1143 = vsel %vm606, %v1141, %v1142
        %v1144 = vrot.slane %v277, 2
        %v1145 = vsel %vm606, %v1142, %v1144
        %v1148 = vpack.c.bf16 %v1145, %v1143
        %1149 = vst.msk [vmem:[#allocation2 + $0x10] sm:$0xff] %vm331, %v721
        %1150 = vst.msk [vmem:[#allocation2 + $0x28] sm:$0xff] %vm331, %v722
        %1151 = vst.msk [vmem:[#allocation2 + $0x40] sm:$0xff] %vm331, %v723
        %1152 = vst.msk [vmem:[#allocation2 + $0x58] sm:$0xff] %vm331, %v724
        %1153 = vst.msk [vmem:[#allocation2 + $0x70] sm:$0xff] %vm331, %v725
        %1154 = vst.msk [vmem:[#allocation2 + $0x88] sm:$0xff] %vm331, %v726
        %1155 = vst.msk [vmem:[#allocation2 + $0xa0] sm:$0xff] %vm331, %v727
        %1156 = vst.msk [vmem:[#allocation2 + $0xb8] sm:$0xff] %vm331, %v728
        %1157 = vst.msk [vmem:[#allocation2 + $0xd0] sm:$0xff] %vm331, %v729
        %1158 = vst.msk [vmem:[#allocation2 + $0xe8] sm:$0xff] %vm331, %v730
        %1159 = vst.msk [vmem:[#allocation2 + $0x100] sm:$0xff] %vm331, %v731
        %1160 = vst.msk [vmem:[#allocation2 + $0x118] sm:$0xff] %vm331, %v732
        %1161 = vst.msk [vmem:[#allocation2 + $0x130] sm:$0xff] %vm331, %v733
        %1162 = vst.msk [vmem:[#allocation2 + $0x148] sm:$0xff] %vm331, %v734
        %1163 = vst.msk [vmem:[#allocation2 + $0x160] sm:$0xff] %vm331, %v932
        %1164 = vst.msk [vmem:[#allocation2 + $0x178] sm:$0xff] %vm331, %v1148
        %v1165 = vld [vmem:[#allocation2] sm:$0xff]
        %v1166 = vld [vmem:[#allocation2 + $0x8] sm:$0xff]
        %v1167 = vld [vmem:[#allocation2 + $0x10] sm:$0xff]
        %v1168 = vld [vmem:[#allocation2 + $0x18] sm:$0xff]
        %v1169 = vld [vmem:[#allocation2 + $0x20] sm:$0xff]
        %v1170 = vld [vmem:[#allocation2 + $0x28] sm:$0xff]
        %v1171 = vld [vmem:[#allocation2 + $0x30] sm:$0xff]
        %v1172 = vld [vmem:[#allocation2 + $0x38] sm:$0xff]
        %v1173 = vld [vmem:[#allocation2 + $0x40] sm:$0xff]
        %v1174 = vld [vmem:[#allocation2 + $0x48] sm:$0xff]
        %v1175 = vld [vmem:[#allocation2 + $0x50] sm:$0xff]
        %v1176 = vld [vmem:[#allocation2 + $0x58] sm:$0xff]
        %v1177 = vld [vmem:[#allocation2 + $0x60] sm:$0xff]
        %v1178 = vld [vmem:[#allocation2 + $0x68] sm:$0xff]
        %v1179 = vld [vmem:[#allocation2 + $0x70] sm:$0xff]
        %v1180 = vld [vmem:[#allocation2 + $0x78] sm:$0xff]
        %v1181 = vld [vmem:[#allocation2 + $0x80] sm:$0xff]
        %v1182 = vld [vmem:[#allocation2 + $0x88] sm:$0xff]
        %v1183 = vld [vmem:[#allocation2 + $0x90] sm:$0xff]
        %v1184 = vld [vmem:[#allocation2 + $0x98] sm:$0xff]
        %v1185 = vld [vmem:[#allocation2 + $0xa0] sm:$0xff]
        %v1186 = vld [vmem:[#allocation2 + $0xa8] sm:$0xff]
        %v1187 = vld [vmem:[#allocation2 + $0xb0] sm:$0xff]
        %v1188 = vld [vmem:[#allocation2 + $0xb8] sm:$0xff]
        %v1189 = vld [vmem:[#allocation2 + $0xc0] sm:$0xff]
        %v1190 = vld [vmem:[#allocation2 + $0xc8] sm:$0xff]
        %v1191 = vld [vmem:[#allocation2 + $0xd0] sm:$0xff]
        %v1192 = vld [vmem:[#allocation2 + $0xd8] sm:$0xff]
        %v1193 = vld [vmem:[#allocation2 + $0xe0] sm:$0xff]
        %v1194 = vld [vmem:[#allocation2 + $0xe8] sm:$0xff]
        %v1195 = vld [vmem:[#allocation2 + $0xf0] sm:$0xff]
        %v1196 = vld [vmem:[#allocation2 + $0xf8] sm:$0xff]
        %v1197 = vld [vmem:[#allocation2 + $0x100] sm:$0xff]
        %v1198 = vld [vmem:[#allocation2 + $0x108] sm:$0xff]
        %v1199 = vld [vmem:[#allocation2 + $0x110] sm:$0xff]
        %v1200 = vld [vmem:[#allocation2 + $0x118] sm:$0xff]
        %v1201 = vld [vmem:[#allocation2 + $0x120] sm:$0xff]
        %v1202 = vld [vmem:[#allocation2 + $0x128] sm:$0xff]
        %v1203 = vld [vmem:[#allocation2 + $0x130] sm:$0xff]
        %v1204 = vld [vmem:[#allocation2 + $0x138] sm:$0xff]
        %v1205 = vld [vmem:[#allocation2 + $0x140] sm:$0xff]
        %v1206 = vld [vmem:[#allocation2 + $0x148] sm:$0xff]
        %v1207 = vld [vmem:[#allocation2 + $0x150] sm:$0xff]
        %v1208 = vld [vmem:[#allocation2 + $0x158] sm:$0xff]
        %v1209 = vld [vmem:[#allocation2 + $0x160] sm:$0xff]
        %v1210 = vld [vmem:[#allocation2 + $0x168] sm:$0xff]
        %v1211 = vld [vmem:[#allocation2 + $0x170] sm:$0xff]
        %v1212 = vld [vmem:[#allocation2 + $0x178] sm:$0xff]
        %v1214 = vlaneseq
        %v1215 = vshrl.u32 %v1214, 7
        %v1216 = vsub.s32 0, %v1215
        %v1217 = vrot.slane %v314, %v1216
        %v1255 = vunpack.c.l.b16 %v278
        %v1256 = vunpack.c.l.b16 %v279
        %v1257 = vunpack.c.l.b16 %v280
        %v1258 = vunpack.c.l.b16 %v281
        %v1259 = vunpack.c.l.b16 %v282
        %v1260 = vunpack.c.l.b16 %v283
        %v1261 = vunpack.c.l.b16 %v284
        %v1262 = vunpack.c.l.b16 %v285
        %v1263 = vunpack.c.l.b16 %v286
        %v1264 = vunpack.c.l.b16 %v287
        %v1265 = vunpack.c.l.b16 %v288
        %v1266 = vunpack.c.l.b16 %v289
        %v1267 = vunpack.c.l.b16 %v290
        %v1268 = vunpack.c.l.b16 %v291
        %v1269 = vunpack.c.l.b16 %v292
        %v1270 = vunpack.c.l.b16 %v293
        %v1271 = vunpack.c.l.b16 %v294
        %v1272 = vunpack.c.l.b16 %v295
        %v1273 = vunpack.c.l.b16 %v296
        %v1274 = vunpack.c.l.b16 %v297
        %v1275 = vunpack.c.l.b16 %v298
        %v1276 = vunpack.c.l.b16 %v299
        %v1277 = vunpack.c.l.b16 %v300
        %v1278 = vunpack.c.l.b16 %v301
        %v1279 = vunpack.c.l.b16 %v302
        %v1280 = vunpack.c.l.b16 %v303
        %v1281 = vunpack.c.l.b16 %v304
        %v1282 = vunpack.c.l.b16 %v305
        %v1283 = vunpack.c.l.b16 %v306
        %v1284 = vunpack.c.l.b16 %v307
        %v1285 = vunpack.c.l.b16 %v308
        %v1286 = vunpack.c.l.b16 %v309
        %v1287 = vunpack.c.l.b16 %v310
        %v1288 = vunpack.c.l.b16 %v311
        %v1289 = vunpack.c.l.b16 %v312
        %v1290 = vunpack.c.l.b16 %v313
        %v1291 = vpack.c.b16 %v1256, %v1255
        %v1292 = vpack.c.b16 %v1258, %v1257
        %v1293 = vpack.c.b16 %v1260, %v1259
        %v1294 = vpack.c.b16 %v1262, %v1261
        %v1295 = vpack.c.b16 %v1264, %v1263
        %v1296 = vpack.c.b16 %v1266, %v1265
        %v1297 = vpack.c.b16 %v1268, %v1267
        %v1298 = vpack.c.b16 %v1270, %v1269
        %v1299 = vpack.c.b16 %v1272, %v1271
        %v1300 = vpack.c.b16 %v1274, %v1273
        %v1301 = vpack.c.b16 %v1276, %v1275
        %v1302 = vpack.c.b16 %v1278, %v1277
        %v1303 = vpack.c.b16 %v1280, %v1279
        %v1304 = vpack.c.b16 %v1282, %v1281
        %v1305 = vpack.c.b16 %v1284, %v1283
        %v1306 = vpack.c.b16 %v1286, %v1285
        %v1307 = vpack.c.b16 %v1288, %v1287
        %v1308 = vpack.c.b16 %v1290, %v1289
        %v1328 = vsel %vm331, %v1167, 0
        %v1331 = vsel %vm331, %v1170, 0
        %v1334 = vsel %vm331, %v1173, 0
        %v1337 = vsel %vm331, %v1176, 0
        %v1340 = vsel %vm331, %v1179, 0
        %v1343 = vsel %vm331, %v1182, 0
        %v1346 = vsel %vm331, %v1185, 0
        %v1349 = vsel %vm331, %v1188, 0
        %v1352 = vsel %vm331, %v1191, 0
        %v1355 = vsel %vm331, %v1194, 0
        %v1358 = vsel %vm331, %v1197, 0
        %v1361 = vsel %vm331, %v1200, 0
        %v1364 = vsel %vm331, %v1203, 0
        %v1367 = vsel %vm331, %v1206, 0
        %v1370 = vsel %vm331, %v1209, 0
        %v1373 = vsel %vm331, %v1212, 0
        %1375 = vmatprep.subr.bf16.mxu0 0
        %1376 = vmatpush1.bf16.msra.mxu0 %v1291
        %1377 = vmatprep.subr.bf16.mxu0 0
        %1378 = vmatpush1.bf16.msra.mxu0 %v1292
        %1379 = vmatprep.subr.bf16.mxu0 0
        %1380 = vmatpush1.bf16.msra.mxu0 %v1293
        %1381 = vmatprep.subr.bf16.mxu0 0
        %1382 = vmatpush1.bf16.msra.mxu0 %v1294
        %1383 = vmatprep.subr.bf16.mxu0 0
        %1384 = vmatpush1.bf16.msra.mxu0 %v1295
        %1385 = vmatprep.subr.bf16.mxu0 0
        %1386 = vmatpush1.bf16.msra.mxu0 %v1296
        %1387 = vmatprep.subr.bf16.mxu0 0
        %1388 = vmatpush1.bf16.msra.mxu0 %v1297
        %1389 = vmatprep.subr.bf16.mxu0 0
        %1390 = vmatpush1.bf16.msra.mxu0 %v1298
        %1391 = vmatprep.subr.bf16.mxu0 0
        %1392 = vmatpush1.bf16.msra.mxu0 %v1299
        %1393 = vmatprep.subr.bf16.mxu0 0
        %1394 = vmatpush1.bf16.msra.mxu0 %v1300
        %1395 = vmatprep.subr.bf16.mxu0 0
        %1396 = vmatpush1.bf16.msra.mxu0 %v1301
        %1397 = vmatprep.subr.bf16.mxu0 0
        %1398 = vmatpush1.bf16.msra.mxu0 %v1302
        %1399 = vmatprep.subr.bf16.mxu0 0
        %1400 = vmatpush1.bf16.msra.mxu0 %v1303
        %1401 = vmatprep.subr.bf16.mxu0 0
        %1402 = vmatpush1.bf16.msra.mxu0 %v1304
        %1403 = vmatprep.subr.bf16.mxu0 0
        %1404 = vmatpush1.bf16.msra.mxu0 %v1305
        %1405 = vmatprep.subr.bf16.mxu0 0
        %1406 = vmatpush1.bf16.msra.mxu0 %v1306
        %1407 = vmatprep.mubr.bf16.mxu0 %v1166
        %1408 = vmatmul.mubr.bf16.gmra.mrb[0].mxu0 %v1165
        %v1409 = vpop.f32.mrb[0].mxu0
        %v1410 = vadd.f32 %v1217, %v1409
        %v1411 = vpop.f32.mrb[0].mxu0
        %v1412 = vpop.f32.mrb[0].mxu0
        %v1413 = vadd.f32 %v1217, %v1412
        %v1414 = vpop.f32.mrb[0].mxu0
        %1415 = vmatprep.mubr.bf16.mxu0 %v1169
        %1416 = vmatmul.mubr.bf16.gmra.mrb[0].mxu0 %v1168
        %v1417 = vpop.f32.mrb[0].mxu0
        %v1418 = vadd.f32 %v1217, %v1417
        %v1419 = vpop.f32.mrb[0].mxu0
        %v1420 = vpop.f32.mrb[0].mxu0
        %v1421 = vadd.f32 %v1217, %v1420
        %v1422 = vpop.f32.mrb[0].mxu0
        %1423 = vmatprep.mubr.bf16.mxu0 %v1172
        %1424 = vmatmul.mubr.bf16.gmra.mrb[0].mxu0 %v1171
        %v1425 = vpop.f32.mrb[0].mxu0
        %v1426 = vadd.f32 %v1217, %v1425
        %v1427 = vpop.f32.mrb[0].mxu0
        %v1428 = vpop.f32.mrb[0].mxu0
        %v1429 = vadd.f32 %v1217, %v1428
        %v1430 = vpop.f32.mrb[0].mxu0
        %1431 = vmatprep.mubr.bf16.mxu0 %v1175
        %1432 = vmatmul.mubr.bf16.gmra.mrb[0].mxu0 %v1174
        %v1433 = vpop.f32.mrb[0].mxu0
        %v1434 = vadd.f32 %v1217, %v1433
        %v1435 = vpop.f32.mrb[0].mxu0
        %v1436 = vpop.f32.mrb[0].mxu0
        %v1437 = vadd.f32 %v1217, %v1436
        %v1438 = vpop.f32.mrb[0].mxu0
        %1439 = vmatprep.mubr.bf16.mxu0 %v1178
        %1440 = vmatmul.mubr.bf16.gmra.mrb[0].mxu0 %v1177
        %v1441 = vpop.f32.mrb[0].mxu0
        %v1442 = vadd.f32 %v1217, %v1441
        %v1443 = vpop.f32.mrb[0].mxu0
        %v1444 = vpop.f32.mrb[0].mxu0
        %v1445 = vadd.f32 %v1217, %v1444
        %v1446 = vpop.f32.mrb[0].mxu0
        %1447 = vmatprep.mubr.bf16.mxu0 %v1181
        %1448 = vmatmul.mubr.bf16.gmra.mrb[0].mxu0 %v1180
        %v1449 = vpop.f32.mrb[0].mxu0
        %v1450 = vadd.f32 %v1217, %v1449
        %v1451 = vpop.f32.mrb[0].mxu0
        %v1452 = vpop.f32.mrb[0].mxu0
        %v1453 = vadd.f32 %v1217, %v1452
        %v1454 = vpop.f32.mrb[0].mxu0
        %1455 = vmatprep.mubr.bf16.mxu0 %v1184
        %1456 = vmatmul.mubr.bf16.gmra.mrb[0].mxu0 %v1183
        %v1457 = vpop.f32.mrb[0].mxu0
        %v1458 = vadd.f32 %v1217, %v1457
        %v1459 = vpop.f32.mrb[0].mxu0
        %v1460 = vpop.f32.mrb[0].mxu0
        %v1461 = vadd.f32 %v1217, %v1460
        %v1462 = vpop.f32.mrb[0].mxu0
        %1463 = vmatprep.mubr.bf16.mxu0 %v1187
        %1464 = vmatmul.mubr.bf16.gmra.mrb[0].mxu0 %v1186
        %v1465 = vpop.f32.mrb[0].mxu0
        %v1466 = vadd.f32 %v1217, %v1465
        %v1467 = vpop.f32.mrb[0].mxu0
        %v1468 = vpop.f32.mrb[0].mxu0
        %v1469 = vadd.f32 %v1217, %v1468
        %v1470 = vpop.f32.mrb[0].mxu0
        %1471 = vmatprep.mubr.bf16.mxu0 %v1190
        %1472 = vmatmul.mubr.bf16.gmra.mrb[0].mxu0 %v1189
        %v1473 = vpop.f32.mrb[0].mxu0
        %v1474 = vadd.f32 %v1217, %v1473
        %v1475 = vpop.f32.mrb[0].mxu0
        %v1476 = vpop.f32.mrb[0].mxu0
        %v1477 = vadd.f32 %v1217, %v1476
        %v1478 = vpop.f32.mrb[0].mxu0
        %1479 = vmatprep.mubr.bf16.mxu0 %v1193
        %1480 = vmatmul.mubr.bf16.gmra.mrb[0].mxu0 %v1192
        %v1481 = vpop.f32.mrb[0].mxu0
        %v1482 = vadd.f32 %v1217, %v1481
        %v1483 = vpop.f32.mrb[0].mxu0
        %v1484 = vpop.f32.mrb[0].mxu0
        %v1485 = vadd.f32 %v1217, %v1484
        %v1486 = vpop.f32.mrb[0].mxu0
        %1487 = vmatprep.mubr.bf16.mxu0 %v1196
        %1488 = vmatmul.mubr.bf16.gmra.mrb[0].mxu0 %v1195
        %v1489 = vpop.f32.mrb[0].mxu0
        %v1490 = vadd.f32 %v1217, %v1489
        %v1491 = vpop.f32.mrb[0].mxu0
        %v1492 = vpop.f32.mrb[0].mxu0
        %v1493 = vadd.f32 %v1217, %v1492
        %v1494 = vpop.f32.mrb[0].mxu0
        %1495 = vmatprep.mubr.bf16.mxu0 %v1199
        %1496 = vmatmul.mubr.bf16.gmra.mrb[0].mxu0 %v1198
        %v1497 = vpop.f32.mrb[0].mxu0
        %v1498 = vadd.f32 %v1217, %v1497
        %v1499 = vpop.f32.mrb[0].mxu0
        %v1500 = vpop.f32.mrb[0].mxu0
        %v1501 = vadd.f32 %v1217, %v1500
        %v1502 = vpop.f32.mrb[0].mxu0
        %1503 = vmatprep.mubr.bf16.mxu0 %v1202
        %1504 = vmatmul.mubr.bf16.gmra.mrb[0].mxu0 %v1201
        %v1505 = vpop.f32.mrb[0].mxu0
        %v1506 = vadd.f32 %v1217, %v1505
        %v1507 = vpop.f32.mrb[0].mxu0
        %v1508 = vpop.f32.mrb[0].mxu0
        %v1509 = vadd.f32 %v1217, %v1508
        %v1510 = vpop.f32.mrb[0].mxu0
        %1511 = vmatprep.mubr.bf16.mxu0 %v1205
        %1512 = vmatmul.mubr.bf16.gmra.mrb[0].mxu0 %v1204
        %v1513 = vpop.f32.mrb[0].mxu0
        %v1514 = vadd.f32 %v1217, %v1513
        %v1515 = vpop.f32.mrb[0].mxu0
        %v1516 = vpop.f32.mrb[0].mxu0
        %v1517 = vadd.f32 %v1217, %v1516
        %v1518 = vpop.f32.mrb[0].mxu0
        %1519 = vmatprep.mubr.bf16.mxu0 %v1208
        %1520 = vmatmul.mubr.bf16.gmra.mrb[0].mxu0 %v1207
        %v1521 = vpop.f32.mrb[0].mxu0
        %v1522 = vadd.f32 %v1217, %v1521
        %v1523 = vpop.f32.mrb[0].mxu0
        %v1524 = vpop.f32.mrb[0].mxu0
        %v1525 = vadd.f32 %v1217, %v1524
        %v1526 = vpop.f32.mrb[0].mxu0
        %1527 = vmatprep.mubr.bf16.mxu0 %v1211
        %1528 = vmatmul.mubr.bf16.gmra.mrb[0].mxu0 %v1210
        %v1529 = vpop.f32.mrb[0].mxu0
        %v1530 = vadd.f32 %v1217, %v1529
        %v1531 = vpop.f32.mrb[0].mxu0
        %v1532 = vpop.f32.mrb[0].mxu0
        %v1533 = vadd.f32 %v1217, %v1532
        %v1534 = vpop.f32.mrb[0].mxu0
        %1535 = vdwg.mxu0
        %1536 = vmatprep.subr.bf16.mxu0 0
        %1537 = vmatpush1.bf16.msra.mxu0 %v1307
        %1538 = vmatprep.subr.bf16.mxu0 0
        %1539 = vmatpush1.bf16.msra.mxu0 %v1308
        %1540 = vmatprep.subr.bf16.mxu0 0
        %1541 = vmatpush1.bf16.msra.mxu0 0
        %1542 = vmatprep.subr.bf16.mxu0 0
        %1543 = vmatpush1.bf16.msra.mxu0 0
        %1544 = vmatprep.subr.bf16.mxu0 0
        %1545 = vmatpush1.bf16.msra.mxu0 0
        %1546 = vmatprep.subr.bf16.mxu0 0
        %1547 = vmatpush1.bf16.msra.mxu0 0
        %1548 = vmatprep.subr.bf16.mxu0 0
        %1549 = vmatpush1.bf16.msra.mxu0 0
        %1550 = vmatprep.subr.bf16.mxu0 0
        %1551 = vmatpush1.bf16.msra.mxu0 0
        %1552 = vmatprep.subr.bf16.mxu0 0
        %1553 = vmatpush1.bf16.msra.mxu0 0
        %1554 = vmatprep.subr.bf16.mxu0 0
        %1555 = vmatpush1.bf16.msra.mxu0 0
        %1556 = vmatprep.subr.bf16.mxu0 0
        %1557 = vmatpush1.bf16.msra.mxu0 0
        %1558 = vmatprep.subr.bf16.mxu0 0
        %1559 = vmatpush1.bf16.msra.mxu0 0
        %1560 = vmatprep.subr.bf16.mxu0 0
        %1561 = vmatpush1.bf16.msra.mxu0 0
        %1562 = vmatprep.subr.bf16.mxu0 0
        %1563 = vmatpush1.bf16.msra.mxu0 0
        %1564 = vmatprep.subr.bf16.mxu0 0
        %1565 = vmatpush1.bf16.msra.mxu0 0
        %1566 = vmatprep.subr.bf16.mxu0 0
        %1567 = vmatpush1.bf16.msra.mxu0 0
        %1568 = vmatprep.mubr.bf16.mxu0 0
        %1569 = vmatmul.mubr.bf16.gmra.mrb[0].mxu0 %v1328
        %v1570 = vpop.f32.mrb[0].mxu0
        %v1571 = vadd.f32 %v1410, %v1570
        %v1572 = vpop.f32.mrb[0].mxu0
        %v1573 = vpop.f32.mrb[0].mxu0
        %v1574 = vadd.f32 %v1413, %v1573
        %v1575 = vpop.f32.mrb[0].mxu0
        %1576 = vmatprep.mubr.bf16.mxu0 0
        %1577 = vmatmul.mubr.bf16.gmra.mrb[0].mxu0 %v1331
        %v1578 = vpop.f32.mrb[0].mxu0
        %v1579 = vadd.f32 %v1418, %v1578
        %v1580 = vpop.f32.mrb[0].mxu0
        %v1581 = vpop.f32.mrb[0].mxu0
        %v1582 = vadd.f32 %v1421, %v1581
        %v1583 = vpop.f32.mrb[0].mxu0
        %1584 = vmatprep.mubr.bf16.mxu0 0
        %1585 = vmatmul.mubr.bf16.gmra.mrb[0].mxu0 %v1334
        %v1586 = vpop.f32.mrb[0].mxu0
        %v1587 = vadd.f32 %v1426, %v1586
        %v1588 = vpop.f32.mrb[0].mxu0
        %v1589 = vpop.f32.mrb[0].mxu0
        %v1590 = vadd.f32 %v1429, %v1589
        %v1591 = vpop.f32.mrb[0].mxu0
        %1592 = vmatprep.mubr.bf16.mxu0 0
        %1593 = vmatmul.mubr.bf16.gmra.mrb[0].mxu0 %v1337
        %v1594 = vpop.f32.mrb[0].mxu0
        %v1595 = vadd.f32 %v1434, %v1594
        %v1596 = vpop.f32.mrb[0].mxu0
        %v1597 = vpop.f32.mrb[0].mxu0
        %v1598 = vadd.f32 %v1437, %v1597
        %v1599 = vpop.f32.mrb[0].mxu0
        %1600 = vmatprep.mubr.bf16.mxu0 0
        %1601 = vmatmul.mubr.bf16.gmra.mrb[0].mxu0 %v1340
        %v1602 = vpop.f32.mrb[0].mxu0
        %v1603 = vadd.f32 %v1442, %v1602
        %v1604 = vpop.f32.mrb[0].mxu0
        %v1605 = vpop.f32.mrb[0].mxu0
        %v1606 = vadd.f32 %v1445, %v1605
        %v1607 = vpop.f32.mrb[0].mxu0
        %1608 = vmatprep.mubr.bf16.mxu0 0
        %1609 = vmatmul.mubr.bf16.gmra.mrb[0].mxu0 %v1343
        %v1610 = vpop.f32.mrb[0].mxu0
        %v1611 = vadd.f32 %v1450, %v1610
        %v1612 = vpop.f32.mrb[0].mxu0
        %v1613 = vpop.f32.mrb[0].mxu0
        %v1614 = vadd.f32 %v1453, %v1613
        %v1615 = vpop.f32.mrb[0].mxu0
        %1616 = vmatprep.mubr.bf16.mxu0 0
        %1617 = vmatmul.mubr.bf16.gmra.mrb[0].mxu0 %v1346
        %v1618 = vpop.f32.mrb[0].mxu0
        %v1619 = vadd.f32 %v1458, %v1618
        %v1620 = vpop.f32.mrb[0].mxu0
        %v1621 = vpop.f32.mrb[0].mxu0
        %v1622 = vadd.f32 %v1461, %v1621
        %v1623 = vpop.f32.mrb[0].mxu0
        %1624 = vmatprep.mubr.bf16.mxu0 0
        %1625 = vmatmul.mubr.bf16.gmra.mrb[0].mxu0 %v1349
        %v1626 = vpop.f32.mrb[0].mxu0
        %v1627 = vadd.f32 %v1466, %v1626
        %v1628 = vpop.f32.mrb[0].mxu0
        %v1629 = vpop.f32.mrb[0].mxu0
        %v1630 = vadd.f32 %v1469, %v1629
        %v1631 = vpop.f32.mrb[0].mxu0
        %1632 = vmatprep.mubr.bf16.mxu0 0
        %1633 = vmatmul.mubr.bf16.gmra.mrb[0].mxu0 %v1352
        %v1634 = vpop.f32.mrb[0].mxu0
        %v1635 = vadd.f32 %v1474, %v1634
        %v1636 = vpop.f32.mrb[0].mxu0
        %v1637 = vpop.f32.mrb[0].mxu0
        %v1638 = vadd.f32 %v1477, %v1637
        %v1639 = vpop.f32.mrb[0].mxu0
        %1640 = vmatprep.mubr.bf16.mxu0 0
        %1641 = vmatmul.mubr.bf16.gmra.mrb[0].mxu0 %v1355
        %v1642 = vpop.f32.mrb[0].mxu0
        %v1643 = vadd.f32 %v1482, %v1642
        %v1644 = vpop.f32.mrb[0].mxu0
        %v1645 = vpop.f32.mrb[0].mxu0
        %v1646 = vadd.f32 %v1485, %v1645
        %v1647 = vpop.f32.mrb[0].mxu0
        %1648 = vmatprep.mubr.bf16.mxu0 0
        %1649 = vmatmul.mubr.bf16.gmra.mrb[0].mxu0 %v1358
        %v1650 = vpop.f32.mrb[0].mxu0
        %v1651 = vadd.f32 %v1490, %v1650
        %v1652 = vpop.f32.mrb[0].mxu0
        %v1653 = vpop.f32.mrb[0].mxu0
        %v1654 = vadd.f32 %v1493, %v1653
        %v1655 = vpop.f32.mrb[0].mxu0
        %1656 = vmatprep.mubr.bf16.mxu0 0
        %1657 = vmatmul.mubr.bf16.gmra.mrb[0].mxu0 %v1361
        %v1658 = vpop.f32.mrb[0].mxu0
        %v1659 = vadd.f32 %v1498, %v1658
        %v1660 = vpop.f32.mrb[0].mxu0
        %v1661 = vpop.f32.mrb[0].mxu0
        %v1662 = vadd.f32 %v1501, %v1661
        %v1663 = vpop.f32.mrb[0].mxu0
        %1664 = vmatprep.mubr.bf16.mxu0 0
        %1665 = vmatmul.mubr.bf16.gmra.mrb[0].mxu0 %v1364
        %v1666 = vpop.f32.mrb[0].mxu0
        %v1667 = vadd.f32 %v1506, %v1666
        %v1668 = vpop.f32.mrb[0].mxu0
        %v1669 = vpop.f32.mrb[0].mxu0
        %v1670 = vadd.f32 %v1509, %v1669
        %v1671 = vpop.f32.mrb[0].mxu0
        %1672 = vmatprep.mubr.bf16.mxu0 0
        %1673 = vmatmul.mubr.bf16.gmra.mrb[0].mxu0 %v1367
        %v1674 = vpop.f32.mrb[0].mxu0
        %v1675 = vadd.f32 %v1514, %v1674
        %v1676 = vpop.f32.mrb[0].mxu0
        %v1677 = vpop.f32.mrb[0].mxu0
        %v1678 = vadd.f32 %v1517, %v1677
        %v1679 = vpop.f32.mrb[0].mxu0
        %1680 = vmatprep.mubr.bf16.mxu0 0
        %1681 = vmatmul.mubr.bf16.gmra.mrb[0].mxu0 %v1370
        %v1682 = vpop.f32.mrb[0].mxu0
        %v1683 = vadd.f32 %v1522, %v1682
        %v1684 = vpop.f32.mrb[0].mxu0
        %v1685 = vpop.f32.mrb[0].mxu0
        %v1686 = vadd.f32 %v1525, %v1685
        %v1687 = vpop.f32.mrb[0].mxu0
        %1688 = vmatprep.mubr.bf16.mxu0 0
        %1689 = vmatmul.mubr.bf16.gmra.mrb[0].mxu0 %v1373
        %v1690 = vpop.f32.mrb[0].mxu0
        %v1691 = vadd.f32 %v1530, %v1690
        %v1692 = vpop.f32.mrb[0].mxu0
        %v1693 = vpop.f32.mrb[0].mxu0
        %v1694 = vadd.f32 %v1533, %v1693
        %v1695 = vpop.f32.mrb[0].mxu0
        %1696 = vdwg.mxu0
        %v1697 = vsel %vm331, %v1571, 0.0
        %v1698 = vsel %vm331, %v1574, 0.0
        %v1699 = vadd.f32 %v1697, %v1698
        %v1700 = vsel %vm331, %v1579, 0.0
        %v1701 = vadd.f32 %v1699, %v1700
        %v1702 = vsel %vm331, %v1582, 0.0
        %v1703 = vadd.f32 %v1701, %v1702
        %v1704 = vsel %vm331, %v1587, 0.0
        %v1705 = vadd.f32 %v1703, %v1704
        %v1706 = vsel %vm331, %v1590, 0.0
        %v1707 = vadd.f32 %v1705, %v1706
        %v1708 = vsel %vm331, %v1595, 0.0
        %v1709 = vadd.f32 %v1707, %v1708
        %v1710 = vsel %vm331, %v1598, 0.0
        %v1711 = vadd.f32 %v1709, %v1710
        %v1712 = vsel %vm331, %v1603, 0.0
        %v1713 = vadd.f32 %v1711, %v1712
        %v1714 = vsel %vm331, %v1606, 0.0
        %v1715 = vadd.f32 %v1713, %v1714
        %v1716 = vsel %vm331, %v1611, 0.0
        %v1717 = vadd.f32 %v1715, %v1716
        %v1718 = vsel %vm331, %v1614, 0.0
        %v1719 = vadd.f32 %v1717, %v1718
        %v1720 = vsel %vm331, %v1619, 0.0
        %v1721 = vadd.f32 %v1719, %v1720
        %v1722 = vsel %vm331, %v1622, 0.0
        %v1723 = vadd.f32 %v1721, %v1722
        %v1724 = vsel %vm331, %v1627, 0.0
        %v1725 = vadd.f32 %v1723, %v1724
        %v1726 = vsel %vm331, %v1630, 0.0
        %v1727 = vadd.f32 %v1725, %v1726
        %v1728 = vsel %vm331, %v1635, 0.0
        %v1729 = vadd.f32 %v1727, %v1728
        %v1730 = vsel %vm331, %v1638, 0.0
        %v1731 = vadd.f32 %v1729, %v1730
        %v1732 = vsel %vm331, %v1643, 0.0
        %v1733 = vadd.f32 %v1731, %v1732
        %v1734 = vsel %vm331, %v1646, 0.0
        %v1735 = vadd.f32 %v1733, %v1734
        %v1736 = vsel %vm331, %v1651, 0.0
        %v1737 = vadd.f32 %v1735, %v1736
        %v1738 = vsel %vm331, %v1654, 0.0
        %v1739 = vadd.f32 %v1737, %v1738
        %v1740 = vsel %vm331, %v1659, 0.0
        %v1741 = vadd.f32 %v1739, %v1740
        %v1742 = vsel %vm331, %v1662, 0.0
        %v1743 = vadd.f32 %v1741, %v1742
        %v1744 = vsel %vm331, %v1667, 0.0
        %v1745 = vadd.f32 %v1743, %v1744
        %v1746 = vsel %vm331, %v1670, 0.0
        %v1747 = vadd.f32 %v1745, %v1746
        %v1748 = vsel %vm331, %v1675, 0.0
        %v1749 = vadd.f32 %v1747, %v1748
        %v1750 = vsel %vm331, %v1678, 0.0
        %v1751 = vadd.f32 %v1749, %v1750
        %v1752 = vsel %vm331, %v1683, 0.0
        %v1753 = vadd.f32 %v1751, %v1752
        %v1754 = vsel %vm331, %v1686, 0.0
        %v1755 = vadd.f32 %v1753, %v1754
        %v1756 = vsel %vm331, %v1691, 0.0
        %v1757 = vadd.f32 %v1755, %v1756
        %v1758 = vsel %vm331, %v1694, 0.0
        %v1759 = vadd.f32 %v1757, %v1758
        %v1760 = vrot.slane %v1759, 4
        %v1761 = vadd.f32 %v1759, %v1760
        %v1762 = vrot.slane %v1761, 2
        %v1763 = vadd.f32 %v1761, %v1762
        %v1764 = vrot.slane %v1763, 1
        %v1765 = vadd.f32 %v1763, %v1764
        %v1766 = vmul.f32 %v1571, %v1571
        %v1767 = vmul.f32 %v1574, %v1574
        %v1768 = vmul.f32 %v1579, %v1579
        %v1769 = vmul.f32 %v1582, %v1582
        %v1770 = vmul.f32 %v1587, %v1587
        %v1771 = vmul.f32 %v1590, %v1590
        %v1772 = vmul.f32 %v1595, %v1595
        %v1773 = vmul.f32 %v1598, %v1598
        %v1774 = vmul.f32 %v1603, %v1603
        %v1775 = vmul.f32 %v1606, %v1606
        %v1776 = vmul.f32 %v1611, %v1611
        %v1777 = vmul.f32 %v1614, %v1614
        %v1778 = vmul.f32 %v1619, %v1619
        %v1779 = vmul.f32 %v1622, %v1622
        %v1780 = vmul.f32 %v1627, %v1627
        %v1781 = vmul.f32 %v1630, %v1630
        %v1782 = vmul.f32 %v1635, %v1635
        %v1783 = vmul.f32 %v1638, %v1638
        %v1784 = vmul.f32 %v1643, %v1643
        %v1785 = vmul.f32 %v1646, %v1646
        %v1786 = vmul.f32 %v1651, %v1651
        %v1787 = vmul.f32 %v1654, %v1654
        %v1788 = vmul.f32 %v1659, %v1659
        %v1789 = vmul.f32 %v1662, %v1662
        %v1790 = vmul.f32 %v1667, %v1667
        %v1791 = vmul.f32 %v1670, %v1670
        %v1792 = vmul.f32 %v1675, %v1675
        %v1793 = vmul.f32 %v1678, %v1678
        %v1794 = vmul.f32 %v1683, %v1683
        %v1795 = vmul.f32 %v1686, %v1686
        %v1796 = vmul.f32 %v1691, %v1691
        %v1797 = vmul.f32 %v1694, %v1694
        %v1798 = vsel %vm331, %v1766, 0.0
        %v1799 = vsel %vm331, %v1767, 0.0
        %v1800 = vadd.f32 %v1798, %v1799
        %v1801 = vsel %vm331, %v1768, 0.0
        %v1802 = vadd.f32 %v1800, %v1801
        %v1803 = vsel %vm331, %v1769, 0.0
        %v1804 = vadd.f32 %v1802, %v1803
        %v1805 = vsel %vm331, %v1770, 0.0
        %v1806 = vadd.f32 %v1804, %v1805
        %v1807 = vsel %vm331, %v1771, 0.0
        %v1808 = vadd.f32 %v1806, %v1807
        %v1809 = vsel %vm331, %v1772, 0.0
        %v1810 = vadd.f32 %v1808, %v1809
        %v1811 = vsel %vm331, %v1773, 0.0
        %v1812 = vadd.f32 %v1810, %v1811
        %v1813 = vsel %vm331, %v1774, 0.0
        %v1814 = vadd.f32 %v1812, %v1813
        %v1815 = vsel %vm331, %v1775, 0.0
        %v1816 = vadd.f32 %v1814, %v1815
        %v1817 = vsel %vm331, %v1776, 0.0
        %v1818 = vadd.f32 %v1816, %v1817
        %v1819 = vsel %vm331, %v1777, 0.0
        %v1820 = vadd.f32 %v1818, %v1819
        %v1821 = vsel %vm331, %v1778, 0.0
        %v1822 = vadd.f32 %v1820, %v1821
        %v1823 = vsel %vm331, %v1779, 0.0
        %v1824 = vadd.f32 %v1822, %v1823
        %v1825 = vsel %vm331, %v1780, 0.0
        %v1826 = vadd.f32 %v1824, %v1825
        %v1827 = vsel %vm331, %v1781, 0.0
        %v1828 = vadd.f32 %v1826, %v1827
        %v1829 = vsel %vm331, %v1782, 0.0
        %v1830 = vadd.f32 %v1828, %v1829
        %v1831 = vsel %vm331, %v1783, 0.0
        %v1832 = vadd.f32 %v1830, %v1831
        %v1833 = vsel %vm331, %v1784, 0.0
        %v1834 = vadd.f32 %v1832, %v1833
        %v1835 = vsel %vm331, %v1785, 0.0
        %v1836 = vadd.f32 %v1834, %v1835
        %v1837 = vsel %vm331, %v1786, 0.0
        %v1838 = vadd.f32 %v1836, %v1837
        %v1839 = vsel %vm331, %v1787, 0.0
        %v1840 = vadd.f32 %v1838, %v1839
        %v1841 = vsel %vm331, %v1788, 0.0
        %v1842 = vadd.f32 %v1840, %v1841
        %v1843 = vsel %vm331, %v1789, 0.0
        %v1844 = vadd.f32 %v1842, %v1843
        %v1845 = vsel %vm331, %v1790, 0.0
        %v1846 = vadd.f32 %v1844, %v1845
        %v1847 = vsel %vm331, %v1791, 0.0
        %v1848 = vadd.f32 %v1846, %v1847
        %v1849 = vsel %vm331, %v1792, 0.0
        %v1850 = vadd.f32 %v1848, %v1849
        %v1851 = vsel %vm331, %v1793, 0.0
        %v1852 = vadd.f32 %v1850, %v1851
        %v1853 = vsel %vm331, %v1794, 0.0
        %v1854 = vadd.f32 %v1852, %v1853
        %v1855 = vsel %vm331, %v1795, 0.0
        %v1856 = vadd.f32 %v1854, %v1855
        %v1857 = vsel %vm331, %v1796, 0.0
        %v1858 = vadd.f32 %v1856, %v1857
        %v1859 = vsel %vm331, %v1797, 0.0
        %v1860 = vadd.f32 %v1858, %v1859
        %v1861 = vrot.slane %v1860, 4
        %v1862 = vadd.f32 %v1860, %v1861
        %v1863 = vrot.slane %v1862, 2
        %v1864 = vadd.f32 %v1862, %v1863
        %v1865 = vrot.slane %v1864, 1
        %v1866 = vadd.f32 %v1864, %v1865
        %v1867 = vmul.f32 %v1765, 0.00390625
        %v1868 = vmul.f32 %v1866, 0.00390625
        %v1869 = vmul.f32 %v1867, %v1867
        %v1870 = vsub.f32 %v1868, %v1869
        %v1871 = vmax.f32 %v1870, 0.0
        %v1872 = vsub.f32 %v1571, %v1867
        %v1873 = vsub.f32 %v1574, %v1867
        %v1874 = vsub.f32 %v1579, %v1867
        %v1875 = vsub.f32 %v1582, %v1867
        %v1876 = vsub.f32 %v1587, %v1867
        %v1877 = vsub.f32 %v1590, %v1867
        %v1878 = vsub.f32 %v1595, %v1867
        %v1879 = vsub.f32 %v1598, %v1867
        %v1880 = vsub.f32 %v1603, %v1867
        %v1881 = vsub.f32 %v1606, %v1867
        %v1882 = vsub.f32 %v1611, %v1867
        %v1883 = vsub.f32 %v1614, %v1867
        %v1884 = vsub.f32 %v1619, %v1867
        %v1885 = vsub.f32 %v1622, %v1867
        %v1886 = vsub.f32 %v1627, %v1867
        %v1887 = vsub.f32 %v1630, %v1867
        %v1888 = vsub.f32 %v1635, %v1867
        %v1889 = vsub.f32 %v1638, %v1867
        %v1890 = vsub.f32 %v1643, %v1867
        %v1891 = vsub.f32 %v1646, %v1867
        %v1892 = vsub.f32 %v1651, %v1867
        %v1893 = vsub.f32 %v1654, %v1867
        %v1894 = vsub.f32 %v1659, %v1867
        %v1895 = vsub.f32 %v1662, %v1867
        %v1896 = vsub.f32 %v1667, %v1867
        %v1897 = vsub.f32 %v1670, %v1867
        %v1898 = vsub.f32 %v1675, %v1867
        %v1899 = vsub.f32 %v1678, %v1867
        %v1900 = vsub.f32 %v1683, %v1867
        %v1901 = vsub.f32 %v1686, %v1867
        %v1902 = vsub.f32 %v1691, %v1867
        %v1903 = vsub.f32 %v1694, %v1867
        %v1904 = vadd.f32 %v1871, 1e-05
        %v1905 = vrsqrt.pop %v1904
        %v1906 = vmul.f32 %v1872, %v1905
        %v1907 = vmul.f32 %v1873, %v1905
        %v1908 = vmul.f32 %v1874, %v1905
        %v1909 = vmul.f32 %v1875, %v1905
        %v1910 = vmul.f32 %v1876, %v1905
        %v1911 = vmul.f32 %v1877, %v1905
        %v1912 = vmul.f32 %v1878, %v1905
        %v1913 = vmul.f32 %v1879, %v1905
        %v1914 = vmul.f32 %v1880, %v1905
        %v1915 = vmul.f32 %v1881, %v1905
        %v1916 = vmul.f32 %v1882, %v1905
        %v1917 = vmul.f32 %v1883, %v1905
        %v1918 = vmul.f32 %v1884, %v1905
        %v1919 = vmul.f32 %v1885, %v1905
        %v1920 = vmul.f32 %v1886, %v1905
        %v1921 = vmul.f32 %v1887, %v1905
        %v1922 = vmul.f32 %v1888, %v1905
        %v1923 = vmul.f32 %v1889, %v1905
        %v1924 = vmul.f32 %v1890, %v1905
        %v1925 = vmul.f32 %v1891, %v1905
        %v1926 = vmul.f32 %v1892, %v1905
        %v1927 = vmul.f32 %v1893, %v1905
        %v1928 = vmul.f32 %v1894, %v1905
        %v1929 = vmul.f32 %v1895, %v1905
        %v1930 = vmul.f32 %v1896, %v1905
        %v1931 = vmul.f32 %v1897, %v1905
        %v1932 = vmul.f32 %v1898, %v1905
        %v1933 = vmul.f32 %v1899, %v1905
        %v1934 = vmul.f32 %v1900, %v1905
        %v1935 = vmul.f32 %v1901, %v1905
        %v1936 = vmul.f32 %v1902, %v1905
        %v1937 = vmul.f32 %v1903, %v1905
        %v1938 = vmax.f32 %v1906, 0.0
        %v1939 = vmax.f32 %v1907, 0.0
        %v1940 = vmax.f32 %v1908, 0.0
        %v1941 = vmax.f32 %v1909, 0.0
        %v1942 = vmax.f32 %v1910, 0.0
        %v1943 = vmax.f32 %v1911, 0.0
        %v1944 = vmax.f32 %v1912, 0.0
        %v1945 = vmax.f32 %v1913, 0.0
        %v1946 = vmax.f32 %v1914, 0.0
        %v1947 = vmax.f32 %v1915, 0.0
        %v1948 = vmax.f32 %v1916, 0.0
        %v1949 = vmax.f32 %v1917, 0.0
        %v1950 = vmax.f32 %v1918, 0.0
        %v1951 = vmax.f32 %v1919, 0.0
        %v1952 = vmax.f32 %v1920, 0.0
        %v1953 = vmax.f32 %v1921, 0.0
        %v1954 = vmax.f32 %v1922, 0.0
        %v1955 = vmax.f32 %v1923, 0.0
        %v1956 = vmax.f32 %v1924, 0.0
        %v1957 = vmax.f32 %v1925, 0.0
        %v1958 = vmax.f32 %v1926, 0.0
        %v1959 = vmax.f32 %v1927, 0.0
        %v1960 = vmax.f32 %v1928, 0.0
        %v1961 = vmax.f32 %v1929, 0.0
        %v1962 = vmax.f32 %v1930, 0.0
        %v1963 = vmax.f32 %v1931, 0.0
        %v1964 = vmax.f32 %v1932, 0.0
        %v1965 = vmax.f32 %v1933, 0.0
        %v1966 = vmax.f32 %v1934, 0.0
        %v1967 = vmax.f32 %v1935, 0.0
        %v1968 = vmax.f32 %v1936, 0.0
        %v1969 = vmax.f32 %v1937, 0.0
        %s1970 = scalar_lea.vmem [#allocation3], 24
        %1971 = vst.msk [vmem:[%s1970 + $0x1] sm:$0xff] %vm331, %v1938
        %1972 = vst.msk [vmem:[%s1970 + $0x9] sm:$0xff] %vm331, %v1939
        %1973 = vst.msk [vmem:[%s1970 + $0x19] sm:$0xff] %vm331, %v1940
        %1974 = vst.msk [vmem:[%s1970 + $0x21] sm:$0xff] %vm331, %v1941
        %1975 = vst.msk [vmem:[%s1970 + $0x31] sm:$0xff] %vm331, %v1942
        %1976 = vst.msk [vmem:[%s1970 + $0x39] sm:$0xff] %vm331, %v1943
        %1977 = vst.msk [vmem:[%s1970 + $0x49] sm:$0xff] %vm331, %v1944
        %1978 = vst.msk [vmem:[%s1970 + $0x51] sm:$0xff] %vm331, %v1945
        %1979 = vst.msk [vmem:[%s1970 + $0x61] sm:$0xff] %vm331, %v1946
        %1980 = vst.msk [vmem:[%s1970 + $0x69] sm:$0xff] %vm331, %v1947
        %1981 = vst.msk [vmem:[%s1970 + $0x79] sm:$0xff] %vm331, %v1948
        %1982 = vst.msk [vmem:[%s1970 + $0x81] sm:$0xff] %vm331, %v1949
        %1983 = vst.msk [vmem:[%s1970 + $0x91] sm:$0xff] %vm331, %v1950
        %1984 = vst.msk [vmem:[%s1970 + $0x99] sm:$0xff] %vm331, %v1951
        %1985 = vst.msk [vmem:[%s1970 + $0xa9] sm:$0xff] %vm331, %v1952
        %1986 = vst.msk [vmem:[%s1970 + $0xb1] sm:$0xff] %vm331, %v1953
        %1987 = vst.msk [vmem:[%s1970 + $0xc1] sm:$0xff] %vm331, %v1954
        %1988 = vst.msk [vmem:[%s1970 + $0xc9] sm:$0xff] %vm331, %v1955
        %1989 = vst.msk [vmem:[%s1970 + $0xd9] sm:$0xff] %vm331, %v1956
        %1990 = vst.msk [vmem:[%s1970 + $0xe1] sm:$0xff] %vm331, %v1957
        %1991 = vst.msk [vmem:[%s1970 + $0xf1] sm:$0xff] %vm331, %v1958
        %1992 = vst.msk [vmem:[%s1970 + $0xf9] sm:$0xff] %vm331, %v1959
        %1993 = vst.msk [vmem:[%s1970 + $0x109] sm:$0xff] %vm331, %v1960
        %1994 = vst.msk [vmem:[%s1970 + $0x111] sm:$0xff] %vm331, %v1961
        %1995 = vst.msk [vmem:[%s1970 + $0x121] sm:$0xff] %vm331, %v1962
        %1996 = vst.msk [vmem:[%s1970 + $0x129] sm:$0xff] %vm331, %v1963
        %1997 = vst.msk [vmem:[%s1970 + $0x139] sm:$0xff] %vm331, %v1964
        %1998 = vst.msk [vmem:[%s1970 + $0x141] sm:$0xff] %vm331, %v1965
        %1999 = vst.msk [vmem:[%s1970 + $0x151] sm:$0xff] %vm331, %v1966
        %2000 = vst.msk [vmem:[%s1970 + $0x159] sm:$0xff] %vm331, %v1967
        %2001 = vst.msk [vmem:[%s1970 + $0x169] sm:$0xff] %vm331, %v1968
        %2002 = vst.msk [vmem:[%s1970 + $0x171] sm:$0xff] %vm331, %v1969
        %2003 = vst.msk [vmem:[#allocation3 + $0x1] sm:$0xff] %vm331, %v1940
        %2004 = vst.msk [vmem:[#allocation3 + $0x9] sm:$0xff] %vm331, %v1941
        %s2005 = scalar_lea.vmem [#allocation3], 408
        %2006 = vst.msk [vmem:[%s2005 + $0x1] sm:$0xff] %vm331, %v1966
        %2007 = vst.msk [vmem:[%s2005 + $0x9] sm:$0xff] %vm331, %v1967
        %v2008 = vld [vmem:[#allocation3 + $0x2] sm:$0x1]
        %v2009 = vld [vmem:[#allocation3 + $0x1a] sm:$0x1]
        %v2010 = vld [vmem:[#allocation3 + $0x32] sm:$0x1]
        %v2011 = vld [vmem:[#allocation3 + $0x4a] sm:$0x1]
        %v2012 = vld [vmem:[#allocation3 + $0x62] sm:$0x1]
        %v2013 = vld [vmem:[#allocation3 + $0x7a] sm:$0x1]
        %v2014 = vld [vmem:[#allocation3 + $0x92] sm:$0x1]
        %v2015 = vld [vmem:[#allocation3 + $0xaa] sm:$0x1]
        %v2016 = vld [vmem:[#allocation3 + $0xc2] sm:$0x1]
        %v2017 = vld [vmem:[#allocation3 + $0xda] sm:$0x1]
        %v2018 = vld [vmem:[#allocation3 + $0xf2] sm:$0x1]
        %v2019 = vld [vmem:[#allocation3 + $0x10a] sm:$0x1]
        %v2020 = vld [vmem:[#allocation3 + $0x122] sm:$0x1]
        %v2021 = vld [vmem:[#allocation3 + $0x13a] sm:$0x1]
        %v2022 = vld [vmem:[#allocation3 + $0x152] sm:$0x1]
        %v2023 = vld [vmem:[#allocation3 + $0x16a] sm:$0x1]
        %v2024 = vld [vmem:[#allocation3 + $0x182] sm:$0x1]
        %v2025 = vld [vmem:[#allocation3 + $0x19a] sm:$0x1]
        %vm2026 = vcmask 253952
        %2027 = vst.msk [vmem:[#allocation3] sm:$0x1] %vm2026, %v2008
        %2028 = vst.msk [vmem:[#allocation3 + $0x18] sm:$0x1] %vm2026, %v2009
        %2029 = vst.msk [vmem:[#allocation3 + $0x30] sm:$0x1] %vm2026, %v2010
        %2030 = vst.msk [vmem:[#allocation3 + $0x48] sm:$0x1] %vm2026, %v2011
        %2031 = vst.msk [vmem:[#allocation3 + $0x60] sm:$0x1] %vm2026, %v2012
        %2032 = vst.msk [vmem:[#allocation3 + $0x78] sm:$0x1] %vm2026, %v2013
        %2033 = vst.msk [vmem:[#allocation3 + $0x90] sm:$0x1] %vm2026, %v2014
        %2034 = vst.msk [vmem:[#allocation3 + $0xa8] sm:$0x1] %vm2026, %v2015
        %2035 = vst.msk [vmem:[#allocation3 + $0xc0] sm:$0x1] %vm2026, %v2016
        %2036 = vst.msk [vmem:[#allocation3 + $0xd8] sm:$0x1] %vm2026, %v2017
        %2037 = vst.msk [vmem:[#allocation3 + $0xf0] sm:$0x1] %vm2026, %v2018
        %2038 = vst.msk [vmem:[#allocation3 + $0x108] sm:$0x1] %vm2026, %v2019
        %2039 = vst.msk [vmem:[#allocation3 + $0x120] sm:$0x1] %vm2026, %v2020
        %2040 = vst.msk [vmem:[#allocation3 + $0x138] sm:$0x1] %vm2026, %v2021
        %2041 = vst.msk [vmem:[#allocation3 + $0x150] sm:$0x1] %vm2026, %v2022
        %2042 = vst.msk [vmem:[#allocation3 + $0x168] sm:$0x1] %vm2026, %v2023
        %2043 = vst.msk [vmem:[#allocation3 + $0x180] sm:$0x1] %vm2026, %v2024
        %2044 = vst.msk [vmem:[#allocation3 + $0x198] sm:$0x1] %vm2026, %v2025
        %v2045 = vld [vmem:[#allocation3 + $0xf] sm:$0x1]
        %v2046 = vld [vmem:[#allocation3 + $0x27] sm:$0x1]
        %v2047 = vld [vmem:[#allocation3 + $0x3f] sm:$0x1]
        %v2048 = vld [vmem:[#allocation3 + $0x57] sm:$0x1]
        %v2049 = vld [vmem:[#allocation3 + $0x6f] sm:$0x1]
        %v2050 = vld [vmem:[#allocation3 + $0x87] sm:$0x1]
        %v2051 = vld [vmem:[#allocation3 + $0x9f] sm:$0x1]
        %v2052 = vld [vmem:[#allocation3 + $0xb7] sm:$0x1]
        %v2053 = vld [vmem:[#allocation3 + $0xcf] sm:$0x1]
        %v2054 = vld [vmem:[#allocation3 + $0xe7] sm:$0x1]
        %v2055 = vld [vmem:[#allocation3 + $0xff] sm:$0x1]
        %v2056 = vld [vmem:[#allocation3 + $0x117] sm:$0x1]
        %v2057 = vld [vmem:[#allocation3 + $0x12f] sm:$0x1]
        %v2058 = vld [vmem:[#allocation3 + $0x147] sm:$0x1]
        %v2059 = vld [vmem:[#allocation3 + $0x15f] sm:$0x1]
        %v2060 = vld [vmem:[#allocation3 + $0x177] sm:$0x1]
        %v2061 = vld [vmem:[#allocation3 + $0x18f] sm:$0x1]
        %v2062 = vld [vmem:[#allocation3 + $0x1a7] sm:$0x1]
        %2063 = vst.msk [vmem:[#allocation3 + $0x11] sm:$0x1] %vm2026, %v2045
        %2064 = vst.msk [vmem:[#allocation3 + $0x29] sm:$0x1] %vm2026, %v2046
        %2065 = vst.msk [vmem:[#allocation3 + $0x41] sm:$0x1] %vm2026, %v2047
        %2066 = vst.msk [vmem:[#allocation3 + $0x59] sm:$0x1] %vm2026, %v2048
        %2067 = vst.msk [vmem:[#allocation3 + $0x71] sm:$0x1] %vm2026, %v2049
        %2068 = vst.msk [vmem:[#allocation3 + $0x89] sm:$0x1] %vm2026, %v2050
        %2069 = vst.msk [vmem:[#allocation3 + $0xa1] sm:$0x1] %vm2026, %v2051
        %2070 = vst.msk [vmem:[#allocation3 + $0xb9] sm:$0x1] %vm2026, %v2052
        %2071 = vst.msk [vmem:[#allocation3 + $0xd1] sm:$0x1] %vm2026, %v2053
        %2072 = vst.msk [vmem:[#allocation3 + $0xe9] sm:$0x1] %vm2026, %v2054
        %2073 = vst.msk [vmem:[#allocation3 + $0x101] sm:$0x1] %vm2026, %v2055
        %2074 = vst.msk [vmem:[#allocation3 + $0x119] sm:$0x1] %vm2026, %v2056
        %2075 = vst.msk [vmem:[#allocation3 + $0x131] sm:$0x1] %vm2026, %v2057
        %2076 = vst.msk [vmem:[#allocation3 + $0x149] sm:$0x1] %vm2026, %v2058
        %2077 = vst.msk [vmem:[#allocation3 + $0x161] sm:$0x1] %vm2026, %v2059
        %2078 = vst.msk [vmem:[#allocation3 + $0x179] sm:$0x1] %vm2026, %v2060
        %2079 = vst.msk [vmem:[#allocation3 + $0x191] sm:$0x1] %vm2026, %v2061
        %2080 = vst.msk [vmem:[#allocation3 + $0x1a9] sm:$0x1] %vm2026, %v2062
        %v2081 = vld [vmem:[#allocation3] sm:$0xff]
        %v2082 = vld [vmem:[#allocation3 + $0x8] sm:$0xff]
        %v2083 = vld [vmem:[#allocation3 + $0x10] sm:$0x3]
        %v2084 = vld [vmem:[#allocation3 + $0x18] sm:$0xff]
        %v2085 = vld [vmem:[#allocation3 + $0x20] sm:$0xff]
        %v2086 = vld [vmem:[#allocation3 + $0x28] sm:$0x3]
        %v2087 = vld [vmem:[#allocation3 + $0x30] sm:$0xff]
        %v2088 = vld [vmem:[#allocation3 + $0x38] sm:$0xff]
        %v2089 = vld [vmem:[#allocation3 + $0x40] sm:$0x3]
        %v2090 = vld [vmem:[#allocation3 + $0x48] sm:$0xff]
        %v2091 = vld [vmem:[#allocation3 + $0x50] sm:$0xff]
        %v2092 = vld [vmem:[#allocation3 + $0x58] sm:$0x3]
        %v2093 = vld [vmem:[#allocation3 + $0x60] sm:$0xff]
        %v2094 = vld [vmem:[#allocation3 + $0x68] sm:$0xff]
        %v2095 = vld [vmem:[#allocation3 + $0x70] sm:$0x3]
        %v2096 = vld [vmem:[#allocation3 + $0x78] sm:$0xff]
        %v2097 = vld [vmem:[#allocation3 + $0x80] sm:$0xff]
        %v2098 = vld [vmem:[#allocation3 + $0x88] sm:$0x3]
        %v2099 = vld [vmem:[#allocation3 + $0x90] sm:$0xff]
        %v2100 = vld [vmem:[#allocation3 + $0x98] sm:$0xff]
        %v2101 = vld [vmem:[#allocation3 + $0xa0] sm:$0x3]
        %v2102 = vld [vmem:[#allocation3 + $0xa8] sm:$0xff]
        %v2103 = vld [vmem:[#allocation3 + $0xb0] sm:$0xff]
        %v2104 = vld [vmem:[#allocation3 + $0xb8] sm:$0x3]
        %v2105 = vld [vmem:[#allocation3 + $0xc0] sm:$0xff]
        %v2106 = vld [vmem:[#allocation3 + $0xc8] sm:$0xff]
        %v2107 = vld [vmem:[#allocation3 + $0xd0] sm:$0x3]
        %v2108 = vld [vmem:[#allocation3 + $0xd8] sm:$0xff]
        %v2109 = vld [vmem:[#allocation3 + $0xe0] sm:$0xff]
        %v2110 = vld [vmem:[#allocation3 + $0xe8] sm:$0x3]
        %v2111 = vld [vmem:[#allocation3 + $0xf0] sm:$0xff]
        %v2112 = vld [vmem:[#allocation3 + $0xf8] sm:$0xff]
        %v2113 = vld [vmem:[#allocation3 + $0x100] sm:$0x3]
        %v2114 = vld [vmem:[#allocation3 + $0x108] sm:$0xff]
        %v2115 = vld [vmem:[#allocation3 + $0x110] sm:$0xff]
        %v2116 = vld [vmem:[#allocation3 + $0x118] sm:$0x3]
        %v2117 = vld [vmem:[#allocation3 + $0x120] sm:$0xff]
        %v2118 = vld [vmem:[#allocation3 + $0x128] sm:$0xff]
        %v2119 = vld [vmem:[#allocation3 + $0x130] sm:$0x3]
        %v2120 = vld [vmem:[#allocation3 + $0x138] sm:$0xff]
        %v2121 = vld [vmem:[#allocation3 + $0x140] sm:$0xff]
        %v2122 = vld [vmem:[#allocation3 + $0x148] sm:$0x3]
        %v2123 = vld [vmem:[#allocation3 + $0x150] sm:$0xff]
        %v2124 = vld [vmem:[#allocation3 + $0x158] sm:$0xff]
        %v2125 = vld [vmem:[#allocation3 + $0x160] sm:$0x3]
        %v2126 = vld [vmem:[#allocation3 + $0x168] sm:$0xff]
        %v2127 = vld [vmem:[#allocation3 + $0x170] sm:$0xff]
        %v2128 = vld [vmem:[#allocation3 + $0x178] sm:$0x3]
        %v2129 = vld [vmem:[#allocation3 + $0x180] sm:$0xff]
        %v2130 = vld [vmem:[#allocation3 + $0x188] sm:$0xff]
        %v2131 = vld [vmem:[#allocation3 + $0x190] sm:$0x3]
        %v2132 = vld [vmem:[#allocation3 + $0x198] sm:$0xff]
        %v2133 = vld [vmem:[#allocation3 + $0x1a0] sm:$0xff]
        %v2134 = vld [vmem:[#allocation3 + $0x1a8] sm:$0x3]
        %v2135 = vld [vmem:[%s3] sm:$0xf]
        %v2136 = vld [vmem:[%s3 + $0x4] sm:$0xf]
        %v2137 = vld [vmem:[%s3 + $0x8] sm:$0xf]
        %v2138 = vld [vmem:[%s3 + $0xc] sm:$0xf]
        %v2139 = vld [vmem:[%s3 + $0x10] sm:$0xf]
        %v2140 = vld [vmem:[%s3 + $0x14] sm:$0xf]
        %v2141 = vld [vmem:[%s3 + $0x18] sm:$0xf]
        %v2142 = vld [vmem:[%s3 + $0x1c] sm:$0xf]
        %v2143 = vld [vmem:[%s3 + $0x20] sm:$0xf]
        %v2144 = vld [vmem:[%s3 + $0x24] sm:$0xf]
        %v2145 = vld [vmem:[%s3 + $0x28] sm:$0xf]
        %v2146 = vld [vmem:[%s3 + $0x2c] sm:$0xf]
        %v2147 = vld [vmem:[%s3 + $0x30] sm:$0xf]
        %v2148 = vld [vmem:[%s3 + $0x34] sm:$0xf]
        %v2149 = vld [vmem:[%s3 + $0x38] sm:$0xf]
        %v2150 = vld [vmem:[%s3 + $0x3c] sm:$0xf]
        %v2151 = vld [vmem:[%s3 + $0x40] sm:$0xf]
        %v2152 = vld [vmem:[%s3 + $0x44] sm:$0xf]
        %v2153 = vld [vmem:[%s3 + $0x48] sm:$0xf]
        %v2154 = vld [vmem:[%s3 + $0x4c] sm:$0xf]
        %v2155 = vld [vmem:[%s3 + $0x50] sm:$0xf]
        %v2156 = vld [vmem:[%s3 + $0x54] sm:$0xf]
        %v2157 = vld [vmem:[%s3 + $0x58] sm:$0xf]
        %v2158 = vld [vmem:[%s3 + $0x5c] sm:$0xf]
        %v2159 = vld [vmem:[%s3 + $0x60] sm:$0xf]
        %v2160 = vld [vmem:[%s3 + $0x64] sm:$0xf]
        %v2161 = vld [vmem:[%s3 + $0x68] sm:$0xf]
        %v2162 = vld [vmem:[%s3 + $0x6c] sm:$0xf]
        %v2163 = vld [vmem:[%s3 + $0x70] sm:$0xf]
        %v2164 = vld [vmem:[%s3 + $0x74] sm:$0xf]
        %v2165 = vld [vmem:[%s3 + $0x78] sm:$0xf]
        %v2166 = vld [vmem:[%s3 + $0x7c] sm:$0xf]
        %v2167 = vld [vmem:[%s3 + $0x80] sm:$0xf]
        %v2168 = vld [vmem:[%s3 + $0x84] sm:$0xf]
        %v2169 = vld [vmem:[%s3 + $0x88] sm:$0xf]
        %v2170 = vld [vmem:[%s3 + $0x8c] sm:$0xf]
        %v2171 = vld [vmem:[%s4] sm:$0x1]
        %v2172 = vpack.c.bf16 %v2082, %v2081
        %v2173 = vpack.c.bf16 %v2085, %v2084
        %v2174 = vpack.c.bf16 %v2088, %v2087
        %v2175 = vpack.c.bf16 %v2091, %v2090
        %v2176 = vpack.c.bf16 %v2094, %v2093
        %v2177 = vpack.c.bf16 %v2097, %v2096
        %v2178 = vpack.c.bf16 %v2100, %v2099
        %v2179 = vpack.c.bf16 %v2103, %v2102
        %v2180 = vpack.c.bf16 %v2106, %v2105
        %v2181 = vpack.c.bf16 %v2109, %v2108
        %v2182 = vpack.c.bf16 %v2112, %v2111
        %v2183 = vpack.c.bf16 %v2115, %v2114
        %v2184 = vpack.c.bf16 %v2118, %v2117
        %v2185 = vpack.c.bf16 %v2121, %v2120
        %v2186 = vpack.c.bf16 %v2124, %v2123
        %v2187 = vpack.c.bf16 %v2127, %v2126
        %2188 = vst.msk [vmem:[#allocation2] sm:$0xff] %vm331, %v2172
        %2189 = vst.msk [vmem:[#allocation2 + $0x18] sm:$0xff] %vm331, %v2173
        %2190 = vst.msk [vmem:[#allocation2 + $0x30] sm:$0xff] %vm331, %v2174
        %2191 = vst.msk [vmem:[#allocation2 + $0x48] sm:$0xff] %vm331, %v2175
        %2192 = vst.msk [vmem:[#allocation2 + $0x60] sm:$0xff] %vm331, %v2176
        %2193 = vst.msk [vmem:[#allocation2 + $0x78] sm:$0xff] %vm331, %v2177
        %2194 = vst.msk [vmem:[#allocation2 + $0x90] sm:$0xff] %vm331, %v2178
        %2195 = vst.msk [vmem:[#allocation2 + $0xa8] sm:$0xff] %vm331, %v2179
        %2196 = vst.msk [vmem:[#allocation2 + $0xc0] sm:$0xff] %vm331, %v2180
        %2197 = vst.msk [vmem:[#allocation2 + $0xd8] sm:$0xff] %vm331, %v2181
        %2198 = vst.msk [vmem:[#allocation2 + $0xf0] sm:$0xff] %vm331, %v2182
        %2199 = vst.msk [vmem:[#allocation2 + $0x108] sm:$0xff] %vm331, %v2183
        %2200 = vst.msk [vmem:[#allocation2 + $0x120] sm:$0xff] %vm331, %v2184
        %2201 = vst.msk [vmem:[#allocation2 + $0x138] sm:$0xff] %vm331, %v2185
        %2202 = vst.msk [vmem:[#allocation2 + $0x150] sm:$0xff] %vm331, %v2186
        %2203 = vst.msk [vmem:[#allocation2 + $0x168] sm:$0xff] %vm331, %v2187
        %v2252 = vrot.slane %v2081, 1
        %v2253 = vrot.slane %v2082, 1
        %v2254 = vsel %vm396, %v2252, %v2253
        %v2255 = vrot.slane %v2083, 1
        %v2256 = vsel %vm396, %v2253, %v2255
        %v2257 = vrot.slane %v2084, 1
        %v2258 = vrot.slane %v2085, 1
        %v2259 = vsel %vm396, %v2257, %v2258
        %v2260 = vrot.slane %v2086, 1
        %v2261 = vsel %vm396, %v2258, %v2260
        %v2262 = vrot.slane %v2087, 1
        %v2263 = vrot.slane %v2088, 1
        %v2264 = vsel %vm396, %v2262, %v2263
        %v2265 = vrot.slane %v2089, 1
        %v2266 = vsel %vm396, %v2263, %v2265
        %v2267 = vrot.slane %v2090, 1
        %v2268 = vrot.slane %v2091, 1
        %v2269 = vsel %vm396, %v2267, %v2268
        %v2270 = vrot.slane %v2092, 1
        %v2271 = vsel %vm396, %v2268, %v2270
        %v2272 = vrot.slane %v2093, 1
        %v2273 = vrot.slane %v2094, 1
        %v2274 = vsel %vm396, %v2272, %v2273
        %v2275 = vrot.slane %v2095, 1
        %v2276 = vsel %vm396, %v2273, %v2275
        %v2277 = vrot.slane %v2096, 1
        %v2278 = vrot.slane %v2097, 1
        %v2279 = vsel %vm396, %v2277, %v2278
        %v2280 = vrot.slane %v2098, 1
        %v2281 = vsel %vm396, %v2278, %v2280
        %v2282 = vrot.slane %v2099, 1
        %v2283 = vrot.slane %v2100, 1
        %v2284 = vsel %vm396, %v2282, %v2283
        %v2285 = vrot.slane %v2101, 1
        %v2286 = vsel %vm396, %v2283, %v2285
        %v2287 = vrot.slane %v2102, 1
        %v2288 = vrot.slane %v2103, 1
        %v2289 = vsel %vm396, %v2287, %v2288
        %v2290 = vrot.slane %v2104, 1
        %v2291 = vsel %vm396, %v2288, %v2290
        %v2292 = vrot.slane %v2105, 1
        %v2293 = vrot.slane %v2106, 1
        %v2294 = vsel %vm396, %v2292, %v2293
        %v2295 = vrot.slane %v2107, 1
        %v2296 = vsel %vm396, %v2293, %v2295
        %v2297 = vrot.slane %v2108, 1
        %v2298 = vrot.slane %v2109, 1
        %v2299 = vsel %vm396, %v2297, %v2298
        %v2300 = vrot.slane %v2110, 1
        %v2301 = vsel %vm396, %v2298, %v2300
        %v2302 = vrot.slane %v2111, 1
        %v2303 = vrot.slane %v2112, 1
        %v2304 = vsel %vm396, %v2302, %v2303
        %v2305 = vrot.slane %v2113, 1
        %v2306 = vsel %vm396, %v2303, %v2305
        %v2307 = vrot.slane %v2114, 1
        %v2308 = vrot.slane %v2115, 1
        %v2309 = vsel %vm396, %v2307, %v2308
        %v2310 = vrot.slane %v2116, 1
        %v2311 = vsel %vm396, %v2308, %v2310
        %v2312 = vrot.slane %v2117, 1
        %v2313 = vrot.slane %v2118, 1
        %v2314 = vsel %vm396, %v2312, %v2313
        %v2315 = vrot.slane %v2119, 1
        %v2316 = vsel %vm396, %v2313, %v2315
        %v2317 = vrot.slane %v2120, 1
        %v2318 = vrot.slane %v2121, 1
        %v2319 = vsel %vm396, %v2317, %v2318
        %v2320 = vrot.slane %v2122, 1
        %v2321 = vsel %vm396, %v2318, %v2320
        %v2322 = vrot.slane %v2123, 1
        %v2323 = vrot.slane %v2124, 1
        %v2324 = vsel %vm396, %v2322, %v2323
        %v2325 = vrot.slane %v2125, 1
        %v2326 = vsel %vm396, %v2323, %v2325
        %v2327 = vrot.slane %v2126, 1
        %v2328 = vrot.slane %v2127, 1
        %v2329 = vsel %vm396, %v2327, %v2328
        %v2330 = vrot.slane %v2128, 1
        %v2331 = vsel %vm396, %v2328, %v2330
        %v2364 = vpack.c.bf16 %v2256, %v2254
        %v2365 = vpack.c.bf16 %v2261, %v2259
        %v2366 = vpack.c.bf16 %v2266, %v2264
        %v2367 = vpack.c.bf16 %v2271, %v2269
        %v2368 = vpack.c.bf16 %v2276, %v2274
        %v2369 = vpack.c.bf16 %v2281, %v2279
        %v2370 = vpack.c.bf16 %v2286, %v2284
        %v2371 = vpack.c.bf16 %v2291, %v2289
        %v2372 = vpack.c.bf16 %v2296, %v2294
        %v2373 = vpack.c.bf16 %v2301, %v2299
        %v2374 = vpack.c.bf16 %v2306, %v2304
        %v2375 = vpack.c.bf16 %v2311, %v2309
        %v2376 = vpack.c.bf16 %v2316, %v2314
        %v2377 = vpack.c.bf16 %v2321, %v2319
        %v2378 = vpack.c.bf16 %v2326, %v2324
        %v2379 = vpack.c.bf16 %v2331, %v2329
        %2396 = vrot.lane.b32.xlu0 %v2364, 32
        %v2397 = vpop.permute.xlu0 %2396
        %2398 = vrot.lane.b32.xlu0 %v2365, 32
        %v2399 = vpop.permute.xlu0 %2398
        %2400 = vrot.lane.b32.xlu0 %v2366, 32
        %v2401 = vpop.permute.xlu0 %2400
        %2402 = vrot.lane.b32.xlu0 %v2367, 32
        %v2403 = vpop.permute.xlu0 %2402
        %2404 = vrot.lane.b32.xlu0 %v2368, 32
        %v2405 = vpop.permute.xlu0 %2404
        %2406 = vrot.lane.b32.xlu0 %v2369, 32
        %v2407 = vpop.permute.xlu0 %2406
        %2408 = vrot.lane.b32.xlu0 %v2370, 32
        %v2409 = vpop.permute.xlu0 %2408
        %2410 = vrot.lane.b32.xlu0 %v2371, 32
        %v2411 = vpop.permute.xlu0 %2410
        %2412 = vrot.lane.b32.xlu0 %v2372, 32
        %v2413 = vpop.permute.xlu0 %2412
        %2414 = vrot.lane.b32.xlu0 %v2373, 32
        %v2415 = vpop.permute.xlu0 %2414
        %2416 = vrot.lane.b32.xlu0 %v2374, 32
        %v2417 = vpop.permute.xlu0 %2416
        %2418 = vrot.lane.b32.xlu0 %v2375, 32
        %v2419 = vpop.permute.xlu0 %2418
        %2420 = vrot.lane.b32.xlu0 %v2376, 32
        %v2421 = vpop.permute.xlu0 %2420
        %2422 = vrot.lane.b32.xlu0 %v2377, 32
        %v2423 = vpop.permute.xlu0 %2422
        %2424 = vrot.lane.b32.xlu0 %v2378, 32
        %v2425 = vpop.permute.xlu0 %2424
        %2426 = vrot.lane.b32.xlu0 %v2379, 32
        %v2427 = vpop.permute.xlu0 %2426
        %2444 = vst.msk [vmem:[#allocation2] sm:$0xff] %vm589, %v2397
        %2445 = vst.msk [vmem:[#allocation2 + $0x18] sm:$0xff] %vm589, %v2399
        %2446 = vst.msk [vmem:[#allocation2 + $0x30] sm:$0xff] %vm589, %v2401
        %2447 = vst.msk [vmem:[#allocation2 + $0x48] sm:$0xff] %vm589, %v2403
        %2448 = vst.msk [vmem:[#allocation2 + $0x60] sm:$0xff] %vm589, %v2405
        %2449 = vst.msk [vmem:[#allocation2 + $0x78] sm:$0xff] %vm589, %v2407
        %2450 = vst.msk [vmem:[#allocation2 + $0x90] sm:$0xff] %vm589, %v2409
        %2451 = vst.msk [vmem:[#allocation2 + $0xa8] sm:$0xff] %vm589, %v2411
        %2452 = vst.msk [vmem:[#allocation2 + $0xc0] sm:$0xff] %vm589, %v2413
        %2453 = vst.msk [vmem:[#allocation2 + $0xd8] sm:$0xff] %vm589, %v2415
        %2454 = vst.msk [vmem:[#allocation2 + $0xf0] sm:$0xff] %vm589, %v2417
        %2455 = vst.msk [vmem:[#allocation2 + $0x108] sm:$0xff] %vm589, %v2419
        %2456 = vst.msk [vmem:[#allocation2 + $0x120] sm:$0xff] %vm589, %v2421
        %2457 = vst.msk [vmem:[#allocation2 + $0x138] sm:$0xff] %vm589, %v2423
        %2458 = vst.msk [vmem:[#allocation2 + $0x150] sm:$0xff] %vm589, %v2425
        %2459 = vst.msk [vmem:[#allocation2 + $0x168] sm:$0xff] %vm589, %v2427
        %v2460 = vrot.slane %v2081, 2
        %v2461 = vrot.slane %v2082, 2
        %v2462 = vsel %vm606, %v2460, %v2461
        %v2463 = vrot.slane %v2083, 2
        %v2464 = vsel %vm606, %v2461, %v2463
        %v2465 = vrot.slane %v2084, 2
        %v2466 = vrot.slane %v2085, 2
        %v2467 = vsel %vm606, %v2465, %v2466
        %v2468 = vrot.slane %v2086, 2
        %v2469 = vsel %vm606, %v2466, %v2468
        %v2470 = vrot.slane %v2087, 2
        %v2471 = vrot.slane %v2088, 2
        %v2472 = vsel %vm606, %v2470, %v2471
        %v2473 = vrot.slane %v2089, 2
        %v2474 = vsel %vm606, %v2471, %v2473
        %v2475 = vrot.slane %v2090, 2
        %v2476 = vrot.slane %v2091, 2
        %v2477 = vsel %vm606, %v2475, %v2476
        %v2478 = vrot.slane %v2092, 2
        %v2479 = vsel %vm606, %v2476, %v2478
        %v2480 = vrot.slane %v2093, 2
        %v2481 = vrot.slane %v2094, 2
        %v2482 = vsel %vm606, %v2480, %v2481
        %v2483 = vrot.slane %v2095, 2
        %v2484 = vsel %vm606, %v2481, %v2483
        %v2485 = vrot.slane %v2096, 2
        %v2486 = vrot.slane %v2097, 2
        %v2487 = vsel %vm606, %v2485, %v2486
        %v2488 = vrot.slane %v2098, 2
        %v2489 = vsel %vm606, %v2486, %v2488
        %v2490 = vrot.slane %v2099, 2
        %v2491 = vrot.slane %v2100, 2
        %v2492 = vsel %vm606, %v2490, %v2491
        %v2493 = vrot.slane %v2101, 2
        %v2494 = vsel %vm606, %v2491, %v2493
        %v2495 = vrot.slane %v2102, 2
        %v2496 = vrot.slane %v2103, 2
        %v2497 = vsel %vm606, %v2495, %v2496
        %v2498 = vrot.slane %v2104, 2
        %v2499 = vsel %vm606, %v2496, %v2498
        %v2500 = vrot.slane %v2105, 2
        %v2501 = vrot.slane %v2106, 2
        %v2502 = vsel %vm606, %v2500, %v2501
        %v2503 = vrot.slane %v2107, 2
        %v2504 = vsel %vm606, %v2501, %v2503
        %v2505 = vrot.slane %v2108, 2
        %v2506 = vrot.slane %v2109, 2
        %v2507 = vsel %vm606, %v2505, %v2506
        %v2508 = vrot.slane %v2110, 2
        %v2509 = vsel %vm606, %v2506, %v2508
        %v2510 = vrot.slane %v2111, 2
        %v2511 = vrot.slane %v2112, 2
        %v2512 = vsel %vm606, %v2510, %v2511
        %v2513 = vrot.slane %v2113, 2
        %v2514 = vsel %vm606, %v2511, %v2513
        %v2515 = vrot.slane %v2114, 2
        %v2516 = vrot.slane %v2115, 2
        %v2517 = vsel %vm606, %v2515, %v2516
        %v2518 = vrot.slane %v2116, 2
        %v2519 = vsel %vm606, %v2516, %v2518
        %v2520 = vrot.slane %v2117, 2
        %v2521 = vrot.slane %v2118, 2
        %v2522 = vsel %vm606, %v2520, %v2521
        %v2523 = vrot.slane %v2119, 2
        %v2524 = vsel %vm606, %v2521, %v2523
        %v2525 = vrot.slane %v2120, 2
        %v2526 = vrot.slane %v2121, 2
        %v2527 = vsel %vm606, %v2525, %v2526
        %v2528 = vrot.slane %v2122, 2
        %v2529 = vsel %vm606, %v2526, %v2528
        %v2530 = vrot.slane %v2123, 2
        %v2531 = vrot.slane %v2124, 2
        %v2532 = vsel %vm606, %v2530, %v2531
        %v2533 = vrot.slane %v2125, 2
        %v2534 = vsel %vm606, %v2531, %v2533
        %v2535 = vrot.slane %v2126, 2
        %v2536 = vrot.slane %v2127, 2
        %v2537 = vsel %vm606, %v2535, %v2536
        %v2538 = vrot.slane %v2128, 2
        %v2539 = vsel %vm606, %v2536, %v2538
        %v2572 = vpack.c.bf16 %v2464, %v2462
        %v2573 = vpack.c.bf16 %v2469, %v2467
        %v2574 = vpack.c.bf16 %v2474, %v2472
        %v2575 = vpack.c.bf16 %v2479, %v2477
        %v2576 = vpack.c.bf16 %v2484, %v2482
        %v2577 = vpack.c.bf16 %v2489, %v2487
        %v2578 = vpack.c.bf16 %v2494, %v2492
        %v2579 = vpack.c.bf16 %v2499, %v2497
        %v2580 = vpack.c.bf16 %v2504, %v2502
        %v2581 = vpack.c.bf16 %v2509, %v2507
        %v2582 = vpack.c.bf16 %v2514, %v2512
        %v2583 = vpack.c.bf16 %v2519, %v2517
        %v2584 = vpack.c.bf16 %v2524, %v2522
        %v2585 = vpack.c.bf16 %v2529, %v2527
        %v2586 = vpack.c.bf16 %v2534, %v2532
        %v2587 = vpack.c.bf16 %v2539, %v2537
        %2604 = vrot.lane.b32.xlu0 %v2572, 64
        %v2605 = vpop.permute.xlu0 %2604
        %2606 = vrot.lane.b32.xlu0 %v2573, 64
        %v2607 = vpop.permute.xlu0 %2606
        %2608 = vrot.lane.b32.xlu0 %v2574, 64
        %v2609 = vpop.permute.xlu0 %2608
        %2610 = vrot.lane.b32.xlu0 %v2575, 64
        %v2611 = vpop.permute.xlu0 %2610
        %2612 = vrot.lane.b32.xlu0 %v2576, 64
        %v2613 = vpop.permute.xlu0 %2612
        %2614 = vrot.lane.b32.xlu0 %v2577, 64
        %v2615 = vpop.permute.xlu0 %2614
        %2616 = vrot.lane.b32.xlu0 %v2578, 64
        %v2617 = vpop.permute.xlu0 %2616
        %2618 = vrot.lane.b32.xlu0 %v2579, 64
        %v2619 = vpop.permute.xlu0 %2618
        %2620 = vrot.lane.b32.xlu0 %v2580, 64
        %v2621 = vpop.permute.xlu0 %2620
        %2622 = vrot.lane.b32.xlu0 %v2581, 64
        %v2623 = vpop.permute.xlu0 %2622
        %2624 = vrot.lane.b32.xlu0 %v2582, 64
        %v2625 = vpop.permute.xlu0 %2624
        %2626 = vrot.lane.b32.xlu0 %v2583, 64
        %v2627 = vpop.permute.xlu0 %2626
        %2628 = vrot.lane.b32.xlu0 %v2584, 64
        %v2629 = vpop.permute.xlu0 %2628
        %2630 = vrot.lane.b32.xlu0 %v2585, 64
        %v2631 = vpop.permute.xlu0 %2630
        %2632 = vrot.lane.b32.xlu0 %v2586, 64
        %v2633 = vpop.permute.xlu0 %2632
        %2634 = vrot.lane.b32.xlu0 %v2587, 64
        %v2635 = vpop.permute.xlu0 %2634
        %2652 = vst.msk [vmem:[#allocation2] sm:$0xff] %vm799, %v2605
        %2653 = vst.msk [vmem:[#allocation2 + $0x18] sm:$0xff] %vm799, %v2607
        %2654 = vst.msk [vmem:[#allocation2 + $0x30] sm:$0xff] %vm799, %v2609
        %2655 = vst.msk [vmem:[#allocation2 + $0x48] sm:$0xff] %vm799, %v2611
        %2656 = vst.msk [vmem:[#allocation2 + $0x60] sm:$0xff] %vm799, %v2613
        %2657 = vst.msk [vmem:[#allocation2 + $0x78] sm:$0xff] %vm799, %v2615
        %2658 = vst.msk [vmem:[#allocation2 + $0x90] sm:$0xff] %vm799, %v2617
        %2659 = vst.msk [vmem:[#allocation2 + $0xa8] sm:$0xff] %vm799, %v2619
        %2660 = vst.msk [vmem:[#allocation2 + $0xc0] sm:$0xff] %vm799, %v2621
        %2661 = vst.msk [vmem:[#allocation2 + $0xd8] sm:$0xff] %vm799, %v2623
        %2662 = vst.msk [vmem:[#allocation2 + $0xf0] sm:$0xff] %vm799, %v2625
        %2663 = vst.msk [vmem:[#allocation2 + $0x108] sm:$0xff] %vm799, %v2627
        %2664 = vst.msk [vmem:[#allocation2 + $0x120] sm:$0xff] %vm799, %v2629
        %2665 = vst.msk [vmem:[#allocation2 + $0x138] sm:$0xff] %vm799, %v2631
        %2666 = vst.msk [vmem:[#allocation2 + $0x150] sm:$0xff] %vm799, %v2633
        %2667 = vst.msk [vmem:[#allocation2 + $0x168] sm:$0xff] %vm799, %v2635
        %v2668 = vpack.c.bf16 %v2130, %v2129
        %2685 = vrot.lane.b32.xlu0 %v2173, 96
        %v2686 = vpop.permute.xlu0 %2685
        %2687 = vrot.lane.b32.xlu0 %v2174, 96
        %v2688 = vpop.permute.xlu0 %2687
        %2689 = vrot.lane.b32.xlu0 %v2175, 96
        %v2690 = vpop.permute.xlu0 %2689
        %2691 = vrot.lane.b32.xlu0 %v2176, 96
        %v2692 = vpop.permute.xlu0 %2691
        %2693 = vrot.lane.b32.xlu0 %v2177, 96
        %v2694 = vpop.permute.xlu0 %2693
        %2695 = vrot.lane.b32.xlu0 %v2178, 96
        %v2696 = vpop.permute.xlu0 %2695
        %2697 = vrot.lane.b32.xlu0 %v2179, 96
        %v2698 = vpop.permute.xlu0 %2697
        %2699 = vrot.lane.b32.xlu0 %v2180, 96
        %v2700 = vpop.permute.xlu0 %2699
        %2701 = vrot.lane.b32.xlu0 %v2181, 96
        %v2702 = vpop.permute.xlu0 %2701
        %2703 = vrot.lane.b32.xlu0 %v2182, 96
        %v2704 = vpop.permute.xlu0 %2703
        %2705 = vrot.lane.b32.xlu0 %v2183, 96
        %v2706 = vpop.permute.xlu0 %2705
        %2707 = vrot.lane.b32.xlu0 %v2184, 96
        %v2708 = vpop.permute.xlu0 %2707
        %2709 = vrot.lane.b32.xlu0 %v2185, 96
        %v2710 = vpop.permute.xlu0 %2709
        %2711 = vrot.lane.b32.xlu0 %v2186, 96
        %v2712 = vpop.permute.xlu0 %2711
        %2713 = vrot.lane.b32.xlu0 %v2187, 96
        %v2714 = vpop.permute.xlu0 %2713
        %2715 = vrot.lane.b32.xlu0 %v2668, 96
        %v2716 = vpop.permute.xlu0 %2715
        %2733 = vst.msk [vmem:[#allocation2] sm:$0xff] %vm881, %v2686
        %2734 = vst.msk [vmem:[#allocation2 + $0x18] sm:$0xff] %vm881, %v2688
        %2735 = vst.msk [vmem:[#allocation2 + $0x30] sm:$0xff] %vm881, %v2690
        %2736 = vst.msk [vmem:[#allocation2 + $0x48] sm:$0xff] %vm881, %v2692
        %2737 = vst.msk [vmem:[#allocation2 + $0x60] sm:$0xff] %vm881, %v2694
        %2738 = vst.msk [vmem:[#allocation2 + $0x78] sm:$0xff] %vm881, %v2696
        %2739 = vst.msk [vmem:[#allocation2 + $0x90] sm:$0xff] %vm881, %v2698
        %2740 = vst.msk [vmem:[#allocation2 + $0xa8] sm:$0xff] %vm881, %v2700
        %2741 = vst.msk [vmem:[#allocation2 + $0xc0] sm:$0xff] %vm881, %v2702
        %2742 = vst.msk [vmem:[#allocation2 + $0xd8] sm:$0xff] %vm881, %v2704
        %2743 = vst.msk [vmem:[#allocation2 + $0xf0] sm:$0xff] %vm881, %v2706
        %2744 = vst.msk [vmem:[#allocation2 + $0x108] sm:$0xff] %vm881, %v2708
        %2745 = vst.msk [vmem:[#allocation2 + $0x120] sm:$0xff] %vm881, %v2710
        %2746 = vst.msk [vmem:[#allocation2 + $0x138] sm:$0xff] %vm881, %v2712
        %2747 = vst.msk [vmem:[#allocation2 + $0x150] sm:$0xff] %vm881, %v2714
        %2748 = vst.msk [vmem:[#allocation2 + $0x168] sm:$0xff] %vm881, %v2716
        %v2752 = vrot.slane %v2129, 1
        %v2753 = vrot.slane %v2130, 1
        %v2754 = vsel %vm396, %v2752, %v2753
        %v2755 = vrot.slane %v2131, 1
        %v2756 = vsel %vm396, %v2753, %v2755
        %v2759 = vpack.c.bf16 %v2756, %v2754
        %2760 = vst.msk [vmem:[#allocation2 + $0x8] sm:$0xff] %vm331, %v2365
        %2761 = vst.msk [vmem:[#allocation2 + $0x20] sm:$0xff] %vm331, %v2366
        %2762 = vst.msk [vmem:[#allocation2 + $0x38] sm:$0xff] %vm331, %v2367
        %2763 = vst.msk [vmem:[#allocation2 + $0x50] sm:$0xff] %vm331, %v2368
        %2764 = vst.msk [vmem:[#allocation2 + $0x68] sm:$0xff] %vm331, %v2369
        %2765 = vst.msk [vmem:[#allocation2 + $0x80] sm:$0xff] %vm331, %v2370
        %2766 = vst.msk [vmem:[#allocation2 + $0x98] sm:$0xff] %vm331, %v2371
        %2767 = vst.msk [vmem:[#allocation2 + $0xb0] sm:$0xff] %vm331, %v2372
        %2768 = vst.msk [vmem:[#allocation2 + $0xc8] sm:$0xff] %vm331, %v2373
        %2769 = vst.msk [vmem:[#allocation2 + $0xe0] sm:$0xff] %vm331, %v2374
        %2770 = vst.msk [vmem:[#allocation2 + $0xf8] sm:$0xff] %vm331, %v2375
        %2771 = vst.msk [vmem:[#allocation2 + $0x110] sm:$0xff] %vm331, %v2376
        %2772 = vst.msk [vmem:[#allocation2 + $0x128] sm:$0xff] %vm331, %v2377
        %2773 = vst.msk [vmem:[#allocation2 + $0x140] sm:$0xff] %vm331, %v2378
        %2774 = vst.msk [vmem:[#allocation2 + $0x158] sm:$0xff] %vm331, %v2379
        %2775 = vst.msk [vmem:[#allocation2 + $0x170] sm:$0xff] %vm331, %v2759
        %v2776 = vrot.slane %v2129, 2
        %v2777 = vrot.slane %v2130, 2
        %v2778 = vsel %vm606, %v2776, %v2777
        %v2779 = vrot.slane %v2131, 2
        %v2780 = vsel %vm606, %v2777, %v2779
        %v2783 = vpack.c.bf16 %v2780, %v2778
        %2785 = vrot.lane.b32.xlu0 %v2573, 32
        %v2786 = vpop.permute.xlu0 %2785
        %2787 = vrot.lane.b32.xlu0 %v2574, 32
        %v2788 = vpop.permute.xlu0 %2787
        %2789 = vrot.lane.b32.xlu0 %v2575, 32
        %v2790 = vpop.permute.xlu0 %2789
        %2791 = vrot.lane.b32.xlu0 %v2576, 32
        %v2792 = vpop.permute.xlu0 %2791
        %2793 = vrot.lane.b32.xlu0 %v2577, 32
        %v2794 = vpop.permute.xlu0 %2793
        %2795 = vrot.lane.b32.xlu0 %v2578, 32
        %v2796 = vpop.permute.xlu0 %2795
        %2797 = vrot.lane.b32.xlu0 %v2579, 32
        %v2798 = vpop.permute.xlu0 %2797
        %2799 = vrot.lane.b32.xlu0 %v2580, 32
        %v2800 = vpop.permute.xlu0 %2799
        %2801 = vrot.lane.b32.xlu0 %v2581, 32
        %v2802 = vpop.permute.xlu0 %2801
        %2803 = vrot.lane.b32.xlu0 %v2582, 32
        %v2804 = vpop.permute.xlu0 %2803
        %2805 = vrot.lane.b32.xlu0 %v2583, 32
        %v2806 = vpop.permute.xlu0 %2805
        %2807 = vrot.lane.b32.xlu0 %v2584, 32
        %v2808 = vpop.permute.xlu0 %2807
        %2809 = vrot.lane.b32.xlu0 %v2585, 32
        %v2810 = vpop.permute.xlu0 %2809
        %2811 = vrot.lane.b32.xlu0 %v2586, 32
        %v2812 = vpop.permute.xlu0 %2811
        %2813 = vrot.lane.b32.xlu0 %v2587, 32
        %v2814 = vpop.permute.xlu0 %2813
        %2815 = vrot.lane.b32.xlu0 %v2783, 32
        %v2816 = vpop.permute.xlu0 %2815
        %2833 = vst.msk [vmem:[#allocation2 + $0x8] sm:$0xff] %vm589, %v2786
        %2834 = vst.msk [vmem:[#allocation2 + $0x20] sm:$0xff] %vm589, %v2788
        %2835 = vst.msk [vmem:[#allocation2 + $0x38] sm:$0xff] %vm589, %v2790
        %2836 = vst.msk [vmem:[#allocation2 + $0x50] sm:$0xff] %vm589, %v2792
        %2837 = vst.msk [vmem:[#allocation2 + $0x68] sm:$0xff] %vm589, %v2794
        %2838 = vst.msk [vmem:[#allocation2 + $0x80] sm:$0xff] %vm589, %v2796
        %2839 = vst.msk [vmem:[#allocation2 + $0x98] sm:$0xff] %vm589, %v2798
        %2840 = vst.msk [vmem:[#allocation2 + $0xb0] sm:$0xff] %vm589, %v2800
        %2841 = vst.msk [vmem:[#allocation2 + $0xc8] sm:$0xff] %vm589, %v2802
        %2842 = vst.msk [vmem:[#allocation2 + $0xe0] sm:$0xff] %vm589, %v2804
        %2843 = vst.msk [vmem:[#allocation2 + $0xf8] sm:$0xff] %vm589, %v2806
        %2844 = vst.msk [vmem:[#allocation2 + $0x110] sm:$0xff] %vm589, %v2808
        %2845 = vst.msk [vmem:[#allocation2 + $0x128] sm:$0xff] %vm589, %v2810
        %2846 = vst.msk [vmem:[#allocation2 + $0x140] sm:$0xff] %vm589, %v2812
        %2847 = vst.msk [vmem:[#allocation2 + $0x158] sm:$0xff] %vm589, %v2814
        %2848 = vst.msk [vmem:[#allocation2 + $0x170] sm:$0xff] %vm589, %v2816
        %v2849 = vpack.c.bf16 %v2133, %v2132
        %2851 = vrot.lane.b32.xlu0 %v2174, 64
        %v2852 = vpop.permute.xlu0 %2851
        %2853 = vrot.lane.b32.xlu0 %v2175, 64
        %v2854 = vpop.permute.xlu0 %2853
        %2855 = vrot.lane.b32.xlu0 %v2176, 64
        %v2856 = vpop.permute.xlu0 %2855
        %2857 = vrot.lane.b32.xlu0 %v2177, 64
        %v2858 = vpop.permute.xlu0 %2857
        %2859 = vrot.lane.b32.xlu0 %v2178, 64
        %v2860 = vpop.permute.xlu0 %2859
        %2861 = vrot.lane.b32.xlu0 %v2179, 64
        %v2862 = vpop.permute.xlu0 %2861
        %2863 = vrot.lane.b32.xlu0 %v2180, 64
        %v2864 = vpop.permute.xlu0 %2863
        %2865 = vrot.lane.b32.xlu0 %v2181, 64
        %v2866 = vpop.permute.xlu0 %2865
        %2867 = vrot.lane.b32.xlu0 %v2182, 64
        %v2868 = vpop.permute.xlu0 %2867
        %2869 = vrot.lane.b32.xlu0 %v2183, 64
        %v2870 = vpop.permute.xlu0 %2869
        %2871 = vrot.lane.b32.xlu0 %v2184, 64
        %v2872 = vpop.permute.xlu0 %2871
        %2873 = vrot.lane.b32.xlu0 %v2185, 64
        %v2874 = vpop.permute.xlu0 %2873
        %2875 = vrot.lane.b32.xlu0 %v2186, 64
        %v2876 = vpop.permute.xlu0 %2875
        %2877 = vrot.lane.b32.xlu0 %v2187, 64
        %v2878 = vpop.permute.xlu0 %2877
        %2879 = vrot.lane.b32.xlu0 %v2668, 64
        %v2880 = vpop.permute.xlu0 %2879
        %2881 = vrot.lane.b32.xlu0 %v2849, 64
        %v2882 = vpop.permute.xlu0 %2881
        %2899 = vst.msk [vmem:[#allocation2 + $0x8] sm:$0xff] %vm799, %v2852
        %2900 = vst.msk [vmem:[#allocation2 + $0x20] sm:$0xff] %vm799, %v2854
        %2901 = vst.msk [vmem:[#allocation2 + $0x38] sm:$0xff] %vm799, %v2856
        %2902 = vst.msk [vmem:[#allocation2 + $0x50] sm:$0xff] %vm799, %v2858
        %2903 = vst.msk [vmem:[#allocation2 + $0x68] sm:$0xff] %vm799, %v2860
        %2904 = vst.msk [vmem:[#allocation2 + $0x80] sm:$0xff] %vm799, %v2862
        %2905 = vst.msk [vmem:[#allocation2 + $0x98] sm:$0xff] %vm799, %v2864
        %2906 = vst.msk [vmem:[#allocation2 + $0xb0] sm:$0xff] %vm799, %v2866
        %2907 = vst.msk [vmem:[#allocation2 + $0xc8] sm:$0xff] %vm799, %v2868
        %2908 = vst.msk [vmem:[#allocation2 + $0xe0] sm:$0xff] %vm799, %v2870
        %2909 = vst.msk [vmem:[#allocation2 + $0xf8] sm:$0xff] %vm799, %v2872
        %2910 = vst.msk [vmem:[#allocation2 + $0x110] sm:$0xff] %vm799, %v2874
        %2911 = vst.msk [vmem:[#allocation2 + $0x128] sm:$0xff] %vm799, %v2876
        %2912 = vst.msk [vmem:[#allocation2 + $0x140] sm:$0xff] %vm799, %v2878
        %2913 = vst.msk [vmem:[#allocation2 + $0x158] sm:$0xff] %vm799, %v2880
        %2914 = vst.msk [vmem:[#allocation2 + $0x170] sm:$0xff] %vm799, %v2882
        %v2918 = vrot.slane %v2132, 1
        %v2919 = vrot.slane %v2133, 1
        %v2920 = vsel %vm396, %v2918, %v2919
        %v2921 = vrot.slane %v2134, 1
        %v2922 = vsel %vm396, %v2919, %v2921
        %v2925 = vpack.c.bf16 %v2922, %v2920
        %2928 = vrot.lane.b32.xlu0 %v2366, 96
        %v2929 = vpop.permute.xlu0 %2928
        %2930 = vrot.lane.b32.xlu0 %v2367, 96
        %v2931 = vpop.permute.xlu0 %2930
        %2932 = vrot.lane.b32.xlu0 %v2368, 96
        %v2933 = vpop.permute.xlu0 %2932
        %2934 = vrot.lane.b32.xlu0 %v2369, 96
        %v2935 = vpop.permute.xlu0 %2934
        %2936 = vrot.lane.b32.xlu0 %v2370, 96
        %v2937 = vpop.permute.xlu0 %2936
        %2938 = vrot.lane.b32.xlu0 %v2371, 96
        %v2939 = vpop.permute.xlu0 %2938
        %2940 = vrot.lane.b32.xlu0 %v2372, 96
        %v2941 = vpop.permute.xlu0 %2940
        %2942 = vrot.lane.b32.xlu0 %v2373, 96
        %v2943 = vpop.permute.xlu0 %2942
        %2944 = vrot.lane.b32.xlu0 %v2374, 96
        %v2945 = vpop.permute.xlu0 %2944
        %2946 = vrot.lane.b32.xlu0 %v2375, 96
        %v2947 = vpop.permute.xlu0 %2946
        %2948 = vrot.lane.b32.xlu0 %v2376, 96
        %v2949 = vpop.permute.xlu0 %2948
        %2950 = vrot.lane.b32.xlu0 %v2377, 96
        %v2951 = vpop.permute.xlu0 %2950
        %2952 = vrot.lane.b32.xlu0 %v2378, 96
        %v2953 = vpop.permute.xlu0 %2952
        %2954 = vrot.lane.b32.xlu0 %v2379, 96
        %v2955 = vpop.permute.xlu0 %2954
        %2956 = vrot.lane.b32.xlu0 %v2759, 96
        %v2957 = vpop.permute.xlu0 %2956
        %2958 = vrot.lane.b32.xlu0 %v2925, 96
        %v2959 = vpop.permute.xlu0 %2958
        %2976 = vst.msk [vmem:[#allocation2 + $0x8] sm:$0xff] %vm881, %v2929
        %2977 = vst.msk [vmem:[#allocation2 + $0x20] sm:$0xff] %vm881, %v2931
        %2978 = vst.msk [vmem:[#allocation2 + $0x38] sm:$0xff] %vm881, %v2933
        %2979 = vst.msk [vmem:[#allocation2 + $0x50] sm:$0xff] %vm881, %v2935
        %2980 = vst.msk [vmem:[#allocation2 + $0x68] sm:$0xff] %vm881, %v2937
        %2981 = vst.msk [vmem:[#allocation2 + $0x80] sm:$0xff] %vm881, %v2939
        %2982 = vst.msk [vmem:[#allocation2 + $0x98] sm:$0xff] %vm881, %v2941
        %2983 = vst.msk [vmem:[#allocation2 + $0xb0] sm:$0xff] %vm881, %v2943
        %2984 = vst.msk [vmem:[#allocation2 + $0xc8] sm:$0xff] %vm881, %v2945
        %2985 = vst.msk [vmem:[#allocation2 + $0xe0] sm:$0xff] %vm881, %v2947
        %2986 = vst.msk [vmem:[#allocation2 + $0xf8] sm:$0xff] %vm881, %v2949
        %2987 = vst.msk [vmem:[#allocation2 + $0x110] sm:$0xff] %vm881, %v2951
        %2988 = vst.msk [vmem:[#allocation2 + $0x128] sm:$0xff] %vm881, %v2953
        %2989 = vst.msk [vmem:[#allocation2 + $0x140] sm:$0xff] %vm881, %v2955
        %2990 = vst.msk [vmem:[#allocation2 + $0x158] sm:$0xff] %vm881, %v2957
        %2991 = vst.msk [vmem:[#allocation2 + $0x170] sm:$0xff] %vm881, %v2959
        %v2992 = vrot.slane %v2132, 2
        %v2993 = vrot.slane %v2133, 2
        %v2994 = vsel %vm606, %v2992, %v2993
        %v2995 = vrot.slane %v2134, 2
        %v2996 = vsel %vm606, %v2993, %v2995
        %v2999 = vpack.c.bf16 %v2996, %v2994
        %3000 = vst.msk [vmem:[#allocation2 + $0x10] sm:$0xff] %vm331, %v2574
        %3001 = vst.msk [vmem:[#allocation2 + $0x28] sm:$0xff] %vm331, %v2575
        %3002 = vst.msk [vmem:[#allocation2 + $0x40] sm:$0xff] %vm331, %v2576
        %3003 = vst.msk [vmem:[#allocation2 + $0x58] sm:$0xff] %vm331, %v2577
        %3004 = vst.msk [vmem:[#allocation2 + $0x70] sm:$0xff] %vm331, %v2578
        %3005 = vst.msk [vmem:[#allocation2 + $0x88] sm:$0xff] %vm331, %v2579
        %3006 = vst.msk [vmem:[#allocation2 + $0xa0] sm:$0xff] %vm331, %v2580
        %3007 = vst.msk [vmem:[#allocation2 + $0xb8] sm:$0xff] %vm331, %v2581
        %3008 = vst.msk [vmem:[#allocation2 + $0xd0] sm:$0xff] %vm331, %v2582
        %3009 = vst.msk [vmem:[#allocation2 + $0xe8] sm:$0xff] %vm331, %v2583
        %3010 = vst.msk [vmem:[#allocation2 + $0x100] sm:$0xff] %vm331, %v2584
        %3011 = vst.msk [vmem:[#allocation2 + $0x118] sm:$0xff] %vm331, %v2585
        %3012 = vst.msk [vmem:[#allocation2 + $0x130] sm:$0xff] %vm331, %v2586
        %3013 = vst.msk [vmem:[#allocation2 + $0x148] sm:$0xff] %vm331, %v2587
        %3014 = vst.msk [vmem:[#allocation2 + $0x160] sm:$0xff] %vm331, %v2783
        %3015 = vst.msk [vmem:[#allocation2 + $0x178] sm:$0xff] %vm331, %v2999
        %v3016 = vld [vmem:[#allocation2] sm:$0xff]
        %v3017 = vld [vmem:[#allocation2 + $0x8] sm:$0xff]
        %v3018 = vld [vmem:[#allocation2 + $0x10] sm:$0xff]
        %v3019 = vld [vmem:[#allocation2 + $0x18] sm:$0xff]
        %v3020 = vld [vmem:[#allocation2 + $0x20] sm:$0xff]
        %v3021 = vld [vmem:[#allocation2 + $0x28] sm:$0xff]
        %v3022 = vld [vmem:[#allocation2 + $0x30] sm:$0xff]
        %v3023 = vld [vmem:[#allocation2 + $0x38] sm:$0xff]
        %v3024 = vld [vmem:[#allocation2 + $0x40] sm:$0xff]
        %v3025 = vld [vmem:[#allocation2 + $0x48] sm:$0xff]
        %v3026 = vld [vmem:[#allocation2 + $0x50] sm:$0xff]
        %v3027 = vld [vmem:[#allocation2 + $0x58] sm:$0xff]
        %v3028 = vld [vmem:[#allocation2 + $0x60] sm:$0xff]
        %v3029 = vld [vmem:[#allocation2 + $0x68] sm:$0xff]
        %v3030 = vld [vmem:[#allocation2 + $0x70] sm:$0xff]
        %v3031 = vld [vmem:[#allocation2 + $0x78] sm:$0xff]
        %v3032 = vld [vmem:[#allocation2 + $0x80] sm:$0xff]
        %v3033 = vld [vmem:[#allocation2 + $0x88] sm:$0xff]
        %v3034 = vld [vmem:[#allocation2 + $0x90] sm:$0xff]
        %v3035 = vld [vmem:[#allocation2 + $0x98] sm:$0xff]
        %v3036 = vld [vmem:[#allocation2 + $0xa0] sm:$0xff]
        %v3037 = vld [vmem:[#allocation2 + $0xa8] sm:$0xff]
        %v3038 = vld [vmem:[#allocation2 + $0xb0] sm:$0xff]
        %v3039 = vld [vmem:[#allocation2 + $0xb8] sm:$0xff]
        %v3040 = vld [vmem:[#allocation2 + $0xc0] sm:$0xff]
        %v3041 = vld [vmem:[#allocation2 + $0xc8] sm:$0xff]
        %v3042 = vld [vmem:[#allocation2 + $0xd0] sm:$0xff]
        %v3043 = vld [vmem:[#allocation2 + $0xd8] sm:$0xff]
        %v3044 = vld [vmem:[#allocation2 + $0xe0] sm:$0xff]
        %v3045 = vld [vmem:[#allocation2 + $0xe8] sm:$0xff]
        %v3046 = vld [vmem:[#allocation2 + $0xf0] sm:$0xff]
        %v3047 = vld [vmem:[#allocation2 + $0xf8] sm:$0xff]
        %v3048 = vld [vmem:[#allocation2 + $0x100] sm:$0xff]
        %v3049 = vld [vmem:[#allocation2 + $0x108] sm:$0xff]
        %v3050 = vld [vmem:[#allocation2 + $0x110] sm:$0xff]
        %v3051 = vld [vmem:[#allocation2 + $0x118] sm:$0xff]
        %v3052 = vld [vmem:[#allocation2 + $0x120] sm:$0xff]
        %v3053 = vld [vmem:[#allocation2 + $0x128] sm:$0xff]
        %v3054 = vld [vmem:[#allocation2 + $0x130] sm:$0xff]
        %v3055 = vld [vmem:[#allocation2 + $0x138] sm:$0xff]
        %v3056 = vld [vmem:[#allocation2 + $0x140] sm:$0xff]
        %v3057 = vld [vmem:[#allocation2 + $0x148] sm:$0xff]
        %v3058 = vld [vmem:[#allocation2 + $0x150] sm:$0xff]
        %v3059 = vld [vmem:[#allocation2 + $0x158] sm:$0xff]
        %v3060 = vld [vmem:[#allocation2 + $0x160] sm:$0xff]
        %v3061 = vld [vmem:[#allocation2 + $0x168] sm:$0xff]
        %v3062 = vld [vmem:[#allocation2 + $0x170] sm:$0xff]
        %v3063 = vld [vmem:[#allocation2 + $0x178] sm:$0xff]
        %v3065 = vlaneseq
        %v3066 = vshrl.u32 %v3065, 7
        %v3067 = vsub.s32 0, %v3066
        %v3068 = vrot.slane %v2171, %v3067
        %v3106 = vunpack.c.l.b16 %v2135
        %v3107 = vunpack.c.l.b16 %v2136
        %v3108 = vunpack.c.l.b16 %v2137
        %v3109 = vunpack.c.l.b16 %v2138
        %v3110 = vunpack.c.l.b16 %v2139
        %v3111 = vunpack.c.l.b16 %v2140
        %v3112 = vunpack.c.l.b16 %v2141
        %v3113 = vunpack.c.l.b16 %v2142
        %v3114 = vunpack.c.l.b16 %v2143
        %v3115 = vunpack.c.l.b16 %v2144
        %v3116 = vunpack.c.l.b16 %v2145
        %v3117 = vunpack.c.l.b16 %v2146
        %v3118 = vunpack.c.l.b16 %v2147
        %v3119 = vunpack.c.l.b16 %v2148
        %v3120 = vunpack.c.l.b16 %v2149
        %v3121 = vunpack.c.l.b16 %v2150
        %v3122 = vunpack.c.l.b16 %v2151
        %v3123 = vunpack.c.l.b16 %v2152
        %v3124 = vunpack.c.l.b16 %v2153
        %v3125 = vunpack.c.l.b16 %v2154
        %v3126 = vunpack.c.l.b16 %v2155
        %v3127 = vunpack.c.l.b16 %v2156
        %v3128 = vunpack.c.l.b16 %v2157
        %v3129 = vunpack.c.l.b16 %v2158
        %v3130 = vunpack.c.l.b16 %v2159
        %v3131 = vunpack.c.l.b16 %v2160
        %v3132 = vunpack.c.l.b16 %v2161
        %v3133 = vunpack.c.l.b16 %v2162
        %v3134 = vunpack.c.l.b16 %v2163
        %v3135 = vunpack.c.l.b16 %v2164
        %v3136 = vunpack.c.l.b16 %v2165
        %v3137 = vunpack.c.l.b16 %v2166
        %v3138 = vunpack.c.l.b16 %v2167
        %v3139 = vunpack.c.l.b16 %v2168
        %v3140 = vunpack.c.l.b16 %v2169
        %v3141 = vunpack.c.l.b16 %v2170
        %v3142 = vpack.c.b16 %v3107, %v3106
        %v3143 = vpack.c.b16 %v3109, %v3108
        %v3144 = vpack.c.b16 %v3111, %v3110
        %v3145 = vpack.c.b16 %v3113, %v3112
        %v3146 = vpack.c.b16 %v3115, %v3114
        %v3147 = vpack.c.b16 %v3117, %v3116
        %v3148 = vpack.c.b16 %v3119, %v3118
        %v3149 = vpack.c.b16 %v3121, %v3120
        %v3150 = vpack.c.b16 %v3123, %v3122
        %v3151 = vpack.c.b16 %v3125, %v3124
        %v3152 = vpack.c.b16 %v3127, %v3126
        %v3153 = vpack.c.b16 %v3129, %v3128
        %v3154 = vpack.c.b16 %v3131, %v3130
        %v3155 = vpack.c.b16 %v3133, %v3132
        %v3156 = vpack.c.b16 %v3135, %v3134
        %v3157 = vpack.c.b16 %v3137, %v3136
        %v3158 = vpack.c.b16 %v3139, %v3138
        %v3159 = vpack.c.b16 %v3141, %v3140
        %v3179 = vsel %vm331, %v3018, 0
        %v3182 = vsel %vm331, %v3021, 0
        %v3185 = vsel %vm331, %v3024, 0
        %v3188 = vsel %vm331, %v3027, 0
        %v3191 = vsel %vm331, %v3030, 0
        %v3194 = vsel %vm331, %v3033, 0
        %v3197 = vsel %vm331, %v3036, 0
        %v3200 = vsel %vm331, %v3039, 0
        %v3203 = vsel %vm331, %v3042, 0
        %v3206 = vsel %vm331, %v3045, 0
        %v3209 = vsel %vm331, %v3048, 0
        %v3212 = vsel %vm331, %v3051, 0
        %v3215 = vsel %vm331, %v3054, 0
        %v3218 = vsel %vm331, %v3057, 0
        %v3221 = vsel %vm331, %v3060, 0
        %v3224 = vsel %vm331, %v3063, 0
        %3226 = vmatprep.subr.bf16.mxu0 0
        %3227 = vmatpush1.bf16.msra.mxu0 %v3142
        %3228 = vmatprep.subr.bf16.mxu0 0
        %3229 = vmatpush1.bf16.msra.mxu0 %v3143
        %3230 = vmatprep.subr.bf16.mxu0 0
        %3231 = vmatpush1.bf16.msra.mxu0 %v3144
        %3232 = vmatprep.subr.bf16.mxu0 0
        %3233 = vmatpush1.bf16.msra.mxu0 %v3145
        %3234 = vmatprep.subr.bf16.mxu0 0
        %3235 = vmatpush1.bf16.msra.mxu0 %v3146
        %3236 = vmatprep.subr.bf16.mxu0 0
        %3237 = vmatpush1.bf16.msra.mxu0 %v3147
        %3238 = vmatprep.subr.bf16.mxu0 0
        %3239 = vmatpush1.bf16.msra.mxu0 %v3148
        %3240 = vmatprep.subr.bf16.mxu0 0
        %3241 = vmatpush1.bf16.msra.mxu0 %v3149
        %3242 = vmatprep.subr.bf16.mxu0 0
        %3243 = vmatpush1.bf16.msra.mxu0 %v3150
        %3244 = vmatprep.subr.bf16.mxu0 0
        %3245 = vmatpush1.bf16.msra.mxu0 %v3151
        %3246 = vmatprep.subr.bf16.mxu0 0
        %3247 = vmatpush1.bf16.msra.mxu0 %v3152
        %3248 = vmatprep.subr.bf16.mxu0 0
        %3249 = vmatpush1.bf16.msra.mxu0 %v3153
        %3250 = vmatprep.subr.bf16.mxu0 0
        %3251 = vmatpush1.bf16.msra.mxu0 %v3154
        %3252 = vmatprep.subr.bf16.mxu0 0
        %3253 = vmatpush1.bf16.msra.mxu0 %v3155
        %3254 = vmatprep.subr.bf16.mxu0 0
        %3255 = vmatpush1.bf16.msra.mxu0 %v3156
        %3256 = vmatprep.subr.bf16.mxu0 0
        %3257 = vmatpush1.bf16.msra.mxu0 %v3157
        %3258 = vmatprep.mubr.bf16.mxu0 %v3017
        %3259 = vmatmul.mubr.bf16.gmra.mrb[0].mxu0 %v3016
        %v3260 = vpop.f32.mrb[0].mxu0
        %v3261 = vadd.f32 %v3068, %v3260
        %v3262 = vpop.f32.mrb[0].mxu0
        %v3263 = vpop.f32.mrb[0].mxu0
        %v3264 = vadd.f32 %v3068, %v3263
        %v3265 = vpop.f32.mrb[0].mxu0
        %3266 = vmatprep.mubr.bf16.mxu0 %v3020
        %3267 = vmatmul.mubr.bf16.gmra.mrb[0].mxu0 %v3019
        %v3268 = vpop.f32.mrb[0].mxu0
        %v3269 = vadd.f32 %v3068, %v3268
        %v3270 = vpop.f32.mrb[0].mxu0
        %v3271 = vpop.f32.mrb[0].mxu0
        %v3272 = vadd.f32 %v3068, %v3271
        %v3273 = vpop.f32.mrb[0].mxu0
        %3274 = vmatprep.mubr.bf16.mxu0 %v3023
        %3275 = vmatmul.mubr.bf16.gmra.mrb[0].mxu0 %v3022
        %v3276 = vpop.f32.mrb[0].mxu0
        %v3277 = vadd.f32 %v3068, %v3276
        %v3278 = vpop.f32.mrb[0].mxu0
        %v3279 = vpop.f32.mrb[0].mxu0
        %v3280 = vadd.f32 %v3068, %v3279
        %v3281 = vpop.f32.mrb[0].mxu0
        %3282 = vmatprep.mubr.bf16.mxu0 %v3026
        %3283 = vmatmul.mubr.bf16.gmra.mrb[0].mxu0 %v3025
        %v3284 = vpop.f32.mrb[0].mxu0
        %v3285 = vadd.f32 %v3068, %v3284
        %v3286 = vpop.f32.mrb[0].mxu0
        %v3287 = vpop.f32.mrb[0].mxu0
        %v3288 = vadd.f32 %v3068, %v3287
        %v3289 = vpop.f32.mrb[0].mxu0
        %3290 = vmatprep.mubr.bf16.mxu0 %v3029
        %3291 = vmatmul.mubr.bf16.gmra.mrb[0].mxu0 %v3028
        %v3292 = vpop.f32.mrb[0].mxu0
        %v3293 = vadd.f32 %v3068, %v3292
        %v3294 = vpop.f32.mrb[0].mxu0
        %v3295 = vpop.f32.mrb[0].mxu0
        %v3296 = vadd.f32 %v3068, %v3295
        %v3297 = vpop.f32.mrb[0].mxu0
        %3298 = vmatprep.mubr.bf16.mxu0 %v3032
        %3299 = vmatmul.mubr.bf16.gmra.mrb[0].mxu0 %v3031
        %v3300 = vpop.f32.mrb[0].mxu0
        %v3301 = vadd.f32 %v3068, %v3300
        %v3302 = vpop.f32.mrb[0].mxu0
        %v3303 = vpop.f32.mrb[0].mxu0
        %v3304 = vadd.f32 %v3068, %v3303
        %v3305 = vpop.f32.mrb[0].mxu0
        %3306 = vmatprep.mubr.bf16.mxu0 %v3035
        %3307 = vmatmul.mubr.bf16.gmra.mrb[0].mxu0 %v3034
        %v3308 = vpop.f32.mrb[0].mxu0
        %v3309 = vadd.f32 %v3068, %v3308
        %v3310 = vpop.f32.mrb[0].mxu0
        %v3311 = vpop.f32.mrb[0].mxu0
        %v3312 = vadd.f32 %v3068, %v3311
        %v3313 = vpop.f32.mrb[0].mxu0
        %3314 = vmatprep.mubr.bf16.mxu0 %v3038
        %3315 = vmatmul.mubr.bf16.gmra.mrb[0].mxu0 %v3037
        %v3316 = vpop.f32.mrb[0].mxu0
        %v3317 = vadd.f32 %v3068, %v3316
        %v3318 = vpop.f32.mrb[0].mxu0
        %v3319 = vpop.f32.mrb[0].mxu0
        %v3320 = vadd.f32 %v3068, %v3319
        %v3321 = vpop.f32.mrb[0].mxu0
        %3322 = vmatprep.mubr.bf16.mxu0 %v3041
        %3323 = vmatmul.mubr.bf16.gmra.mrb[0].mxu0 %v3040
        %v3324 = vpop.f32.mrb[0].mxu0
        %v3325 = vadd.f32 %v3068, %v3324
        %v3326 = vpop.f32.mrb[0].mxu0
        %v3327 = vpop.f32.mrb[0].mxu0
        %v3328 = vadd.f32 %v3068, %v3327
        %v3329 = vpop.f32.mrb[0].mxu0
        %3330 = vmatprep.mubr.bf16.mxu0 %v3044
        %3331 = vmatmul.mubr.bf16.gmra.mrb[0].mxu0 %v3043
        %v3332 = vpop.f32.mrb[0].mxu0
        %v3333 = vadd.f32 %v3068, %v3332
        %v3334 = vpop.f32.mrb[0].mxu0
        %v3335 = vpop.f32.mrb[0].mxu0
        %v3336 = vadd.f32 %v3068, %v3335
        %v3337 = vpop.f32.mrb[0].mxu0
        %3338 = vmatprep.mubr.bf16.mxu0 %v3047
        %3339 = vmatmul.mubr.bf16.gmra.mrb[0].mxu0 %v3046
        %v3340 = vpop.f32.mrb[0].mxu0
        %v3341 = vadd.f32 %v3068, %v3340
        %v3342 = vpop.f32.mrb[0].mxu0
        %v3343 = vpop.f32.mrb[0].mxu0
        %v3344 = vadd.f32 %v3068, %v3343
        %v3345 = vpop.f32.mrb[0].mxu0
        %3346 = vmatprep.mubr.bf16.mxu0 %v3050
        %3347 = vmatmul.mubr.bf16.gmra.mrb[0].mxu0 %v3049
        %v3348 = vpop.f32.mrb[0].mxu0
        %v3349 = vadd.f32 %v3068, %v3348
        %v3350 = vpop.f32.mrb[0].mxu0
        %v3351 = vpop.f32.mrb[0].mxu0
        %v3352 = vadd.f32 %v3068, %v3351
        %v3353 = vpop.f32.mrb[0].mxu0
        %3354 = vmatprep.mubr.bf16.mxu0 %v3053
        %3355 = vmatmul.mubr.bf16.gmra.mrb[0].mxu0 %v3052
        %v3356 = vpop.f32.mrb[0].mxu0
        %v3357 = vadd.f32 %v3068, %v3356
        %v3358 = vpop.f32.mrb[0].mxu0
        %v3359 = vpop.f32.mrb[0].mxu0
        %v3360 = vadd.f32 %v3068, %v3359
        %v3361 = vpop.f32.mrb[0].mxu0
        %3362 = vmatprep.mubr.bf16.mxu0 %v3056
        %3363 = vmatmul.mubr.bf16.gmra.mrb[0].mxu0 %v3055
        %v3364 = vpop.f32.mrb[0].mxu0
        %v3365 = vadd.f32 %v3068, %v3364
        %v3366 = vpop.f32.mrb[0].mxu0
        %v3367 = vpop.f32.mrb[0].mxu0
        %v3368 = vadd.f32 %v3068, %v3367
        %v3369 = vpop.f32.mrb[0].mxu0
        %3370 = vmatprep.mubr.bf16.mxu0 %v3059
        %3371 = vmatmul.mubr.bf16.gmra.mrb[0].mxu0 %v3058
        %v3372 = vpop.f32.mrb[0].mxu0
        %v3373 = vadd.f32 %v3068, %v3372
        %v3374 = vpop.f32.mrb[0].mxu0
        %v3375 = vpop.f32.mrb[0].mxu0
        %v3376 = vadd.f32 %v3068, %v3375
        %v3377 = vpop.f32.mrb[0].mxu0
        %3378 = vmatprep.mubr.bf16.mxu0 %v3062
        %3379 = vmatmul.mubr.bf16.gmra.mrb[0].mxu0 %v3061
        %v3380 = vpop.f32.mrb[0].mxu0
        %v3381 = vadd.f32 %v3068, %v3380
        %v3382 = vpop.f32.mrb[0].mxu0
        %v3383 = vpop.f32.mrb[0].mxu0
        %v3384 = vadd.f32 %v3068, %v3383
        %v3385 = vpop.f32.mrb[0].mxu0
        %3386 = vdwg.mxu0
        %3387 = vmatprep.subr.bf16.mxu0 0
        %3388 = vmatpush1.bf16.msra.mxu0 %v3158
        %3389 = vmatprep.subr.bf16.mxu0 0
        %3390 = vmatpush1.bf16.msra.mxu0 %v3159
        %3391 = vmatprep.subr.bf16.mxu0 0
        %3392 = vmatpush1.bf16.msra.mxu0 0
        %3393 = vmatprep.subr.bf16.mxu0 0
        %3394 = vmatpush1.bf16.msra.mxu0 0
        %3395 = vmatprep.subr.bf16.mxu0 0
        %3396 = vmatpush1.bf16.msra.mxu0 0
        %3397 = vmatprep.subr.bf16.mxu0 0
        %3398 = vmatpush1.bf16.msra.mxu0 0
        %3399 = vmatprep.subr.bf16.mxu0 0
        %3400 = vmatpush1.bf16.msra.mxu0 0
        %3401 = vmatprep.subr.bf16.mxu0 0
        %3402 = vmatpush1.bf16.msra.mxu0 0
        %3403 = vmatprep.subr.bf16.mxu0 0
        %3404 = vmatpush1.bf16.msra.mxu0 0
        %3405 = vmatprep.subr.bf16.mxu0 0
        %3406 = vmatpush1.bf16.msra.mxu0 0
        %3407 = vmatprep.subr.bf16.mxu0 0
        %3408 = vmatpush1.bf16.msra.mxu0 0
        %3409 = vmatprep.subr.bf16.mxu0 0
        %3410 = vmatpush1.bf16.msra.mxu0 0
        %3411 = vmatprep.subr.bf16.mxu0 0
        %3412 = vmatpush1.bf16.msra.mxu0 0
        %3413 = vmatprep.subr.bf16.mxu0 0
        %3414 = vmatpush1.bf16.msra.mxu0 0
        %3415 = vmatprep.subr.bf16.mxu0 0
        %3416 = vmatpush1.bf16.msra.mxu0 0
        %3417 = vmatprep.subr.bf16.mxu0 0
        %3418 = vmatpush1.bf16.msra.mxu0 0
        %3419 = vmatprep.mubr.bf16.mxu0 0
        %3420 = vmatmul.mubr.bf16.gmra.mrb[0].mxu0 %v3179
        %v3421 = vpop.f32.mrb[0].mxu0
        %v3422 = vadd.f32 %v3261, %v3421
        %v3423 = vpop.f32.mrb[0].mxu0
        %v3424 = vpop.f32.mrb[0].mxu0
        %v3425 = vadd.f32 %v3264, %v3424
        %v3426 = vpop.f32.mrb[0].mxu0
        %3427 = vmatprep.mubr.bf16.mxu0 0
        %3428 = vmatmul.mubr.bf16.gmra.mrb[0].mxu0 %v3182
        %v3429 = vpop.f32.mrb[0].mxu0
        %v3430 = vadd.f32 %v3269, %v3429
        %v3431 = vpop.f32.mrb[0].mxu0
        %v3432 = vpop.f32.mrb[0].mxu0
        %v3433 = vadd.f32 %v3272, %v3432
        %v3434 = vpop.f32.mrb[0].mxu0
        %3435 = vmatprep.mubr.bf16.mxu0 0
        %3436 = vmatmul.mubr.bf16.gmra.mrb[0].mxu0 %v3185
        %v3437 = vpop.f32.mrb[0].mxu0
        %v3438 = vadd.f32 %v3277, %v3437
        %v3439 = vpop.f32.mrb[0].mxu0
        %v3440 = vpop.f32.mrb[0].mxu0
        %v3441 = vadd.f32 %v3280, %v3440
        %v3442 = vpop.f32.mrb[0].mxu0
        %3443 = vmatprep.mubr.bf16.mxu0 0
        %3444 = vmatmul.mubr.bf16.gmra.mrb[0].mxu0 %v3188
        %v3445 = vpop.f32.mrb[0].mxu0
        %v3446 = vadd.f32 %v3285, %v3445
        %v3447 = vpop.f32.mrb[0].mxu0
        %v3448 = vpop.f32.mrb[0].mxu0
        %v3449 = vadd.f32 %v3288, %v3448
        %v3450 = vpop.f32.mrb[0].mxu0
        %3451 = vmatprep.mubr.bf16.mxu0 0
        %3452 = vmatmul.mubr.bf16.gmra.mrb[0].mxu0 %v3191
        %v3453 = vpop.f32.mrb[0].mxu0
        %v3454 = vadd.f32 %v3293, %v3453
        %v3455 = vpop.f32.mrb[0].mxu0
        %v3456 = vpop.f32.mrb[0].mxu0
        %v3457 = vadd.f32 %v3296, %v3456
        %v3458 = vpop.f32.mrb[0].mxu0
        %3459 = vmatprep.mubr.bf16.mxu0 0
        %3460 = vmatmul.mubr.bf16.gmra.mrb[0].mxu0 %v3194
        %v3461 = vpop.f32.mrb[0].mxu0
        %v3462 = vadd.f32 %v3301, %v3461
        %v3463 = vpop.f32.mrb[0].mxu0
        %v3464 = vpop.f32.mrb[0].mxu0
        %v3465 = vadd.f32 %v3304, %v3464
        %v3466 = vpop.f32.mrb[0].mxu0
        %3467 = vmatprep.mubr.bf16.mxu0 0
        %3468 = vmatmul.mubr.bf16.gmra.mrb[0].mxu0 %v3197
        %v3469 = vpop.f32.mrb[0].mxu0
        %v3470 = vadd.f32 %v3309, %v3469
        %v3471 = vpop.f32.mrb[0].mxu0
        %v3472 = vpop.f32.mrb[0].mxu0
        %v3473 = vadd.f32 %v3312, %v3472
        %v3474 = vpop.f32.mrb[0].mxu0
        %3475 = vmatprep.mubr.bf16.mxu0 0
        %3476 = vmatmul.mubr.bf16.gmra.mrb[0].mxu0 %v3200
        %v3477 = vpop.f32.mrb[0].mxu0
        %v3478 = vadd.f32 %v3317, %v3477
        %v3479 = vpop.f32.mrb[0].mxu0
        %v3480 = vpop.f32.mrb[0].mxu0
        %v3481 = vadd.f32 %v3320, %v3480
        %v3482 = vpop.f32.mrb[0].mxu0
        %3483 = vmatprep.mubr.bf16.mxu0 0
        %3484 = vmatmul.mubr.bf16.gmra.mrb[0].mxu0 %v3203
        %v3485 = vpop.f32.mrb[0].mxu0
        %v3486 = vadd.f32 %v3325, %v3485
        %v3487 = vpop.f32.mrb[0].mxu0
        %v3488 = vpop.f32.mrb[0].mxu0
        %v3489 = vadd.f32 %v3328, %v3488
        %v3490 = vpop.f32.mrb[0].mxu0
        %3491 = vmatprep.mubr.bf16.mxu0 0
        %3492 = vmatmul.mubr.bf16.gmra.mrb[0].mxu0 %v3206
        %v3493 = vpop.f32.mrb[0].mxu0
        %v3494 = vadd.f32 %v3333, %v3493
        %v3495 = vpop.f32.mrb[0].mxu0
        %v3496 = vpop.f32.mrb[0].mxu0
        %v3497 = vadd.f32 %v3336, %v3496
        %v3498 = vpop.f32.mrb[0].mxu0
        %3499 = vmatprep.mubr.bf16.mxu0 0
        %3500 = vmatmul.mubr.bf16.gmra.mrb[0].mxu0 %v3209
        %v3501 = vpop.f32.mrb[0].mxu0
        %v3502 = vadd.f32 %v3341, %v3501
        %v3503 = vpop.f32.mrb[0].mxu0
        %v3504 = vpop.f32.mrb[0].mxu0
        %v3505 = vadd.f32 %v3344, %v3504
        %v3506 = vpop.f32.mrb[0].mxu0
        %3507 = vmatprep.mubr.bf16.mxu0 0
        %3508 = vmatmul.mubr.bf16.gmra.mrb[0].mxu0 %v3212
        %v3509 = vpop.f32.mrb[0].mxu0
        %v3510 = vadd.f32 %v3349, %v3509
        %v3511 = vpop.f32.mrb[0].mxu0
        %v3512 = vpop.f32.mrb[0].mxu0
        %v3513 = vadd.f32 %v3352, %v3512
        %v3514 = vpop.f32.mrb[0].mxu0
        %3515 = vmatprep.mubr.bf16.mxu0 0
        %3516 = vmatmul.mubr.bf16.gmra.mrb[0].mxu0 %v3215
        %v3517 = vpop.f32.mrb[0].mxu0
        %v3518 = vadd.f32 %v3357, %v3517
        %v3519 = vpop.f32.mrb[0].mxu0
        %v3520 = vpop.f32.mrb[0].mxu0
        %v3521 = vadd.f32 %v3360, %v3520
        %v3522 = vpop.f32.mrb[0].mxu0
        %3523 = vmatprep.mubr.bf16.mxu0 0
        %3524 = vmatmul.mubr.bf16.gmra.mrb[0].mxu0 %v3218
        %v3525 = vpop.f32.mrb[0].mxu0
        %v3526 = vadd.f32 %v3365, %v3525
        %v3527 = vpop.f32.mrb[0].mxu0
        %v3528 = vpop.f32.mrb[0].mxu0
        %v3529 = vadd.f32 %v3368, %v3528
        %v3530 = vpop.f32.mrb[0].mxu0
        %3531 = vmatprep.mubr.bf16.mxu0 0
        %3532 = vmatmul.mubr.bf16.gmra.mrb[0].mxu0 %v3221
        %v3533 = vpop.f32.mrb[0].mxu0
        %v3534 = vadd.f32 %v3373, %v3533
        %v3535 = vpop.f32.mrb[0].mxu0
        %v3536 = vpop.f32.mrb[0].mxu0
        %v3537 = vadd.f32 %v3376, %v3536
        %v3538 = vpop.f32.mrb[0].mxu0
        %3539 = vmatprep.mubr.bf16.mxu0 0
        %3540 = vmatmul.mubr.bf16.gmra.mrb[0].mxu0 %v3224
        %v3541 = vpop.f32.mrb[0].mxu0
        %v3542 = vadd.f32 %v3381, %v3541
        %v3543 = vpop.f32.mrb[0].mxu0
        %v3544 = vpop.f32.mrb[0].mxu0
        %v3545 = vadd.f32 %v3384, %v3544
        %v3546 = vpop.f32.mrb[0].mxu0
        %3547 = vdwg.mxu0
        %v3548 = vsel %vm331, %v3422, 0.0
        %v3549 = vsel %vm331, %v3425, 0.0
        %v3550 = vadd.f32 %v3548, %v3549
        %v3551 = vsel %vm331, %v3430, 0.0
        %v3552 = vadd.f32 %v3550, %v3551
        %v3553 = vsel %vm331, %v3433, 0.0
        %v3554 = vadd.f32 %v3552, %v3553
        %v3555 = vsel %vm331, %v3438, 0.0
        %v3556 = vadd.f32 %v3554, %v3555
        %v3557 = vsel %vm331, %v3441, 0.0
        %v3558 = vadd.f32 %v3556, %v3557
        %v3559 = vsel %vm331, %v3446, 0.0
        %v3560 = vadd.f32 %v3558, %v3559
        %v3561 = vsel %vm331, %v3449, 0.0
        %v3562 = vadd.f32 %v3560, %v3561
        %v3563 = vsel %vm331, %v3454, 0.0
        %v3564 = vadd.f32 %v3562, %v3563
        %v3565 = vsel %vm331, %v3457, 0.0
        %v3566 = vadd.f32 %v3564, %v3565
        %v3567 = vsel %vm331, %v3462, 0.0
        %v3568 = vadd.f32 %v3566, %v3567
        %v3569 = vsel %vm331, %v3465, 0.0
        %v3570 = vadd.f32 %v3568, %v3569
        %v3571 = vsel %vm331, %v3470, 0.0
        %v3572 = vadd.f32 %v3570, %v3571
        %v3573 = vsel %vm331, %v3473, 0.0
        %v3574 = vadd.f32 %v3572, %v3573
        %v3575 = vsel %vm331, %v3478, 0.0
        %v3576 = vadd.f32 %v3574, %v3575
        %v3577 = vsel %vm331, %v3481, 0.0
        %v3578 = vadd.f32 %v3576, %v3577
        %v3579 = vsel %vm331, %v3486, 0.0
        %v3580 = vadd.f32 %v3578, %v3579
        %v3581 = vsel %vm331, %v3489, 0.0
        %v3582 = vadd.f32 %v3580, %v3581
        %v3583 = vsel %vm331, %v3494, 0.0
        %v3584 = vadd.f32 %v3582, %v3583
        %v3585 = vsel %vm331, %v3497, 0.0
        %v3586 = vadd.f32 %v3584, %v3585
        %v3587 = vsel %vm331, %v3502, 0.0
        %v3588 = vadd.f32 %v3586, %v3587
        %v3589 = vsel %vm331, %v3505, 0.0
        %v3590 = vadd.f32 %v3588, %v3589
        %v3591 = vsel %vm331, %v3510, 0.0
        %v3592 = vadd.f32 %v3590, %v3591
        %v3593 = vsel %vm331, %v3513, 0.0
        %v3594 = vadd.f32 %v3592, %v3593
        %v3595 = vsel %vm331, %v3518, 0.0
        %v3596 = vadd.f32 %v3594, %v3595
        %v3597 = vsel %vm331, %v3521, 0.0
        %v3598 = vadd.f32 %v3596, %v3597
        %v3599 = vsel %vm331, %v3526, 0.0
        %v3600 = vadd.f32 %v3598, %v3599
        %v3601 = vsel %vm331, %v3529, 0.0
        %v3602 = vadd.f32 %v3600, %v3601
        %v3603 = vsel %vm331, %v3534, 0.0
        %v3604 = vadd.f32 %v3602, %v3603
        %v3605 = vsel %vm331, %v3537, 0.0
        %v3606 = vadd.f32 %v3604, %v3605
        %v3607 = vsel %vm331, %v3542, 0.0
        %v3608 = vadd.f32 %v3606, %v3607
        %v3609 = vsel %vm331, %v3545, 0.0
        %v3610 = vadd.f32 %v3608, %v3609
        %v3611 = vrot.slane %v3610, 4
        %v3612 = vadd.f32 %v3610, %v3611
        %v3613 = vrot.slane %v3612, 2
        %v3614 = vadd.f32 %v3612, %v3613
        %v3615 = vrot.slane %v3614, 1
        %v3616 = vadd.f32 %v3614, %v3615
        %v3617 = vmul.f32 %v3422, %v3422
        %v3618 = vmul.f32 %v3425, %v3425
        %v3619 = vmul.f32 %v3430, %v3430
        %v3620 = vmul.f32 %v3433, %v3433
        %v3621 = vmul.f32 %v3438, %v3438
        %v3622 = vmul.f32 %v3441, %v3441
        %v3623 = vmul.f32 %v3446, %v3446
        %v3624 = vmul.f32 %v3449, %v3449
        %v3625 = vmul.f32 %v3454, %v3454
        %v3626 = vmul.f32 %v3457, %v3457
        %v3627 = vmul.f32 %v3462, %v3462
        %v3628 = vmul.f32 %v3465, %v3465
        %v3629 = vmul.f32 %v3470, %v3470
        %v3630 = vmul.f32 %v3473, %v3473
        %v3631 = vmul.f32 %v3478, %v3478
        %v3632 = vmul.f32 %v3481, %v3481
        %v3633 = vmul.f32 %v3486, %v3486
        %v3634 = vmul.f32 %v3489, %v3489
        %v3635 = vmul.f32 %v3494, %v3494
        %v3636 = vmul.f32 %v3497, %v3497
        %v3637 = vmul.f32 %v3502, %v3502
        %v3638 = vmul.f32 %v3505, %v3505
        %v3639 = vmul.f32 %v3510, %v3510
        %v3640 = vmul.f32 %v3513, %v3513
        %v3641 = vmul.f32 %v3518, %v3518
        %v3642 = vmul.f32 %v3521, %v3521
        %v3643 = vmul.f32 %v3526, %v3526
        %v3644 = vmul.f32 %v3529, %v3529
        %v3645 = vmul.f32 %v3534, %v3534
        %v3646 = vmul.f32 %v3537, %v3537
        %v3647 = vmul.f32 %v3542, %v3542
        %v3648 = vmul.f32 %v3545, %v3545
        %v3649 = vsel %vm331, %v3617, 0.0
        %v3650 = vsel %vm331, %v3618, 0.0
        %v3651 = vadd.f32 %v3649, %v3650
        %v3652 = vsel %vm331, %v3619, 0.0
        %v3653 = vadd.f32 %v3651, %v3652
        %v3654 = vsel %vm331, %v3620, 0.0
        %v3655 = vadd.f32 %v3653, %v3654
        %v3656 = vsel %vm331, %v3621, 0.0
        %v3657 = vadd.f32 %v3655, %v3656
        %v3658 = vsel %vm331, %v3622, 0.0
        %v3659 = vadd.f32 %v3657, %v3658
        %v3660 = vsel %vm331, %v3623, 0.0
        %v3661 = vadd.f32 %v3659, %v3660
        %v3662 = vsel %vm331, %v3624, 0.0
        %v3663 = vadd.f32 %v3661, %v3662
        %v3664 = vsel %vm331, %v3625, 0.0
        %v3665 = vadd.f32 %v3663, %v3664
        %v3666 = vsel %vm331, %v3626, 0.0
        %v3667 = vadd.f32 %v3665, %v3666
        %v3668 = vsel %vm331, %v3627, 0.0
        %v3669 = vadd.f32 %v3667, %v3668
        %v3670 = vsel %vm331, %v3628, 0.0
        %v3671 = vadd.f32 %v3669, %v3670
        %v3672 = vsel %vm331, %v3629, 0.0
        %v3673 = vadd.f32 %v3671, %v3672
        %v3674 = vsel %vm331, %v3630, 0.0
        %v3675 = vadd.f32 %v3673, %v3674
        %v3676 = vsel %vm331, %v3631, 0.0
        %v3677 = vadd.f32 %v3675, %v3676
        %v3678 = vsel %vm331, %v3632, 0.0
        %v3679 = vadd.f32 %v3677, %v3678
        %v3680 = vsel %vm331, %v3633, 0.0
        %v3681 = vadd.f32 %v3679, %v3680
        %v3682 = vsel %vm331, %v3634, 0.0
        %v3683 = vadd.f32 %v3681, %v3682
        %v3684 = vsel %vm331, %v3635, 0.0
        %v3685 = vadd.f32 %v3683, %v3684
        %v3686 = vsel %vm331, %v3636, 0.0
        %v3687 = vadd.f32 %v3685, %v3686
        %v3688 = vsel %vm331, %v3637, 0.0
        %v3689 = vadd.f32 %v3687, %v3688
        %v3690 = vsel %vm331, %v3638, 0.0
        %v3691 = vadd.f32 %v3689, %v3690
        %v3692 = vsel %vm331, %v3639, 0.0
        %v3693 = vadd.f32 %v3691, %v3692
        %v3694 = vsel %vm331, %v3640, 0.0
        %v3695 = vadd.f32 %v3693, %v3694
        %v3696 = vsel %vm331, %v3641, 0.0
        %v3697 = vadd.f32 %v3695, %v3696
        %v3698 = vsel %vm331, %v3642, 0.0
        %v3699 = vadd.f32 %v3697, %v3698
        %v3700 = vsel %vm331, %v3643, 0.0
        %v3701 = vadd.f32 %v3699, %v3700
        %v3702 = vsel %vm331, %v3644, 0.0
        %v3703 = vadd.f32 %v3701, %v3702
        %v3704 = vsel %vm331, %v3645, 0.0
        %v3705 = vadd.f32 %v3703, %v3704
        %v3706 = vsel %vm331, %v3646, 0.0
        %v3707 = vadd.f32 %v3705, %v3706
        %v3708 = vsel %vm331, %v3647, 0.0
        %v3709 = vadd.f32 %v3707, %v3708
        %v3710 = vsel %vm331, %v3648, 0.0
        %v3711 = vadd.f32 %v3709, %v3710
        %v3712 = vrot.slane %v3711, 4
        %v3713 = vadd.f32 %v3711, %v3712
        %v3714 = vrot.slane %v3713, 2
        %v3715 = vadd.f32 %v3713, %v3714
        %v3716 = vrot.slane %v3715, 1
        %v3717 = vadd.f32 %v3715, %v3716
        %v3718 = vmul.f32 %v3616, 0.00390625
        %v3719 = vmul.f32 %v3717, 0.00390625
        %v3720 = vmul.f32 %v3718, %v3718
        %v3721 = vsub.f32 %v3719, %v3720
        %v3722 = vmax.f32 %v3721, 0.0
        %v3723 = vsub.f32 %v3422, %v3718
        %v3724 = vsub.f32 %v3425, %v3718
        %v3725 = vsub.f32 %v3430, %v3718
        %v3726 = vsub.f32 %v3433, %v3718
        %v3727 = vsub.f32 %v3438, %v3718
        %v3728 = vsub.f32 %v3441, %v3718
        %v3729 = vsub.f32 %v3446, %v3718
        %v3730 = vsub.f32 %v3449, %v3718
        %v3731 = vsub.f32 %v3454, %v3718
        %v3732 = vsub.f32 %v3457, %v3718
        %v3733 = vsub.f32 %v3462, %v3718
        %v3734 = vsub.f32 %v3465, %v3718
        %v3735 = vsub.f32 %v3470, %v3718
        %v3736 = vsub.f32 %v3473, %v3718
        %v3737 = vsub.f32 %v3478, %v3718
        %v3738 = vsub.f32 %v3481, %v3718
        %v3739 = vsub.f32 %v3486, %v3718
        %v3740 = vsub.f32 %v3489, %v3718
        %v3741 = vsub.f32 %v3494, %v3718
        %v3742 = vsub.f32 %v3497, %v3718
        %v3743 = vsub.f32 %v3502, %v3718
        %v3744 = vsub.f32 %v3505, %v3718
        %v3745 = vsub.f32 %v3510, %v3718
        %v3746 = vsub.f32 %v3513, %v3718
        %v3747 = vsub.f32 %v3518, %v3718
        %v3748 = vsub.f32 %v3521, %v3718
        %v3749 = vsub.f32 %v3526, %v3718
        %v3750 = vsub.f32 %v3529, %v3718
        %v3751 = vsub.f32 %v3534, %v3718
        %v3752 = vsub.f32 %v3537, %v3718
        %v3753 = vsub.f32 %v3542, %v3718
        %v3754 = vsub.f32 %v3545, %v3718
        %v3755 = vadd.f32 %v3722, 1e-05
        %v3756 = vrsqrt.pop %v3755
        %v3757 = vmul.f32 %v3723, %v3756
        %v3758 = vmul.f32 %v3724, %v3756
        %v3759 = vmul.f32 %v3725, %v3756
        %v3760 = vmul.f32 %v3726, %v3756
        %v3761 = vmul.f32 %v3727, %v3756
        %v3762 = vmul.f32 %v3728, %v3756
        %v3763 = vmul.f32 %v3729, %v3756
        %v3764 = vmul.f32 %v3730, %v3756
        %v3765 = vmul.f32 %v3731, %v3756
        %v3766 = vmul.f32 %v3732, %v3756
        %v3767 = vmul.f32 %v3733, %v3756
        %v3768 = vmul.f32 %v3734, %v3756
        %v3769 = vmul.f32 %v3735, %v3756
        %v3770 = vmul.f32 %v3736, %v3756
        %v3771 = vmul.f32 %v3737, %v3756
        %v3772 = vmul.f32 %v3738, %v3756
        %v3773 = vmul.f32 %v3739, %v3756
        %v3774 = vmul.f32 %v3740, %v3756
        %v3775 = vmul.f32 %v3741, %v3756
        %v3776 = vmul.f32 %v3742, %v3756
        %v3777 = vmul.f32 %v3743, %v3756
        %v3778 = vmul.f32 %v3744, %v3756
        %v3779 = vmul.f32 %v3745, %v3756
        %v3780 = vmul.f32 %v3746, %v3756
        %v3781 = vmul.f32 %v3747, %v3756
        %v3782 = vmul.f32 %v3748, %v3756
        %v3783 = vmul.f32 %v3749, %v3756
        %v3784 = vmul.f32 %v3750, %v3756
        %v3785 = vmul.f32 %v3751, %v3756
        %v3786 = vmul.f32 %v3752, %v3756
        %v3787 = vmul.f32 %v3753, %v3756
        %v3788 = vmul.f32 %v3754, %v3756
        %vm3821 = vcmask 1040384
        %v3822 = vrot.slane %v3757, 7
        %v3823 = vrot.slane %v3758, 7
        %v3824 = vsel %vm3821, %v3822, %v3823
        %v3825 = vrot.slane %v3759, 7
        %v3826 = vrot.slane %v3760, 7
        %v3827 = vsel %vm3821, %v3825, %v3826
        %v3828 = vrot.slane %v3761, 7
        %v3829 = vrot.slane %v3762, 7
        %v3830 = vsel %vm3821, %v3828, %v3829
        %v3831 = vrot.slane %v3763, 7
        %v3832 = vrot.slane %v3764, 7
        %v3833 = vsel %vm3821, %v3831, %v3832
        %v3834 = vrot.slane %v3765, 7
        %v3835 = vrot.slane %v3766, 7
        %v3836 = vsel %vm3821, %v3834, %v3835
        %v3837 = vrot.slane %v3767, 7
        %v3838 = vrot.slane %v3768, 7
        %v3839 = vsel %vm3821, %v3837, %v3838
        %v3840 = vrot.slane %v3769, 7
        %v3841 = vrot.slane %v3770, 7
        %v3842 = vsel %vm3821, %v3840, %v3841
        %v3843 = vrot.slane %v3771, 7
        %v3844 = vrot.slane %v3772, 7
        %v3845 = vsel %vm3821, %v3843, %v3844
        %v3846 = vrot.slane %v3773, 7
        %v3847 = vrot.slane %v3774, 7
        %v3848 = vsel %vm3821, %v3846, %v3847
        %v3849 = vrot.slane %v3775, 7
        %v3850 = vrot.slane %v3776, 7
        %v3851 = vsel %vm3821, %v3849, %v3850
        %v3852 = vrot.slane %v3777, 7
        %v3853 = vrot.slane %v3778, 7
        %v3854 = vsel %vm3821, %v3852, %v3853
        %v3855 = vrot.slane %v3779, 7
        %v3856 = vrot.slane %v3780, 7
        %v3857 = vsel %vm3821, %v3855, %v3856
        %v3858 = vrot.slane %v3781, 7
        %v3859 = vrot.slane %v3782, 7
        %v3860 = vsel %vm3821, %v3858, %v3859
        %v3861 = vrot.slane %v3783, 7
        %v3862 = vrot.slane %v3784, 7
        %v3863 = vsel %vm3821, %v3861, %v3862
        %v3864 = vrot.slane %v3785, 7
        %v3865 = vrot.slane %v3786, 7
        %v3866 = vsel %vm3821, %v3864, %v3865
        %v3867 = vrot.slane %v3787, 7
        %v3868 = vrot.slane %v3788, 7
        %v3869 = vsel %vm3821, %v3867, %v3868
        %v3918 = vadd.f32 %v227, %v3822
        %v3919 = vadd.f32 %v228, %v3824
        %v3920 = vadd.f32 %v229, %v3823
        %v3921 = vadd.f32 %v230, %v3825
        %v3922 = vadd.f32 %v231, %v3827
        %v3923 = vadd.f32 %v232, %v3826
        %v3924 = vadd.f32 %v233, %v3828
        %v3925 = vadd.f32 %v234, %v3830
        %v3926 = vadd.f32 %v235, %v3829
        %v3927 = vadd.f32 %v236, %v3831
        %v3928 = vadd.f32 %v237, %v3833
        %v3929 = vadd.f32 %v238, %v3832
        %v3930 = vadd.f32 %v239, %v3834
        %v3931 = vadd.f32 %v240, %v3836
        %v3932 = vadd.f32 %v241, %v3835
        %v3933 = vadd.f32 %v242, %v3837
        %v3934 = vadd.f32 %v243, %v3839
        %v3935 = vadd.f32 %v244, %v3838
        %v3936 = vadd.f32 %v245, %v3840
        %v3937 = vadd.f32 %v246, %v3842
        %v3938 = vadd.f32 %v247, %v3841
        %v3939 = vadd.f32 %v248, %v3843
        %v3940 = vadd.f32 %v249, %v3845
        %v3941 = vadd.f32 %v250, %v3844
        %v3942 = vadd.f32 %v251, %v3846
        %v3943 = vadd.f32 %v252, %v3848
        %v3944 = vadd.f32 %v253, %v3847
        %v3945 = vadd.f32 %v254, %v3849
        %v3946 = vadd.f32 %v255, %v3851
        %v3947 = vadd.f32 %v256, %v3850
        %v3948 = vadd.f32 %v257, %v3852
        %v3949 = vadd.f32 %v258, %v3854
        %v3950 = vadd.f32 %v259, %v3853
        %v3951 = vadd.f32 %v260, %v3855
        %v3952 = vadd.f32 %v261, %v3857
        %v3953 = vadd.f32 %v262, %v3856
        %v3954 = vadd.f32 %v263, %v3858
        %v3955 = vadd.f32 %v264, %v3860
        %v3956 = vadd.f32 %v265, %v3859
        %v3957 = vadd.f32 %v266, %v3861
        %v3958 = vadd.f32 %v267, %v3863
        %v3959 = vadd.f32 %v268, %v3862
        %v3960 = vadd.f32 %v269, %v3864
        %v3961 = vadd.f32 %v270, %v3866
        %v3962 = vadd.f32 %v271, %v3865
        %v3963 = vadd.f32 %v272, %v3867
        %v3964 = vadd.f32 %v273, %v3869
        %v3965 = vadd.f32 %v274, %v3868
        %vm3966 = vcmask 261121
        %3967 = vst.msk [vmem:[%s217 - $0x1] sm:$0xfe] %vm3966, %v3918
        %3968 = vst.msk [vmem:[%s217 + $0x7] sm:$0xff] %vm331, %v3919
        %3969 = vst.msk [vmem:[%s217 + $0xf] sm:$0x1] %vm2026, %v3920
        %3970 = vst.msk [vmem:[%s217 + $0xf] sm:$0xfe] %vm3966, %v3921
        %3971 = vst.msk [vmem:[%s217 + $0x17] sm:$0xff] %vm331, %v3922
        %3972 = vst.msk [vmem:[%s217 + $0x1f] sm:$0x1] %vm2026, %v3923
        %3973 = vst.msk [vmem:[%s217 + $0x1f] sm:$0xfe] %vm3966, %v3924
        %3974 = vst.msk [vmem:[%s217 + $0x27] sm:$0xff] %vm331, %v3925
        %3975 = vst.msk [vmem:[%s217 + $0x2f] sm:$0x1] %vm2026, %v3926
        %3976 = vst.msk [vmem:[%s217 + $0x2f] sm:$0xfe] %vm3966, %v3927
        %3977 = vst.msk [vmem:[%s217 + $0x37] sm:$0xff] %vm331, %v3928
        %3978 = vst.msk [vmem:[%s217 + $0x3f] sm:$0x1] %vm2026, %v3929
        %3979 = vst.msk [vmem:[%s217 + $0x3f] sm:$0xfe] %vm3966, %v3930
        %3980 = vst.msk [vmem:[%s217 + $0x47] sm:$0xff] %vm331, %v3931
        %3981 = vst.msk [vmem:[%s217 + $0x4f] sm:$0x1] %vm2026, %v3932
        %3982 = vst.msk [vmem:[%s217 + $0x4f] sm:$0xfe] %vm3966, %v3933
        %3983 = vst.msk [vmem:[%s217 + $0x57] sm:$0xff] %vm331, %v3934
        %3984 = vst.msk [vmem:[%s217 + $0x5f] sm:$0x1] %vm2026, %v3935
        %3985 = vst.msk [vmem:[%s217 + $0x5f] sm:$0xfe] %vm3966, %v3936
        %3986 = vst.msk [vmem:[%s217 + $0x67] sm:$0xff] %vm331, %v3937
        %3987 = vst.msk [vmem:[%s217 + $0x6f] sm:$0x1] %vm2026, %v3938
        %3988 = vst.msk [vmem:[%s217 + $0x6f] sm:$0xfe] %vm3966, %v3939
        %3989 = vst.msk [vmem:[%s217 + $0x77] sm:$0xff] %vm331, %v3940
        %3990 = vst.msk [vmem:[%s217 + $0x7f] sm:$0x1] %vm2026, %v3941
        %3991 = vst.msk [vmem:[%s217 + $0x7f] sm:$0xfe] %vm3966, %v3942
        %3992 = vst.msk [vmem:[%s217 + $0x87] sm:$0xff] %vm331, %v3943
        %3993 = vst.msk [vmem:[%s217 + $0x8f] sm:$0x1] %vm2026, %v3944
        %3994 = vst.msk [vmem:[%s217 + $0x8f] sm:$0xfe] %vm3966, %v3945
        %3995 = vst.msk [vmem:[%s217 + $0x97] sm:$0xff] %vm331, %v3946
        %3996 = vst.msk [vmem:[%s217 + $0x9f] sm:$0x1] %vm2026, %v3947
        %3997 = vst.msk [vmem:[%s217 + $0x9f] sm:$0xfe] %vm3966, %v3948
        %3998 = vst.msk [vmem:[%s217 + $0xa7] sm:$0xff] %vm331, %v3949
        %3999 = vst.msk [vmem:[%s217 + $0xaf] sm:$0x1] %vm2026, %v3950
        %4000 = vst.msk [vmem:[%s217 + $0xaf] sm:$0xfe] %vm3966, %v3951
        %4001 = vst.msk [vmem:[%s217 + $0xb7] sm:$0xff] %vm331, %v3952
        %4002 = vst.msk [vmem:[%s217 + $0xbf] sm:$0x1] %vm2026, %v3953
        %4003 = vst.msk [vmem:[%s217 + $0xbf] sm:$0xfe] %vm3966, %v3954
        %4004 = vst.msk [vmem:[%s217 + $0xc7] sm:$0xff] %vm331, %v3955
        %4005 = vst.msk [vmem:[%s217 + $0xcf] sm:$0x1] %vm2026, %v3956
        %4006 = vst.msk [vmem:[%s217 + $0xcf] sm:$0xfe] %vm3966, %v3957
        %4007 = vst.msk [vmem:[%s217 + $0xd7] sm:$0xff] %vm331, %v3958
        %4008 = vst.msk [vmem:[%s217 + $0xdf] sm:$0x1] %vm2026, %v3959
        %4009 = vst.msk [vmem:[%s217 + $0xdf] sm:$0xfe] %vm3966, %v3960
        %4010 = vst.msk [vmem:[%s217 + $0xe7] sm:$0xff] %vm331, %v3961
        %4011 = vst.msk [vmem:[%s217 + $0xef] sm:$0x1] %vm2026, %v3962
        %4012 = vst.msk [vmem:[%s217 + $0xef] sm:$0xfe] %vm3966, %v3963
        %4013 = vst.msk [vmem:[%s217 + $0xf7] sm:$0xff] %vm331, %v3964
        %4014 = vst.msk [vmem:[%s217 + $0xff] sm:$0x1] %vm2026, %v3965
        %s4015 = sand.u32 %s137, 1
        %s4016 = scalar_lea.sflag [#allocation5], %s4015
        %s4017 = sand.u32 %s137, 1
        %s4018 = smul.addr %s4017, 256
        %s4019 = scalar_lea.vmem [#allocation4], %s4018
        // Predicated region
        $region41: #{tpu_custom_call.1} parent=39 // pred_check
          %p4020 = pneg %p147
        $region42: #{tpu_custom_call.1} parent=39 // pred_check_branch
          %4022 = sbr.rel (%p4020) target = $region44
        $region43: #{tpu_custom_call.1} parent=39 // pred_region
          %s4024 = ssub.s32 4096, 4096
          %4025 = vsyncadd %s4016, %s4024
          %s4026 = smul.addr %s19, 32
          %s4027 = smul.addr %s4026, 128
          %s4028 = scalar_lea.hbm %s5, %s4027
          %s4029 = sshll.u32 %s4019, 4
          %s4030 = int_to_ptr.vmem [resolvable:$true] %s4029
          %4035 = dma.vmem_to_hbm [thread:$0]  %s4030, 4096, %s4028, %s4016, 128, 128, 8
        $region44: #{tpu_custom_call.1} parent=39 // pred_fallthru
          _
      $region40: #{tpu_custom_call.1} parent=5 // pred_fallthru
        _
      %p4036 = scmp.le.s32.totalorder 2, %s14
      // Predicated region
      $region45: #{tpu_custom_call.1} parent=5 // pred_check
        %p4037 = pneg %p4036
      $region46: #{tpu_custom_call.1} parent=5 // pred_check_branch
        %4039 = sbr.rel (%p4037) target = $region48
      $region47: #{tpu_custom_call.1} parent=5 // pred_region
        %s4040 = ssub.s32 %s14, 2
        // Predicated region
        $region49: #{tpu_custom_call.1} parent=47 // pred_check
          %p4041 = pneg %p153
        $region50: #{tpu_custom_call.1} parent=47 // pred_check_branch
          %4043 = sbr.rel (%p4041) target = $region52
        $region51: #{tpu_custom_call.1} parent=47 // pred_region
          %s4044 = sand.u32 %s138, 1
          %s4045 = scalar_lea.sflag [#allocation5], %s4044
          %s4046 = sand.u32 %s138, 1
          %s4047 = smul.addr %s4046, 256
          %s4048 = scalar_lea.vmem [#allocation4], %s4047
          %4049 = dma.done %s4045, 4096
        $region52: #{tpu_custom_call.1} parent=47 // pred_fallthru
          _
      $region48: #{tpu_custom_call.1} parent=5 // pred_fallthru
        _
    $region6: #{tpu_custom_call.1} parent=1 // loop_footer
      %s18 = sadd.s32 1, %s14
    $region7: #{tpu_custom_call.1} parent=1 // loop_footer_branch
      %13 = sbr.rel target = $region3
    $region8: #{tpu_custom_call.1} parent=1 // loop_exit
      _
    %4050 = vsyncpa [#allocation5], 1
    %s4051 = scalar_lea.sflag [#allocation5], 1
    %4052 = vsyncpa %s4051, 1

</llo_original>
